<compile_context>
chip_gen: v6e
topology: v6e:2x2x1
jax: 0.10.0
libtpu: 0.0.40
codegen_flags: <defaults>
</compile_context>

<pallas_src>
import functools

import jax
import jax.numpy as jnp
from jax.experimental import pallas as pl
from jax.experimental.pallas import tpu as pltpu


def _round_up(x, m):
    return ((x + m - 1) // m) * m


# ----------------------------------------------------------------------------
# Kernel
# ----------------------------------------------------------------------------
def tnetkd_kernel(
    x_ref,                                # (TB, TN, Cin)  bf16
    w1_ref, s1_ref, t1_ref,               # conv1: (Cin, C1) bf16, (1, C1) f32 x2
    w2_ref, s2_ref, t2_ref,               # conv2
    w3_ref, s3_ref, t3_ref,               # conv3
    wf1_ref, sf1_ref, tf1_ref,            # fc1
    wf2_ref, sf2_ref, tf2_ref,            # fc2
    wf3_ref, bf3_ref,                     # fc3: (256, k*k) bf16, (1, k*k) f32
    eye_ref,                              # (1, k*k) f32 flattened identity
    out_ref,                              # (TB, k*k) f32
    gmax_ref,                             # (TB, C3) f32 scratch (running max)
    *, tb, tn, n_valid,
):
    f32 = jnp.float32
    bf16 = jnp.bfloat16
    n_idx = pl.program_id(1)

    @pl.when(n_idx == 0)
    def _init():
        gmax_ref[...] = jnp.full(gmax_ref.shape, -jnp.inf, dtype=f32)

    # Flatten TB*TN points into one large matmul M dimension.
    cin = x_ref.shape[-1]
    x = x_ref[...].reshape(tb * tn, cin)                             # bf16

    # Shared MLP (Conv1d k=1 == per-point matmul) + folded BN + ReLU.
    h = jnp.dot(x, w1_ref[...], preferred_element_type=f32)
    h = jnp.maximum(h * s1_ref[...] + t1_ref[...], 0.0).astype(bf16)
    h = jnp.dot(h, w2_ref[...], preferred_element_type=f32)
    h = jnp.maximum(h * s2_ref[...] + t2_ref[...], 0.0).astype(bf16)
    h = jnp.dot(h, w3_ref[...], preferred_element_type=f32)
    h = jnp.maximum(h * s3_ref[...] + t3_ref[...], 0.0)              # (TB*TN, C3) f32

    h = h.reshape(tb, tn, h.shape[-1])                               # (TB, TN, C3)

    # Mask padded point rows (>= true N) to -inf so they cannot win the max.
    row = jax.lax.broadcasted_iota(jnp.int32, (1, tn, 1), 1) + n_idx * tn
    h = jnp.where(row < n_valid, h, -jnp.inf)

    # Running global max over the N tiles.
    gmax_ref[...] = jnp.maximum(gmax_ref[...], jnp.max(h, axis=1))   # (TB, C3)

    @pl.when(n_idx == pl.num_programs(1) - 1)
    def _head():
        g = gmax_ref[...].astype(bf16)                               # (TB, C3)
        f = jnp.dot(g, wf1_ref[...], preferred_element_type=f32)
        f = jnp.maximum(f * sf1_ref[...] + tf1_ref[...], 0.0).astype(bf16)
        f = jnp.dot(f, wf2_ref[...], preferred_element_type=f32)
        f = jnp.maximum(f * sf2_ref[...] + tf2_ref[...], 0.0).astype(bf16)
        f = jnp.dot(f, wf3_ref[...], preferred_element_type=f32)
        out_ref[...] = f + bf3_ref[...] + eye_ref[...]               # (TB, k*k)


# ----------------------------------------------------------------------------
# Wrapper
# ----------------------------------------------------------------------------
def _const_spec(shape):
    nd = len(shape)
    return pl.BlockSpec(shape, lambda b, n, _nd=nd: (0,) * _nd)


@functools.partial(jax.jit, static_argnames=("output_k",))
def tnetkd_forward(x_bcn, params, *, output_k):
    """x_bcn: [B, Cin, N] (PyTorch layout). Returns [B, output_k, output_k]."""
    B, Cin, N = x_bcn.shape
    kk = output_k * output_k

    (w1, s1, t1, w2, s2, t2, w3, s3, t3,
     wf1, sf1, tf1, wf2, sf2, tf2, wf3, bf3, eye_flat) = params

    bf16 = jnp.bfloat16
    # bf16 weights for the MXU; BN scale/shift, fc3 bias, identity stay f32.
    w1, w2, w3, wf1, wf2, wf3 = (w.astype(bf16)
                                 for w in (w1, w2, w3, wf1, wf2, wf3))
    c3 = w3.shape[1]

    # Tile sizes: TB batch elements and TN points per grid step.
    TB = 8
    TN = min(256, _round_up(N, 8))
    B_pad = _round_up(B, TB)
    N_pad = _round_up(N, TN)

    # Channels-last + bf16 in one XLA pass, then pad B and N up to the tiles.
    x = jnp.transpose(x_bcn, (0, 2, 1)).astype(bf16)                 # [B, N, Cin]
    x = jnp.pad(x, ((0, B_pad - B), (0, N_pad - N), (0, 0)))

    kernel = functools.partial(tnetkd_kernel, tb=TB, tn=TN, n_valid=N)

    in_specs = [pl.BlockSpec((TB, TN, Cin), lambda b, n: (b, n, 0))] + [
        _const_spec(p.shape)
        for p in (w1, s1, t1, w2, s2, t2, w3, s3, t3,
                  wf1, sf1, tf1, wf2, sf2, tf2, wf3, bf3, eye_flat)
    ]

    out = pl.pallas_call(
        kernel,
        out_shape=jax.ShapeDtypeStruct((B_pad, kk), jnp.float32),
        grid_spec=pltpu.PrefetchScalarGridSpec(
            num_scalar_prefetch=0,
            grid=(B_pad // TB, N_pad // TN),
            in_specs=in_specs,
            out_specs=pl.BlockSpec((TB, kk), lambda b, n: (b, 0)),
            scratch_shapes=[pltpu.VMEM((TB, c3), jnp.float32)],
        ),
        compiler_params=pltpu.CompilerParams(
            dimension_semantics=("parallel", "arbitrary"),
            vmem_limit_bytes=48 * 1024 * 1024,
        ),
    )(x, w1, s1, t1, w2, s2, t2, w3, s3, t3,
      wf1, sf1, tf1, wf2, sf2, tf2, wf3, bf3, eye_flat)

    return out[:B].reshape(B, output_k, output_k)


# ----------------------------------------------------------------------------
# Deterministic parameter construction (eval-mode BN folded to scale/shift)
# ----------------------------------------------------------------------------
def make_params(key, in_channel, output_k, out_channels=(64, 128, 1024)):
    def linear_w(key, cin, cout, scale=0.05):
        return (scale * jax.random.normal(key, (cin, cout))).astype(jnp.float32)

    def bn_fold(key, c, eps=1e-5):
        kg, kb, km, kv = jax.random.split(key, 4)
        gamma = jax.random.uniform(kg, (1, c), minval=0.5, maxval=1.5)
        beta = 0.1 * jax.random.normal(kb, (1, c))
        rmean = 0.1 * jax.random.normal(km, (1, c))
        rvar = jax.random.uniform(kv, (1, c), minval=0.5, maxval=1.5)
        scale = gamma / jnp.sqrt(rvar + eps)
        shift = beta - rmean * scale
        return scale.astype(jnp.float32), shift.astype(jnp.float32)

    c1, c2, c3 = out_channels
    keys = jax.random.split(key, 12)
    w1 = linear_w(keys[0], in_channel, c1)
    s1, t1 = bn_fold(keys[1], c1)
    w2 = linear_w(keys[2], c1, c2)
    s2, t2 = bn_fold(keys[3], c2)
    w3 = linear_w(keys[4], c2, c3)
    s3, t3 = bn_fold(keys[5], c3)
    wf1 = linear_w(keys[6], c3, 512)
    sf1, tf1 = bn_fold(keys[7], 512)
    wf2 = linear_w(keys[8], 512, 256)
    sf2, tf2 = bn_fold(keys[9], 256)
    wf3 = linear_w(keys[10], 256, output_k * output_k)
    bf3 = (0.05 * jax.random.normal(keys[11], (1, output_k * output_k))
           ).astype(jnp.float32)
    eye_flat = jnp.eye(output_k, dtype=jnp.float32).reshape(1, -1)
    return (w1, s1, t1, w2, s2, t2, w3, s3, t3,
            wf1, sf1, tf1, wf2, sf2, tf2, wf3, bf3, eye_flat)


# Pure-JAX reference with the same bf16 matmul / f32 accumulate math.
def tnetkd_reference(x_bcn, params, output_k):
    (w1, s1, t1, w2, s2, t2, w3, s3, t3,
     wf1, sf1, tf1, wf2, sf2, tf2, wf3, bf3, eye_flat) = params
    bf16, f32 = jnp.bfloat16, jnp.float32
    x = jnp.transpose(x_bcn, (0, 2, 1)).astype(bf16)                 # [B, N, Cin]
    h = jnp.einsum("bnc,cd->bnd", x, w1.astype(bf16), preferred_element_type=f32)
    h = jnp.maximum(h * s1 + t1, 0.0).astype(bf16)
    h = jnp.einsum("bnc,cd->bnd", h, w2.astype(bf16), preferred_element_type=f32)
    h = jnp.maximum(h * s2 + t2, 0.0).astype(bf16)
    h = jnp.einsum("bnc,cd->bnd", h, w3.astype(bf16), preferred_element_type=f32)
    h = jnp.maximum(h * s3 + t3, 0.0)
    g = jnp.max(h, axis=1).astype(bf16)                              # [B, C3]
    f = jnp.dot(g, wf1.astype(bf16), preferred_element_type=f32)
    f = jnp.maximum(f * sf1 + tf1, 0.0).astype(bf16)
    f = jnp.dot(f, wf2.astype(bf16), preferred_element_type=f32)
    f = jnp.maximum(f * sf2 + tf2, 0.0).astype(bf16)
    f = jnp.dot(f, wf3.astype(bf16), preferred_element_type=f32)
    f = f + bf3 + eye_flat
    return f.reshape(-1, output_k, output_k)


if __name__ == "__main__":
    key = jax.random.PRNGKey(0)

    # Case 1: small input T-Net (output_k = 3), 32 points per cloud.
    B, Cin, N, output_k = 2, 3, 32, 3
    kx, kp, key = jax.random.split(key, 3)
    x = jax.random.normal(kx, (B, Cin, N), dtype=jnp.float32)        # PyTorch NCW
    params = make_params(kp, Cin, output_k)
    out = jax.block_until_ready(tnetkd_forward(x, params, output_k=output_k))
    ref = tnetkd_reference(x, params, output_k)
    assert out.shape == (B, output_k, output_k)
    assert jnp.allclose(out, ref, atol=2e-3, rtol=2e-3), "mismatch (case 1)"

    # Case 2: exercises batch tiling, multiple N tiles and the -inf row mask.
    B2, Cin2, N2, output_k2 = 10, 3, 300, 3
    kx2, kp2 = jax.random.split(key)
    x2 = jax.random.normal(kx2, (B2, Cin2, N2), dtype=jnp.float32)
    params2 = make_params(kp2, Cin2, output_k2)
    out2 = jax.block_until_ready(tnetkd_forward(x2, params2, output_k=output_k2))
    ref2 = tnetkd_reference(x2, params2, output_k2)
    assert out2.shape == (B2, output_k2, output_k2)
    assert jnp.allclose(out2, ref2, atol=2e-3, rtol=2e-3), "mismatch (case 2)"

    print("KERNEL_OK")
</pallas_src>

<mosaic_0001>
module attributes {stable_mosaic.version = 11 : i64} {
  func.func @tnetkd_kernel(%arg0: i32, %arg1: i32, %arg2: memref<8x32x3xbf16, #tpu.memory_space<vmem>>, %arg3: memref<3x64xbf16, #tpu.memory_space<vmem>>, %arg4: memref<1x64xf32, #tpu.memory_space<vmem>>, %arg5: memref<1x64xf32, #tpu.memory_space<vmem>>, %arg6: memref<64x128xbf16, #tpu.memory_space<vmem>>, %arg7: memref<1x128xf32, #tpu.memory_space<vmem>>, %arg8: memref<1x128xf32, #tpu.memory_space<vmem>>, %arg9: memref<128x1024xbf16, #tpu.memory_space<vmem>>, %arg10: memref<1x1024xf32, #tpu.memory_space<vmem>>, %arg11: memref<1x1024xf32, #tpu.memory_space<vmem>>, %arg12: memref<1024x512xbf16, #tpu.memory_space<vmem>>, %arg13: memref<1x512xf32, #tpu.memory_space<vmem>>, %arg14: memref<1x512xf32, #tpu.memory_space<vmem>>, %arg15: memref<512x256xbf16, #tpu.memory_space<vmem>>, %arg16: memref<1x256xf32, #tpu.memory_space<vmem>>, %arg17: memref<1x256xf32, #tpu.memory_space<vmem>>, %arg18: memref<256x9xbf16, #tpu.memory_space<vmem>>, %arg19: memref<1x9xf32, #tpu.memory_space<vmem>>, %arg20: memref<1x9xf32, #tpu.memory_space<vmem>>, %arg21: memref<8x9xf32, #tpu.memory_space<vmem>>, %arg22: memref<8x1024xf32, #tpu.memory_space<vmem>>) attributes {dimension_semantics = [#tpu.dimension_semantics<parallel>, #tpu.dimension_semantics<arbitrary>], iteration_bounds = array<i64: 1, 1>, scalar_prefetch = 0 : i64, scratch_operands = 1 : i64, tpu.core_type = #tpu.core_type<tc>, window_params = [{transform_indices = @transform_0, window_bounds = array<i64: 8, 32, 3>}, {pipeline_mode = #tpu.pipeline_mode<synchronous>, transform_indices = @transform_1, window_bounds = array<i64: 3, 64>}, {pipeline_mode = #tpu.pipeline_mode<synchronous>, transform_indices = @transform_2, window_bounds = array<i64: 1, 64>}, {pipeline_mode = #tpu.pipeline_mode<synchronous>, transform_indices = @transform_3, window_bounds = array<i64: 1, 64>}, {pipeline_mode = #tpu.pipeline_mode<synchronous>, transform_indices = @transform_4, window_bounds = array<i64: 64, 128>}, {pipeline_mode = #tpu.pipeline_mode<synchronous>, transform_indices = @transform_5, window_bounds = array<i64: 1, 128>}, {pipeline_mode = #tpu.pipeline_mode<synchronous>, transform_indices = @transform_6, window_bounds = array<i64: 1, 128>}, {pipeline_mode = #tpu.pipeline_mode<synchronous>, transform_indices = @transform_7, window_bounds = array<i64: 128, 1024>}, {pipeline_mode = #tpu.pipeline_mode<synchronous>, transform_indices = @transform_8, window_bounds = array<i64: 1, 1024>}, {pipeline_mode = #tpu.pipeline_mode<synchronous>, transform_indices = @transform_9, window_bounds = array<i64: 1, 1024>}, {pipeline_mode = #tpu.pipeline_mode<synchronous>, transform_indices = @transform_10, window_bounds = array<i64: 1024, 512>}, {pipeline_mode = #tpu.pipeline_mode<synchronous>, transform_indices = @transform_11, window_bounds = array<i64: 1, 512>}, {pipeline_mode = #tpu.pipeline_mode<synchronous>, transform_indices = @transform_12, window_bounds = array<i64: 1, 512>}, {pipeline_mode = #tpu.pipeline_mode<synchronous>, transform_indices = @transform_13, window_bounds = array<i64: 512, 256>}, {pipeline_mode = #tpu.pipeline_mode<synchronous>, transform_indices = @transform_14, window_bounds = array<i64: 1, 256>}, {pipeline_mode = #tpu.pipeline_mode<synchronous>, transform_indices = @transform_15, window_bounds = array<i64: 1, 256>}, {pipeline_mode = #tpu.pipeline_mode<synchronous>, transform_indices = @transform_16, window_bounds = array<i64: 256, 9>}, {pipeline_mode = #tpu.pipeline_mode<synchronous>, transform_indices = @transform_17, window_bounds = array<i64: 1, 9>}, {pipeline_mode = #tpu.pipeline_mode<synchronous>, transform_indices = @transform_18, window_bounds = array<i64: 1, 9>}, {transform_indices = @transform_19, window_bounds = array<i64: 8, 9>}]} {
    %c0_i32 = arith.constant 0 : i32
    %0 = arith.cmpi eq, %arg1, %c0_i32 : i32
    %1 = arith.extui %0 : i1 to i32
    %c0_i32_0 = arith.constant 0 : i32
    %2 = arith.cmpi ne, %1, %c0_i32_0 : i32
    scf.if %2 {
      %cst_35 = arith.constant 0xFF800000 : f32
      %55 = vector.broadcast %cst_35 : f32 to vector<8x1024xf32>
      %c0_36 = arith.constant 0 : index
      %c0_37 = arith.constant 0 : index
      %56 = vector.load %arg22[%c0_36, %c0_37] : memref<8x1024xf32, #tpu.memory_space<vmem>>, vector<8x1024xf32>
      tpu.vector_store %arg22[%c0_36, %c0_37], %55 {strides = array<i32>} : memref<8x1024xf32, #tpu.memory_space<vmem>>, vector<8x1024xf32>,
    } else {
    }
    %c0 = arith.constant 0 : index
    %c0_1 = arith.constant 0 : index
    %c0_2 = arith.constant 0 : index
    %3 = vector.load %arg2[%c0, %c0_1, %c0_2] : memref<8x32x3xbf16, #tpu.memory_space<vmem>>, vector<8x32x3xbf16>
    %4 = vector.shape_cast %3 : vector<8x32x3xbf16> to vector<256x3xbf16>
    %c0_3 = arith.constant 0 : index
    %c0_4 = arith.constant 0 : index
    %5 = vector.load %arg3[%c0_3, %c0_4] : memref<3x64xbf16, #tpu.memory_space<vmem>>, vector<3x64xbf16>
    %cst = arith.constant dense<0.000000e+00> : vector<256x64xf32>
    %6 = tpu.matmul %4, %5, %cst {dimension_numbers = #tpu.dot_dimension_numbers<[1], [0], [0], [1], [0, 0, 1, 1], [], []>} : vector<256x3xbf16>, vector<3x64xbf16>, vector<256x64xf32> -> vector<256x64xf32>
    %c0_5 = arith.constant 0 : index
    %c0_6 = arith.constant 0 : index
    %7 = vector.load %arg4[%c0_5, %c0_6] : memref<1x64xf32, #tpu.memory_space<vmem>>, vector<1x64xf32>
    %8 = vector.broadcast %7 : vector<1x64xf32> to vector<256x64xf32>
    %9 = arith.mulf %6, %8 : vector<256x64xf32>
    %c0_7 = arith.constant 0 : index
    %c0_8 = arith.constant 0 : index
    %10 = vector.load %arg5[%c0_7, %c0_8] : memref<1x64xf32, #tpu.memory_space<vmem>>, vector<1x64xf32>
    %11 = vector.broadcast %10 : vector<1x64xf32> to vector<256x64xf32>
    %12 = arith.addf %9, %11 : vector<256x64xf32>
    %cst_9 = arith.constant 0.000000e+00 : f32
    %13 = vector.broadcast %cst_9 : f32 to vector<256x64xf32>
    %14 = arith.maximumf %12, %13 : vector<256x64xf32>
    %15 = arith.truncf %14 : vector<256x64xf32> to vector<256x64xbf16>
    %c0_10 = arith.constant 0 : index
    %c0_11 = arith.constant 0 : index
    %16 = vector.load %arg6[%c0_10, %c0_11] : memref<64x128xbf16, #tpu.memory_space<vmem>>, vector<64x128xbf16>
    %cst_12 = arith.constant dense<0.000000e+00> : vector<256x128xf32>
    %17 = tpu.matmul %15, %16, %cst_12 {dimension_numbers = #tpu.dot_dimension_numbers<[1], [0], [0], [1], [0, 0, 1, 1], [], []>} : vector<256x64xbf16>, vector<64x128xbf16>, vector<256x128xf32> -> vector<256x128xf32>
    %c0_13 = arith.constant 0 : index
    %c0_14 = arith.constant 0 : index
    %18 = vector.load %arg7[%c0_13, %c0_14] : memref<1x128xf32, #tpu.memory_space<vmem>>, vector<1x128xf32>
    %19 = vector.broadcast %18 : vector<1x128xf32> to vector<256x128xf32>
    %20 = arith.mulf %17, %19 : vector<256x128xf32>
    %c0_15 = arith.constant 0 : index
    %c0_16 = arith.constant 0 : index
    %21 = vector.load %arg8[%c0_15, %c0_16] : memref<1x128xf32, #tpu.memory_space<vmem>>, vector<1x128xf32>
    %22 = vector.broadcast %21 : vector<1x128xf32> to vector<256x128xf32>
    %23 = arith.addf %20, %22 : vector<256x128xf32>
    %cst_17 = arith.constant 0.000000e+00 : f32
    %24 = vector.broadcast %cst_17 : f32 to vector<256x128xf32>
    %25 = arith.maximumf %23, %24 : vector<256x128xf32>
    %26 = arith.truncf %25 : vector<256x128xf32> to vector<256x128xbf16>
    %c0_18 = arith.constant 0 : index
    %c0_19 = arith.constant 0 : index
    %27 = vector.load %arg9[%c0_18, %c0_19] : memref<128x1024xbf16, #tpu.memory_space<vmem>>, vector<128x1024xbf16>
    %cst_20 = arith.constant dense<0.000000e+00> : vector<256x1024xf32>
    %28 = tpu.matmul %26, %27, %cst_20 {dimension_numbers = #tpu.dot_dimension_numbers<[1], [0], [0], [1], [0, 0, 1, 1], [], []>} : vector<256x128xbf16>, vector<128x1024xbf16>, vector<256x1024xf32> -> vector<256x1024xf32>
    %c0_21 = arith.constant 0 : index
    %c0_22 = arith.constant 0 : index
    %29 = vector.load %arg10[%c0_21, %c0_22] : memref<1x1024xf32, #tpu.memory_space<vmem>>, vector<1x1024xf32>
    %30 = vector.broadcast %29 : vector<1x1024xf32> to vector<256x1024xf32>
    %31 = arith.mulf %28, %30 : vector<256x1024xf32>
    %c0_23 = arith.constant 0 : index
    %c0_24 = arith.constant 0 : index
    %32 = vector.load %arg11[%c0_23, %c0_24] : memref<1x1024xf32, #tpu.memory_space<vmem>>, vector<1x1024xf32>
    %33 = vector.broadcast %32 : vector<1x1024xf32> to vector<256x1024xf32>
    %34 = arith.addf %31, %33 : vector<256x1024xf32>
    %cst_25 = arith.constant 0.000000e+00 : f32
    %35 = vector.broadcast %cst_25 : f32 to vector<256x1024xf32>
    %36 = arith.maximumf %34, %35 : vector<256x1024xf32>
    %37 = vector.shape_cast %36 : vector<256x1024xf32> to vector<8x32x1024xf32>
    %38 = tpu.iota {dimensions = array<i32: 1>} : vector<1x32x1xi32>
    %c32_i32 = arith.constant 32 : i32
    %39 = arith.muli %arg1, %c32_i32 : i32
    %40 = vector.broadcast %39 : i32 to vector<1x32x1xi32>
    %41 = arith.addi %38, %40 : vector<1x32x1xi32>
    %c32_i32_26 = arith.constant 32 : i32
    %42 = vector.broadcast %c32_i32_26 : i32 to vector<1x32x1xi32>
    %43 = arith.cmpi slt, %41, %42 : vector<1x32x1xi32>
    %cst_27 = arith.constant 0xFF800000 : f32
    %44 = vector.shape_cast %43 : vector<1x32x1xi1> to vector<1x32x1xi1>
    %45 = vector.broadcast %44 : vector<1x32x1xi1> to vector<8x32x1024xi1>
    %46 = vector.broadcast %cst_27 : f32 to vector<8x32x1024xf32>
    %47 = arith.select %45, %37, %46 : vector<8x32x1024xi1>, vector<8x32x1024xf32>
    %c0_28 = arith.constant 0 : index
    %c0_29 = arith.constant 0 : index
    %48 = vector.load %arg22[%c0_28, %c0_29] : memref<8x1024xf32, #tpu.memory_space<vmem>>, vector<8x1024xf32>
    %cst_30 = arith.constant dense<0xFF800000> : vector<8x1024xf32>
    %49 = vector.multi_reduction <maximumf>, %47, %cst_30 [1] : vector<8x32x1024xf32> to vector<8x1024xf32>
    %50 = arith.maximumf %48, %49 : vector<8x1024xf32>
    %c0_31 = arith.constant 0 : index
    %c0_32 = arith.constant 0 : index
    %51 = vector.load %arg22[%c0_31, %c0_32] : memref<8x1024xf32, #tpu.memory_space<vmem>>, vector<8x1024xf32>
    tpu.vector_store %arg22[%c0_31, %c0_32], %50 {strides = array<i32>} : memref<8x1024xf32, #tpu.memory_space<vmem>>, vector<8x1024xf32>,
    %c0_i32_33 = arith.constant 0 : i32
    %52 = arith.cmpi eq, %arg1, %c0_i32_33 : i32
    %53 = arith.extui %52 : i1 to i32
    %c0_i32_34 = arith.constant 0 : i32
    %54 = arith.cmpi ne, %53, %c0_i32_34 : i32
    scf.if %54 {
      %c0_35 = arith.constant 0 : index
      %c0_36 = arith.constant 0 : index
      %55 = vector.load %arg22[%c0_35, %c0_36] : memref<8x1024xf32, #tpu.memory_space<vmem>>, vector<8x1024xf32>
      %56 = arith.truncf %55 : vector<8x1024xf32> to vector<8x1024xbf16>
      %c0_37 = arith.constant 0 : index
      %c0_38 = arith.constant 0 : index
      %57 = vector.load %arg12[%c0_37, %c0_38] : memref<1024x512xbf16, #tpu.memory_space<vmem>>, vector<1024x512xbf16>
      %cst_39 = arith.constant dense<0.000000e+00> : vector<8x512xf32>
      %58 = tpu.matmul %56, %57, %cst_39 {dimension_numbers = #tpu.dot_dimension_numbers<[1], [0], [0], [1], [0, 0, 1, 1], [], []>} : vector<8x1024xbf16>, vector<1024x512xbf16>, vector<8x512xf32> -> vector<8x512xf32>
      %c0_40 = arith.constant 0 : index
      %c0_41 = arith.constant 0 : index
      %59 = vector.load %arg13[%c0_40, %c0_41] : memref<1x512xf32, #tpu.memory_space<vmem>>, vector<1x512xf32>
      %60 = vector.broadcast %59 : vector<1x512xf32> to vector<8x512xf32>
      %61 = arith.mulf %58, %60 : vector<8x512xf32>
      %c0_42 = arith.constant 0 : index
      %c0_43 = arith.constant 0 : index
      %62 = vector.load %arg14[%c0_42, %c0_43] : memref<1x512xf32, #tpu.memory_space<vmem>>, vector<1x512xf32>
      %63 = vector.broadcast %62 : vector<1x512xf32> to vector<8x512xf32>
      %64 = arith.addf %61, %63 : vector<8x512xf32>
      %cst_44 = arith.constant 0.000000e+00 : f32
      %65 = vector.broadcast %cst_44 : f32 to vector<8x512xf32>
      %66 = arith.maximumf %64, %65 : vector<8x512xf32>
      %67 = arith.truncf %66 : vector<8x512xf32> to vector<8x512xbf16>
      %c0_45 = arith.constant 0 : index
      %c0_46 = arith.constant 0 : index
      %68 = vector.load %arg15[%c0_45, %c0_46] : memref<512x256xbf16, #tpu.memory_space<vmem>>, vector<512x256xbf16>
      %cst_47 = arith.constant dense<0.000000e+00> : vector<8x256xf32>
      %69 = tpu.matmul %67, %68, %cst_47 {dimension_numbers = #tpu.dot_dimension_numbers<[1], [0], [0], [1], [0, 0, 1, 1], [], []>} : vector<8x512xbf16>, vector<512x256xbf16>, vector<8x256xf32> -> vector<8x256xf32>
      %c0_48 = arith.constant 0 : index
      %c0_49 = arith.constant 0 : index
      %70 = vector.load %arg16[%c0_48, %c0_49] : memref<1x256xf32, #tpu.memory_space<vmem>>, vector<1x256xf32>
      %71 = vector.broadcast %70 : vector<1x256xf32> to vector<8x256xf32>
      %72 = arith.mulf %69, %71 : vector<8x256xf32>
      %c0_50 = arith.constant 0 : index
      %c0_51 = arith.constant 0 : index
      %73 = vector.load %arg17[%c0_50, %c0_51] : memref<1x256xf32, #tpu.memory_space<vmem>>, vector<1x256xf32>
      %74 = vector.broadcast %73 : vector<1x256xf32> to vector<8x256xf32>
      %75 = arith.addf %72, %74 : vector<8x256xf32>
      %cst_52 = arith.constant 0.000000e+00 : f32
      %76 = vector.broadcast %cst_52 : f32 to vector<8x256xf32>
      %77 = arith.maximumf %75, %76 : vector<8x256xf32>
      %78 = arith.truncf %77 : vector<8x256xf32> to vector<8x256xbf16>
      %c0_53 = arith.constant 0 : index
      %c0_54 = arith.constant 0 : index
      %79 = vector.load %arg18[%c0_53, %c0_54] : memref<256x9xbf16, #tpu.memory_space<vmem>>, vector<256x9xbf16>
      %cst_55 = arith.constant dense<0.000000e+00> : vector<8x9xf32>
      %80 = tpu.matmul %78, %79, %cst_55 {dimension_numbers = #tpu.dot_dimension_numbers<[1], [0], [0], [1], [0, 0, 1, 1], [], []>} : vector<8x256xbf16>, vector<256x9xbf16>, vector<8x9xf32> -> vector<8x9xf32>
      %c0_56 = arith.constant 0 : index
      %c0_57 = arith.constant 0 : index
      %81 = vector.load %arg19[%c0_56, %c0_57] : memref<1x9xf32, #tpu.memory_space<vmem>>, vector<1x9xf32>
      %82 = vector.broadcast %81 : vector<1x9xf32> to vector<8x9xf32>
      %83 = arith.addf %80, %82 : vector<8x9xf32>
      %c0_58 = arith.constant 0 : index
      %c0_59 = arith.constant 0 : index
      %84 = vector.load %arg20[%c0_58, %c0_59] : memref<1x9xf32, #tpu.memory_space<vmem>>, vector<1x9xf32>
      %85 = vector.broadcast %84 : vector<1x9xf32> to vector<8x9xf32>
      %86 = arith.addf %83, %85 : vector<8x9xf32>
      %c0_60 = arith.constant 0 : index
      %c0_61 = arith.constant 0 : index
      %87 = vector.load %arg21[%c0_60, %c0_61] : memref<8x9xf32, #tpu.memory_space<vmem>>, vector<8x9xf32>
      tpu.vector_store %arg21[%c0_60, %c0_61], %86 {strides = array<i32>} : memref<8x9xf32, #tpu.memory_space<vmem>>, vector<8x9xf32>,
    } else {
    }
    return
  }
  func.func @transform_0(%arg0: i32, %arg1: i32) -> (i32, i32, i32) {
    %c0_i32 = arith.constant 0 : i32
    %c0_i32_0 = arith.constant 0 : i32
    return %arg0, %arg1, %c0_i32 : i32, i32, i32
  }
  func.func @transform_1(%arg0: i32, %arg1: i32) -> (i32, i32) {
    %c0_i32 = arith.constant 0 : i32
    %c0_i32_0 = arith.constant 0 : i32
    %c0_i32_1 = arith.constant 0 : i32
    return %c0_i32, %c0_i32_0 : i32, i32
  }
  func.func @transform_2(%arg0: i32, %arg1: i32) -> (i32, i32) {
    %c0_i32 = arith.constant 0 : i32
    %c0_i32_0 = arith.constant 0 : i32
    %c0_i32_1 = arith.constant 0 : i32
    return %c0_i32, %c0_i32_0 : i32, i32
  }
  func.func @transform_3(%arg0: i32, %arg1: i32) -> (i32, i32) {
    %c0_i32 = arith.constant 0 : i32
    %c0_i32_0 = arith.constant 0 : i32
    %c0_i32_1 = arith.constant 0 : i32
    return %c0_i32, %c0_i32_0 : i32, i32
  }
  func.func @transform_4(%arg0: i32, %arg1: i32) -> (i32, i32) {
    %c0_i32 = arith.constant 0 : i32
    %c0_i32_0 = arith.constant 0 : i32
    %c0_i32_1 = arith.constant 0 : i32
    return %c0_i32, %c0_i32_0 : i32, i32
  }
  func.func @transform_5(%arg0: i32, %arg1: i32) -> (i32, i32) {
    %c0_i32 = arith.constant 0 : i32
    %c0_i32_0 = arith.constant 0 : i32
    %c0_i32_1 = arith.constant 0 : i32
    return %c0_i32, %c0_i32_0 : i32, i32
  }
  func.func @transform_6(%arg0: i32, %arg1: i32) -> (i32, i32) {
    %c0_i32 = arith.constant 0 : i32
    %c0_i32_0 = arith.constant 0 : i32
    %c0_i32_1 = arith.constant 0 : i32
    return %c0_i32, %c0_i32_0 : i32, i32
  }
  func.func @transform_7(%arg0: i32, %arg1: i32) -> (i32, i32) {
    %c0_i32 = arith.constant 0 : i32
    %c0_i32_0 = arith.constant 0 : i32
    %c0_i32_1 = arith.constant 0 : i32
    return %c0_i32, %c0_i32_0 : i32, i32
  }
  func.func @transform_8(%arg0: i32, %arg1: i32) -> (i32, i32) {
    %c0_i32 = arith.constant 0 : i32
    %c0_i32_0 = arith.constant 0 : i32
    %c0_i32_1 = arith.constant 0 : i32
    return %c0_i32, %c0_i32_0 : i32, i32
  }
  func.func @transform_9(%arg0: i32, %arg1: i32) -> (i32, i32) {
    %c0_i32 = arith.constant 0 : i32
    %c0_i32_0 = arith.constant 0 : i32
    %c0_i32_1 = arith.constant 0 : i32
    return %c0_i32, %c0_i32_0 : i32, i32
  }
  func.func @transform_10(%arg0: i32, %arg1: i32) -> (i32, i32) {
    %c0_i32 = arith.constant 0 : i32
    %c0_i32_0 = arith.constant 0 : i32
    %c0_i32_1 = arith.constant 0 : i32
    return %c0_i32, %c0_i32_0 : i32, i32
  }
  func.func @transform_11(%arg0: i32, %arg1: i32) -> (i32, i32) {
    %c0_i32 = arith.constant 0 : i32
    %c0_i32_0 = arith.constant 0 : i32
    %c0_i32_1 = arith.constant 0 : i32
    return %c0_i32, %c0_i32_0 : i32, i32
  }
  func.func @transform_12(%arg0: i32, %arg1: i32) -> (i32, i32) {
    %c0_i32 = arith.constant 0 : i32
    %c0_i32_0 = arith.constant 0 : i32
    %c0_i32_1 = arith.constant 0 : i32
    return %c0_i32, %c0_i32_0 : i32, i32
  }
  func.func @transform_13(%arg0: i32, %arg1: i32) -> (i32, i32) {
    %c0_i32 = arith.constant 0 : i32
    %c0_i32_0 = arith.constant 0 : i32
    %c0_i32_1 = arith.constant 0 : i32
    return %c0_i32, %c0_i32_0 : i32, i32
  }
  func.func @transform_14(%arg0: i32, %arg1: i32) -> (i32, i32) {
    %c0_i32 = arith.constant 0 : i32
    %c0_i32_0 = arith.constant 0 : i32
    %c0_i32_1 = arith.constant 0 : i32
    return %c0_i32, %c0_i32_0 : i32, i32
  }
  func.func @transform_15(%arg0: i32, %arg1: i32) -> (i32, i32) {
    %c0_i32 = arith.constant 0 : i32
    %c0_i32_0 = arith.constant 0 : i32
    %c0_i32_1 = arith.constant 0 : i32
    return %c0_i32, %c0_i32_0 : i32, i32
  }
  func.func @transform_16(%arg0: i32, %arg1: i32) -> (i32, i32) {
    %c0_i32 = arith.constant 0 : i32
    %c0_i32_0 = arith.constant 0 : i32
    %c0_i32_1 = arith.constant 0 : i32
    return %c0_i32, %c0_i32_0 : i32, i32
  }
  func.func @transform_17(%arg0: i32, %arg1: i32) -> (i32, i32) {
    %c0_i32 = arith.constant 0 : i32
    %c0_i32_0 = arith.constant 0 : i32
    %c0_i32_1 = arith.constant 0 : i32
    return %c0_i32, %c0_i32_0 : i32, i32
  }
  func.func @transform_18(%arg0: i32, %arg1: i32) -> (i32, i32) {
    %c0_i32 = arith.constant 0 : i32
    %c0_i32_0 = arith.constant 0 : i32
    %c0_i32_1 = arith.constant 0 : i32
    return %c0_i32, %c0_i32_0 : i32, i32
  }
  func.func @transform_19(%arg0: i32, %arg1: i32) -> (i32, i32) {
    %c0_i32 = arith.constant 0 : i32
    %c0_i32_0 = arith.constant 0 : i32
    return %arg0, %c0_i32 : i32, i32
  }
}

</mosaic_0001>

<llo_original>
// kernel: tnetkd_forward.1
$region0: #{tnetkd_forward.1}
  #allocation0 [shape = 'u32[]', space=smem, size = 0x4, offset = 0x4, fixed_abs, tag = 'smem constant byte address 0x4 - core index']
  #allocation1 [shape = 'u32[144,128]{1,0:T(1,128)}', space=vmem, size = 0x12000, scoped, tag = 'internal scratch']
  #allocation2 [shape = 'f32[8,1024]{1,0:T(8,128)}', space=vmem, size = 0x8000, scoped, tag = 'scratch operand']
  %s0 = inlined_call_operand.vmem [shape: bf16[8,32,3], index: 0, kind: input, shape index: {}]
  %s1 = inlined_call_operand.vmem [shape: bf16[3,64], index: 1, kind: input, shape index: {}]
  %s2 = inlined_call_operand.vmem [shape: f32[1,64], index: 2, kind: input, shape index: {}]
  %s3 = inlined_call_operand.vmem [shape: f32[1,64], index: 3, kind: input, shape index: {}]
  %s4 = inlined_call_operand.vmem [shape: bf16[64,128], index: 4, kind: input, shape index: {}]
  %s5 = inlined_call_operand.vmem [shape: f32[1,128], index: 5, kind: input, shape index: {}]
  %s6 = inlined_call_operand.vmem [shape: f32[1,128], index: 6, kind: input, shape index: {}]
  %s7 = inlined_call_operand.vmem [shape: bf16[128,1024], index: 7, kind: input, shape index: {}]
  %s8 = inlined_call_operand.vmem [shape: f32[1,1024], index: 8, kind: input, shape index: {}]
  %s9 = inlined_call_operand.vmem [shape: f32[1,1024], index: 9, kind: input, shape index: {}]
  %s10 = inlined_call_operand.vmem [shape: bf16[1024,512], index: 10, kind: input, shape index: {}]
  %s11 = inlined_call_operand.vmem [shape: f32[1,512], index: 11, kind: input, shape index: {}]
  %s12 = inlined_call_operand.vmem [shape: f32[1,512], index: 12, kind: input, shape index: {}]
  %s13 = inlined_call_operand.vmem [shape: bf16[512,256], index: 13, kind: input, shape index: {}]
  %s14 = inlined_call_operand.vmem [shape: f32[1,256], index: 14, kind: input, shape index: {}]
  %s15 = inlined_call_operand.vmem [shape: f32[1,256], index: 15, kind: input, shape index: {}]
  %s16 = inlined_call_operand.vmem [shape: bf16[256,9], index: 16, kind: input, shape index: {}]
  %s17 = inlined_call_operand.vmem [shape: f32[1,9], index: 17, kind: input, shape index: {}]
  %s18 = inlined_call_operand.vmem [shape: f32[1,9], index: 18, kind: input, shape index: {}]
  %s19 = inlined_call_operand.vmem [shape: f32[8,9], index: 19, kind: output, shape index: {}]
  %s20 = sld [smem:[#allocation0]]
  $region94: #{tnetkd_forward.1} parent=0
    _
  %s22 = ssub.s32 1, %s20
  %s23 = scalar_select 0, %s22, %s20
  // Predicated region
  $region2: #{tnetkd_forward.1} parent=0 // pred_check
    _
  $region3: #{tnetkd_forward.1} parent=0 // pred_check_branch
    %25 = sbr.rel (0) target = $region5
  $region4: #{tnetkd_forward.1} parent=0 // pred_region
    _
  $region5: #{tnetkd_forward.1} parent=0 // pred_fallthru
    _
  // Predicated region
  $region6: #{tnetkd_forward.1} parent=0 // pred_check
    _
  $region7: #{tnetkd_forward.1} parent=0 // pred_check_branch
    %27 = sbr.rel (0) target = $region9
  $region8: #{tnetkd_forward.1} parent=0 // pred_region
    _
  $region9: #{tnetkd_forward.1} parent=0 // pred_fallthru
    _
  // Predicated region
  $region10: #{tnetkd_forward.1} parent=0 // pred_check
    _
  $region11: #{tnetkd_forward.1} parent=0 // pred_check_branch
    %29 = sbr.rel (0) target = $region13
  $region12: #{tnetkd_forward.1} parent=0 // pred_region
    _
  $region13: #{tnetkd_forward.1} parent=0 // pred_fallthru
    _
  // Predicated region
  $region14: #{tnetkd_forward.1} parent=0 // pred_check
    _
  $region15: #{tnetkd_forward.1} parent=0 // pred_check_branch
    %31 = sbr.rel (0) target = $region17
  $region16: #{tnetkd_forward.1} parent=0 // pred_region
    _
  $region17: #{tnetkd_forward.1} parent=0 // pred_fallthru
    _
  // Predicated region
  $region18: #{tnetkd_forward.1} parent=0 // pred_check
    _
  $region19: #{tnetkd_forward.1} parent=0 // pred_check_branch
    %33 = sbr.rel (0) target = $region21
  $region20: #{tnetkd_forward.1} parent=0 // pred_region
    _
  $region21: #{tnetkd_forward.1} parent=0 // pred_fallthru
    _
  // Predicated region
  $region22: #{tnetkd_forward.1} parent=0 // pred_check
    _
  $region23: #{tnetkd_forward.1} parent=0 // pred_check_branch
    %35 = sbr.rel (0) target = $region25
  $region24: #{tnetkd_forward.1} parent=0 // pred_region
    _
  $region25: #{tnetkd_forward.1} parent=0 // pred_fallthru
    _
  // Predicated region
  $region26: #{tnetkd_forward.1} parent=0 // pred_check
    _
  $region27: #{tnetkd_forward.1} parent=0 // pred_check_branch
    %37 = sbr.rel (0) target = $region29
  $region28: #{tnetkd_forward.1} parent=0 // pred_region
    _
  $region29: #{tnetkd_forward.1} parent=0 // pred_fallthru
    _
  // Predicated region
  $region30: #{tnetkd_forward.1} parent=0 // pred_check
    _
  $region31: #{tnetkd_forward.1} parent=0 // pred_check_branch
    %39 = sbr.rel (0) target = $region33
  $region32: #{tnetkd_forward.1} parent=0 // pred_region
    _
  $region33: #{tnetkd_forward.1} parent=0 // pred_fallthru
    _
  // Predicated region
  $region34: #{tnetkd_forward.1} parent=0 // pred_check
    _
  $region35: #{tnetkd_forward.1} parent=0 // pred_check_branch
    %41 = sbr.rel (0) target = $region37
  $region36: #{tnetkd_forward.1} parent=0 // pred_region
    _
  $region37: #{tnetkd_forward.1} parent=0 // pred_fallthru
    _
  // Predicated region
  $region38: #{tnetkd_forward.1} parent=0 // pred_check
    _
  $region39: #{tnetkd_forward.1} parent=0 // pred_check_branch
    %43 = sbr.rel (0) target = $region41
  $region40: #{tnetkd_forward.1} parent=0 // pred_region
    _
  $region41: #{tnetkd_forward.1} parent=0 // pred_fallthru
    _
  // Predicated region
  $region42: #{tnetkd_forward.1} parent=0 // pred_check
    _
  $region43: #{tnetkd_forward.1} parent=0 // pred_check_branch
    %45 = sbr.rel (0) target = $region45
  $region44: #{tnetkd_forward.1} parent=0 // pred_region
    _
  $region45: #{tnetkd_forward.1} parent=0 // pred_fallthru
    _
  // Predicated region
  $region46: #{tnetkd_forward.1} parent=0 // pred_check
    _
  $region47: #{tnetkd_forward.1} parent=0 // pred_check_branch
    %47 = sbr.rel (0) target = $region49
  $region48: #{tnetkd_forward.1} parent=0 // pred_region
    _
  $region49: #{tnetkd_forward.1} parent=0 // pred_fallthru
    _
  // Predicated region
  $region50: #{tnetkd_forward.1} parent=0 // pred_check
    _
  $region51: #{tnetkd_forward.1} parent=0 // pred_check_branch
    %49 = sbr.rel (0) target = $region53
  $region52: #{tnetkd_forward.1} parent=0 // pred_region
    _
  $region53: #{tnetkd_forward.1} parent=0 // pred_fallthru
    _
  // Predicated region
  $region54: #{tnetkd_forward.1} parent=0 // pred_check
    _
  $region55: #{tnetkd_forward.1} parent=0 // pred_check_branch
    %51 = sbr.rel (0) target = $region57
  $region56: #{tnetkd_forward.1} parent=0 // pred_region
    _
  $region57: #{tnetkd_forward.1} parent=0 // pred_fallthru
    _
  // Predicated region
  $region58: #{tnetkd_forward.1} parent=0 // pred_check
    _
  $region59: #{tnetkd_forward.1} parent=0 // pred_check_branch
    %53 = sbr.rel (0) target = $region61
  $region60: #{tnetkd_forward.1} parent=0 // pred_region
    _
  $region61: #{tnetkd_forward.1} parent=0 // pred_fallthru
    _
  // Predicated region
  $region62: #{tnetkd_forward.1} parent=0 // pred_check
    _
  $region63: #{tnetkd_forward.1} parent=0 // pred_check_branch
    %55 = sbr.rel (0) target = $region65
  $region64: #{tnetkd_forward.1} parent=0 // pred_region
    _
  $region65: #{tnetkd_forward.1} parent=0 // pred_fallthru
    _
  // Predicated region
  $region66: #{tnetkd_forward.1} parent=0 // pred_check
    _
  $region67: #{tnetkd_forward.1} parent=0 // pred_check_branch
    %57 = sbr.rel (0) target = $region69
  $region68: #{tnetkd_forward.1} parent=0 // pred_region
    _
  $region69: #{tnetkd_forward.1} parent=0 // pred_fallthru
    _
  // Predicated region
  $region70: #{tnetkd_forward.1} parent=0 // pred_check
    _
  $region71: #{tnetkd_forward.1} parent=0 // pred_check_branch
    %59 = sbr.rel (0) target = $region73
  $region72: #{tnetkd_forward.1} parent=0 // pred_region
    _
  $region73: #{tnetkd_forward.1} parent=0 // pred_fallthru
    _
  // Predicated region
  $region74: #{tnetkd_forward.1} parent=0 // pred_check
    _
  $region75: #{tnetkd_forward.1} parent=0 // pred_check_branch
    %61 = sbr.rel (0) target = $region77
  $region76: #{tnetkd_forward.1} parent=0 // pred_region
    _
  $region77: #{tnetkd_forward.1} parent=0 // pred_fallthru
    _
  %p63 = scmp.eq.s32.totalorder 0, 0
  // Predicated region
  $region78: #{tnetkd_forward.1} parent=0 // pred_check
    %p64 = pneg %p63
  $region79: #{tnetkd_forward.1} parent=0 // pred_check_branch
    %66 = sbr.rel (%p64) target = $region81
  $region80: #{tnetkd_forward.1} parent=0 // pred_region
    %67 = vst [vmem:[#allocation2] sm:$0xff] -inf
    %68 = vst [vmem:[#allocation2 + $0x8] sm:$0xff] -inf
    %69 = vst [vmem:[#allocation2 + $0x10] sm:$0xff] -inf
    %70 = vst [vmem:[#allocation2 + $0x18] sm:$0xff] -inf
    %71 = vst [vmem:[#allocation2 + $0x20] sm:$0xff] -inf
    %72 = vst [vmem:[#allocation2 + $0x28] sm:$0xff] -inf
    %73 = vst [vmem:[#allocation2 + $0x30] sm:$0xff] -inf
    %74 = vst [vmem:[#allocation2 + $0x38] sm:$0xff] -inf
  $region81: #{tnetkd_forward.1} parent=0 // pred_fallthru
    _
  %v75 = vld [vmem:[%s0] sm:$0xf]
  %v76 = vld [vmem:[%s0 + $0x4] sm:$0xf]
  %v77 = vld [vmem:[%s0 + $0x8] sm:$0xf]
  %v78 = vld [vmem:[%s0 + $0xc] sm:$0xf]
  %v79 = vld [vmem:[%s0 + $0x10] sm:$0xf]
  %v80 = vld [vmem:[%s0 + $0x14] sm:$0xf]
  %v81 = vld [vmem:[%s0 + $0x18] sm:$0xf]
  %v82 = vld [vmem:[%s0 + $0x1c] sm:$0xf]
  %v83 = vld [vmem:[%s0 + $0x20] sm:$0xf]
  %v84 = vld [vmem:[%s0 + $0x24] sm:$0xf]
  %v85 = vld [vmem:[%s0 + $0x28] sm:$0xf]
  %v86 = vld [vmem:[%s0 + $0x2c] sm:$0xf]
  %v87 = vld [vmem:[%s0 + $0x30] sm:$0xf]
  %v88 = vld [vmem:[%s0 + $0x34] sm:$0xf]
  %v89 = vld [vmem:[%s0 + $0x38] sm:$0xf]
  %v90 = vld [vmem:[%s0 + $0x3c] sm:$0xf]
  %v91 = vld [vmem:[%s0 + $0x40] sm:$0xf]
  %v92 = vld [vmem:[%s0 + $0x44] sm:$0xf]
  %v93 = vld [vmem:[%s0 + $0x48] sm:$0xf]
  %v94 = vld [vmem:[%s0 + $0x4c] sm:$0xf]
  %v95 = vld [vmem:[%s0 + $0x50] sm:$0xf]
  %v96 = vld [vmem:[%s0 + $0x54] sm:$0xf]
  %v97 = vld [vmem:[%s0 + $0x58] sm:$0xf]
  %v98 = vld [vmem:[%s0 + $0x5c] sm:$0xf]
  %v99 = vld [vmem:[%s0 + $0x60] sm:$0xf]
  %v100 = vld [vmem:[%s0 + $0x64] sm:$0xf]
  %v101 = vld [vmem:[%s0 + $0x68] sm:$0xf]
  %v102 = vld [vmem:[%s0 + $0x6c] sm:$0xf]
  %v103 = vld [vmem:[%s0 + $0x70] sm:$0xf]
  %v104 = vld [vmem:[%s0 + $0x74] sm:$0xf]
  %v105 = vld [vmem:[%s0 + $0x78] sm:$0xf]
  %v106 = vld [vmem:[%s0 + $0x7c] sm:$0xf]
  %v107 = vld [vmem:[%s1] sm:$0x3]
  %v140 = vunpack.c.l.b16 %v75
  %v141 = vunpack.c.l.b16 %v76
  %v142 = vunpack.c.l.b16 %v77
  %v143 = vunpack.c.l.b16 %v78
  %v144 = vunpack.c.l.b16 %v79
  %v145 = vunpack.c.l.b16 %v80
  %v146 = vunpack.c.l.b16 %v81
  %v147 = vunpack.c.l.b16 %v82
  %v148 = vunpack.c.l.b16 %v83
  %v149 = vunpack.c.l.b16 %v84
  %v150 = vunpack.c.l.b16 %v85
  %v151 = vunpack.c.l.b16 %v86
  %v152 = vunpack.c.l.b16 %v87
  %v153 = vunpack.c.l.b16 %v88
  %v154 = vunpack.c.l.b16 %v89
  %v155 = vunpack.c.l.b16 %v90
  %v156 = vunpack.c.l.b16 %v91
  %v157 = vunpack.c.l.b16 %v92
  %v158 = vunpack.c.l.b16 %v93
  %v159 = vunpack.c.l.b16 %v94
  %v160 = vunpack.c.l.b16 %v95
  %v161 = vunpack.c.l.b16 %v96
  %v162 = vunpack.c.l.b16 %v97
  %v163 = vunpack.c.l.b16 %v98
  %v164 = vunpack.c.l.b16 %v99
  %v165 = vunpack.c.l.b16 %v100
  %v166 = vunpack.c.l.b16 %v101
  %v167 = vunpack.c.l.b16 %v102
  %v168 = vunpack.c.l.b16 %v103
  %v169 = vunpack.c.l.b16 %v104
  %v170 = vunpack.c.l.b16 %v105
  %v171 = vunpack.c.l.b16 %v106
  %v172 = vpack.c.b16 %v141, %v140
  %v173 = vpack.c.b16 %v143, %v142
  %v174 = vpack.c.b16 %v145, %v144
  %v175 = vpack.c.b16 %v147, %v146
  %v176 = vpack.c.b16 %v149, %v148
  %v177 = vpack.c.b16 %v151, %v150
  %v178 = vpack.c.b16 %v153, %v152
  %v179 = vpack.c.b16 %v155, %v154
  %v180 = vpack.c.b16 %v157, %v156
  %v181 = vpack.c.b16 %v159, %v158
  %v182 = vpack.c.b16 %v161, %v160
  %v183 = vpack.c.b16 %v163, %v162
  %v184 = vpack.c.b16 %v165, %v164
  %v185 = vpack.c.b16 %v167, %v166
  %v186 = vpack.c.b16 %v169, %v168
  %v187 = vpack.c.b16 %v171, %v170
  %vm188 = vcmask 23552
  %v190 = vsel %vm188, %v172, 0
  %v193 = vsel %vm188, %v173, 0
  %v196 = vsel %vm188, %v174, 0
  %v199 = vsel %vm188, %v175, 0
  %v202 = vsel %vm188, %v176, 0
  %v205 = vsel %vm188, %v177, 0
  %v208 = vsel %vm188, %v178, 0
  %v211 = vsel %vm188, %v179, 0
  %v214 = vsel %vm188, %v180, 0
  %v217 = vsel %vm188, %v181, 0
  %v220 = vsel %vm188, %v182, 0
  %v223 = vsel %vm188, %v183, 0
  %v226 = vsel %vm188, %v184, 0
  %v229 = vsel %vm188, %v185, 0
  %v232 = vsel %vm188, %v186, 0
  %v235 = vsel %vm188, %v187, 0
  %vm237 = vcmask 1040384
  %vm238 = vcmask 1041408
  %v239 = vsel %vm237, 4294967295, 65535
  %v240 = vsel %vm238, %v239, 0
  %v242 = vand.u32 %v107, %v240
  %244 = vmatprep.subr.bf16.mxu0 0
  %245 = vmatpush1.bf16.msra.mxu0 0
  %246 = vmatprep.subr.bf16.mxu0 0
  %247 = vmatpush1.bf16.msra.mxu0 0
  %248 = vmatprep.subr.bf16.mxu0 0
  %249 = vmatpush1.bf16.msra.mxu0 0
  %250 = vmatprep.subr.bf16.mxu0 0
  %251 = vmatpush1.bf16.msra.mxu0 0
  %252 = vmatprep.subr.bf16.mxu0 0
  %253 = vmatpush1.bf16.msra.mxu0 0
  %254 = vmatprep.subr.bf16.mxu0 0
  %255 = vmatpush1.bf16.msra.mxu0 0
  %256 = vmatprep.subr.bf16.mxu0 0
  %257 = vmatpush1.bf16.msra.mxu0 0
  %258 = vmatprep.subr.bf16.mxu0 0
  %259 = vmatpush1.bf16.msra.mxu0 %v242
  %260 = vmatprep.subr.bf16.mxu0 0
  %261 = vmatpush2.bf16.msra.mxu0 0
  %262 = vmatprep.subr.bf16.mxu0 0
  %263 = vmatpush2.bf16.msra.mxu0 0
  %264 = vmatprep.subr.bf16.mxu0 0
  %265 = vmatpush2.bf16.msra.mxu0 0
  %266 = vmatprep.subr.bf16.mxu0 0
  %267 = vmatpush2.bf16.msra.mxu0 0
  %268 = vmatprep.subr.bf16.mxu0 0
  %269 = vmatpush2.bf16.msra.mxu0 0
  %270 = vmatprep.subr.bf16.mxu0 0
  %271 = vmatpush2.bf16.msra.mxu0 0
  %272 = vmatprep.subr.bf16.mxu0 0
  %273 = vmatpush2.bf16.msra.mxu0 0
  %274 = vmatprep.subr.bf16.mxu0 0
  %275 = vmatpush2.bf16.msra.mxu0 0
  %276 = vmatprep.mubr.bf16.mxu0 0
  %277 = vmatmul.mubr.bf16.gmra.mxu0 %v190
  %v278 = vpop.f32.mrf.mxu0
  %v279 = vadd.f32 0.0, %v278
  %v280 = vpop.f32.mrf.mxu0
  %v281 = vpop.f32.mrf.mxu0
  %v282 = vadd.f32 0.0, %v281
  %v283 = vpop.f32.mrf.mxu0
  %284 = vmatprep.mubr.bf16.mxu0 0
  %285 = vmatmul.mubr.bf16.gmra.mxu0 %v193
  %v286 = vpop.f32.mrf.mxu0
  %v287 = vadd.f32 0.0, %v286
  %v288 = vpop.f32.mrf.mxu0
  %v289 = vpop.f32.mrf.mxu0
  %v290 = vadd.f32 0.0, %v289
  %v291 = vpop.f32.mrf.mxu0
  %292 = vmatprep.mubr.bf16.mxu0 0
  %293 = vmatmul.mubr.bf16.gmra.mxu0 %v196
  %v294 = vpop.f32.mrf.mxu0
  %v295 = vadd.f32 0.0, %v294
  %v296 = vpop.f32.mrf.mxu0
  %v297 = vpop.f32.mrf.mxu0
  %v298 = vadd.f32 0.0, %v297
  %v299 = vpop.f32.mrf.mxu0
  %300 = vmatprep.mubr.bf16.mxu0 0
  %301 = vmatmul.mubr.bf16.gmra.mxu0 %v199
  %v302 = vpop.f32.mrf.mxu0
  %v303 = vadd.f32 0.0, %v302
  %v304 = vpop.f32.mrf.mxu0
  %v305 = vpop.f32.mrf.mxu0
  %v306 = vadd.f32 0.0, %v305
  %v307 = vpop.f32.mrf.mxu0
  %308 = vmatprep.mubr.bf16.mxu0 0
  %309 = vmatmul.mubr.bf16.gmra.mxu0 %v202
  %v310 = vpop.f32.mrf.mxu0
  %v311 = vadd.f32 0.0, %v310
  %v312 = vpop.f32.mrf.mxu0
  %v313 = vpop.f32.mrf.mxu0
  %v314 = vadd.f32 0.0, %v313
  %v315 = vpop.f32.mrf.mxu0
  %316 = vmatprep.mubr.bf16.mxu0 0
  %317 = vmatmul.mubr.bf16.gmra.mxu0 %v205
  %v318 = vpop.f32.mrf.mxu0
  %v319 = vadd.f32 0.0, %v318
  %v320 = vpop.f32.mrf.mxu0
  %v321 = vpop.f32.mrf.mxu0
  %v322 = vadd.f32 0.0, %v321
  %v323 = vpop.f32.mrf.mxu0
  %324 = vmatprep.mubr.bf16.mxu0 0
  %325 = vmatmul.mubr.bf16.gmra.mxu0 %v208
  %v326 = vpop.f32.mrf.mxu0
  %v327 = vadd.f32 0.0, %v326
  %v328 = vpop.f32.mrf.mxu0
  %v329 = vpop.f32.mrf.mxu0
  %v330 = vadd.f32 0.0, %v329
  %v331 = vpop.f32.mrf.mxu0
  %332 = vmatprep.mubr.bf16.mxu0 0
  %333 = vmatmul.mubr.bf16.gmra.mxu0 %v211
  %v334 = vpop.f32.mrf.mxu0
  %v335 = vadd.f32 0.0, %v334
  %v336 = vpop.f32.mrf.mxu0
  %v337 = vpop.f32.mrf.mxu0
  %v338 = vadd.f32 0.0, %v337
  %v339 = vpop.f32.mrf.mxu0
  %340 = vmatprep.mubr.bf16.mxu0 0
  %341 = vmatmul.mubr.bf16.gmra.mxu0 %v214
  %v342 = vpop.f32.mrf.mxu0
  %v343 = vadd.f32 0.0, %v342
  %v344 = vpop.f32.mrf.mxu0
  %v345 = vpop.f32.mrf.mxu0
  %v346 = vadd.f32 0.0, %v345
  %v347 = vpop.f32.mrf.mxu0
  %348 = vmatprep.mubr.bf16.mxu0 0
  %349 = vmatmul.mubr.bf16.gmra.mxu0 %v217
  %v350 = vpop.f32.mrf.mxu0
  %v351 = vadd.f32 0.0, %v350
  %v352 = vpop.f32.mrf.mxu0
  %v353 = vpop.f32.mrf.mxu0
  %v354 = vadd.f32 0.0, %v353
  %v355 = vpop.f32.mrf.mxu0
  %356 = vmatprep.mubr.bf16.mxu0 0
  %357 = vmatmul.mubr.bf16.gmra.mxu0 %v220
  %v358 = vpop.f32.mrf.mxu0
  %v359 = vadd.f32 0.0, %v358
  %v360 = vpop.f32.mrf.mxu0
  %v361 = vpop.f32.mrf.mxu0
  %v362 = vadd.f32 0.0, %v361
  %v363 = vpop.f32.mrf.mxu0
  %364 = vmatprep.mubr.bf16.mxu0 0
  %365 = vmatmul.mubr.bf16.gmra.mxu0 %v223
  %v366 = vpop.f32.mrf.mxu0
  %v367 = vadd.f32 0.0, %v366
  %v368 = vpop.f32.mrf.mxu0
  %v369 = vpop.f32.mrf.mxu0
  %v370 = vadd.f32 0.0, %v369
  %v371 = vpop.f32.mrf.mxu0
  %372 = vmatprep.mubr.bf16.mxu0 0
  %373 = vmatmul.mubr.bf16.gmra.mxu0 %v226
  %v374 = vpop.f32.mrf.mxu0
  %v375 = vadd.f32 0.0, %v374
  %v376 = vpop.f32.mrf.mxu0
  %v377 = vpop.f32.mrf.mxu0
  %v378 = vadd.f32 0.0, %v377
  %v379 = vpop.f32.mrf.mxu0
  %380 = vmatprep.mubr.bf16.mxu0 0
  %381 = vmatmul.mubr.bf16.gmra.mxu0 %v229
  %v382 = vpop.f32.mrf.mxu0
  %v383 = vadd.f32 0.0, %v382
  %v384 = vpop.f32.mrf.mxu0
  %v385 = vpop.f32.mrf.mxu0
  %v386 = vadd.f32 0.0, %v385
  %v387 = vpop.f32.mrf.mxu0
  %388 = vmatprep.mubr.bf16.mxu0 0
  %389 = vmatmul.mubr.bf16.gmra.mxu0 %v232
  %v390 = vpop.f32.mrf.mxu0
  %v391 = vadd.f32 0.0, %v390
  %v392 = vpop.f32.mrf.mxu0
  %v393 = vpop.f32.mrf.mxu0
  %v394 = vadd.f32 0.0, %v393
  %v395 = vpop.f32.mrf.mxu0
  %396 = vmatprep.mubr.bf16.mxu0 0
  %397 = vmatmul.mubr.bf16.gmra.mxu0 %v235
  %v398 = vpop.f32.mrf.mxu0
  %v399 = vadd.f32 0.0, %v398
  %v400 = vpop.f32.mrf.mxu0
  %v401 = vpop.f32.mrf.mxu0
  %v402 = vadd.f32 0.0, %v401
  %v403 = vpop.f32.mrf.mxu0
  %404 = vdwg.mxu0
  %v405 = vld [vmem:[%s2] sm:$0x1]
  %v407 = vlaneseq
  %v408 = vshrl.u32 %v407, 7
  %v409 = vsub.s32 0, %v408
  %v410 = vrot.slane %v405, %v409
  %v412 = vmul.f32 %v279, %v410
  %v413 = vmul.f32 %v282, %v410
  %v414 = vmul.f32 %v287, %v410
  %v415 = vmul.f32 %v290, %v410
  %v416 = vmul.f32 %v295, %v410
  %v417 = vmul.f32 %v298, %v410
  %v418 = vmul.f32 %v303, %v410
  %v419 = vmul.f32 %v306, %v410
  %v420 = vmul.f32 %v311, %v410
  %v421 = vmul.f32 %v314, %v410
  %v422 = vmul.f32 %v319, %v410
  %v423 = vmul.f32 %v322, %v410
  %v424 = vmul.f32 %v327, %v410
  %v425 = vmul.f32 %v330, %v410
  %v426 = vmul.f32 %v335, %v410
  %v427 = vmul.f32 %v338, %v410
  %v428 = vmul.f32 %v343, %v410
  %v429 = vmul.f32 %v346, %v410
  %v430 = vmul.f32 %v351, %v410
  %v431 = vmul.f32 %v354, %v410
  %v432 = vmul.f32 %v359, %v410
  %v433 = vmul.f32 %v362, %v410
  %v434 = vmul.f32 %v367, %v410
  %v435 = vmul.f32 %v370, %v410
  %v436 = vmul.f32 %v375, %v410
  %v437 = vmul.f32 %v378, %v410
  %v438 = vmul.f32 %v383, %v410
  %v439 = vmul.f32 %v386, %v410
  %v440 = vmul.f32 %v391, %v410
  %v441 = vmul.f32 %v394, %v410
  %v442 = vmul.f32 %v399, %v410
  %v443 = vmul.f32 %v402, %v410
  %v444 = vld [vmem:[%s3] sm:$0x1]
  %v446 = vlaneseq
  %v447 = vshrl.u32 %v446, 7
  %v448 = vsub.s32 0, %v447
  %v449 = vrot.slane %v444, %v448
  %v451 = vadd.f32 %v412, %v449
  %v452 = vadd.f32 %v413, %v449
  %v453 = vadd.f32 %v414, %v449
  %v454 = vadd.f32 %v415, %v449
  %v455 = vadd.f32 %v416, %v449
  %v456 = vadd.f32 %v417, %v449
  %v457 = vadd.f32 %v418, %v449
  %v458 = vadd.f32 %v419, %v449
  %v459 = vadd.f32 %v420, %v449
  %v460 = vadd.f32 %v421, %v449
  %v461 = vadd.f32 %v422, %v449
  %v462 = vadd.f32 %v423, %v449
  %v463 = vadd.f32 %v424, %v449
  %v464 = vadd.f32 %v425, %v449
  %v465 = vadd.f32 %v426, %v449
  %v466 = vadd.f32 %v427, %v449
  %v467 = vadd.f32 %v428, %v449
  %v468 = vadd.f32 %v429, %v449
  %v469 = vadd.f32 %v430, %v449
  %v470 = vadd.f32 %v431, %v449
  %v471 = vadd.f32 %v432, %v449
  %v472 = vadd.f32 %v433, %v449
  %v473 = vadd.f32 %v434, %v449
  %v474 = vadd.f32 %v435, %v449
  %v475 = vadd.f32 %v436, %v449
  %v476 = vadd.f32 %v437, %v449
  %v477 = vadd.f32 %v438, %v449
  %v478 = vadd.f32 %v439, %v449
  %v479 = vadd.f32 %v440, %v449
  %v480 = vadd.f32 %v441, %v449
  %v481 = vadd.f32 %v442, %v449
  %v482 = vadd.f32 %v443, %v449
  %v483 = vmax.f32 %v451, 0.0
  %v484 = vmax.f32 %v452, 0.0
  %v485 = vmax.f32 %v453, 0.0
  %v486 = vmax.f32 %v454, 0.0
  %v487 = vmax.f32 %v455, 0.0
  %v488 = vmax.f32 %v456, 0.0
  %v489 = vmax.f32 %v457, 0.0
  %v490 = vmax.f32 %v458, 0.0
  %v491 = vmax.f32 %v459, 0.0
  %v492 = vmax.f32 %v460, 0.0
  %v493 = vmax.f32 %v461, 0.0
  %v494 = vmax.f32 %v462, 0.0
  %v495 = vmax.f32 %v463, 0.0
  %v496 = vmax.f32 %v464, 0.0
  %v497 = vmax.f32 %v465, 0.0
  %v498 = vmax.f32 %v466, 0.0
  %v499 = vmax.f32 %v467, 0.0
  %v500 = vmax.f32 %v468, 0.0
  %v501 = vmax.f32 %v469, 0.0
  %v502 = vmax.f32 %v470, 0.0
  %v503 = vmax.f32 %v471, 0.0
  %v504 = vmax.f32 %v472, 0.0
  %v505 = vmax.f32 %v473, 0.0
  %v506 = vmax.f32 %v474, 0.0
  %v507 = vmax.f32 %v475, 0.0
  %v508 = vmax.f32 %v476, 0.0
  %v509 = vmax.f32 %v477, 0.0
  %v510 = vmax.f32 %v478, 0.0
  %v511 = vmax.f32 %v479, 0.0
  %v512 = vmax.f32 %v480, 0.0
  %v513 = vmax.f32 %v481, 0.0
  %v514 = vmax.f32 %v482, 0.0
  %v515 = vpack.c.bf16 %v484, %v483
  %v516 = vpack.c.bf16 %v486, %v485
  %v517 = vpack.c.bf16 %v488, %v487
  %v518 = vpack.c.bf16 %v490, %v489
  %v519 = vpack.c.bf16 %v492, %v491
  %v520 = vpack.c.bf16 %v494, %v493
  %v521 = vpack.c.bf16 %v496, %v495
  %v522 = vpack.c.bf16 %v498, %v497
  %v523 = vpack.c.bf16 %v500, %v499
  %v524 = vpack.c.bf16 %v502, %v501
  %v525 = vpack.c.bf16 %v504, %v503
  %v526 = vpack.c.bf16 %v506, %v505
  %v527 = vpack.c.bf16 %v508, %v507
  %v528 = vpack.c.bf16 %v510, %v509
  %v529 = vpack.c.bf16 %v512, %v511
  %v530 = vpack.c.bf16 %v514, %v513
  %v531 = vld [vmem:[%s4] sm:$0xf]
  %v532 = vld [vmem:[%s4 + $0x4] sm:$0xf]
  %v533 = vld [vmem:[%s4 + $0x8] sm:$0xf]
  %v534 = vld [vmem:[%s4 + $0xc] sm:$0xf]
  %v535 = vld [vmem:[%s4 + $0x10] sm:$0xf]
  %v536 = vld [vmem:[%s4 + $0x14] sm:$0xf]
  %v537 = vld [vmem:[%s4 + $0x18] sm:$0xf]
  %v538 = vld [vmem:[%s4 + $0x1c] sm:$0xf]
  %v547 = vunpack.c.l.b16 %v531
  %v548 = vunpack.c.l.b16 %v532
  %v549 = vunpack.c.l.b16 %v533
  %v550 = vunpack.c.l.b16 %v534
  %v551 = vunpack.c.l.b16 %v535
  %v552 = vunpack.c.l.b16 %v536
  %v553 = vunpack.c.l.b16 %v537
  %v554 = vunpack.c.l.b16 %v538
  %v555 = vpack.c.b16 %v548, %v547
  %v556 = vpack.c.b16 %v550, %v549
  %v557 = vpack.c.b16 %v552, %v551
  %v558 = vpack.c.b16 %v554, %v553
  %vm563 = vcmask 523264
  %v565 = vsel %vm563, %v515, 0
  %v568 = vsel %vm563, %v516, 0
  %v571 = vsel %vm563, %v517, 0
  %v574 = vsel %vm563, %v518, 0
  %v577 = vsel %vm563, %v519, 0
  %v580 = vsel %vm563, %v520, 0
  %v583 = vsel %vm563, %v521, 0
  %v586 = vsel %vm563, %v522, 0
  %v589 = vsel %vm563, %v523, 0
  %v592 = vsel %vm563, %v524, 0
  %v595 = vsel %vm563, %v525, 0
  %v598 = vsel %vm563, %v526, 0
  %v601 = vsel %vm563, %v527, 0
  %v604 = vsel %vm563, %v528, 0
  %v607 = vsel %vm563, %v529, 0
  %v610 = vsel %vm563, %v530, 0
  %612 = vmatprep.subr.bf16.mxu0 0
  %613 = vmatpush1.bf16.msra.mxu0 0
  %614 = vmatprep.subr.bf16.mxu0 0
  %615 = vmatpush1.bf16.msra.mxu0 0
  %616 = vmatprep.subr.bf16.mxu0 0
  %617 = vmatpush1.bf16.msra.mxu0 0
  %618 = vmatprep.subr.bf16.mxu0 0
  %619 = vmatpush1.bf16.msra.mxu0 0
  %620 = vmatprep.subr.bf16.mxu0 0
  %621 = vmatpush1.bf16.msra.mxu0 %v558
  %622 = vmatprep.subr.bf16.mxu0 0
  %623 = vmatpush1.bf16.msra.mxu0 %v557
  %624 = vmatprep.subr.bf16.mxu0 0
  %625 = vmatpush1.bf16.msra.mxu0 %v556
  %626 = vmatprep.subr.bf16.mxu0 0
  %627 = vmatpush1.bf16.msra.mxu0 %v555
  %628 = vmatprep.subr.bf16.mxu0 0
  %629 = vmatpush2.bf16.msra.mxu0 0
  %630 = vmatprep.subr.bf16.mxu0 0
  %631 = vmatpush2.bf16.msra.mxu0 0
  %632 = vmatprep.subr.bf16.mxu0 0
  %633 = vmatpush2.bf16.msra.mxu0 0
  %634 = vmatprep.subr.bf16.mxu0 0
  %635 = vmatpush2.bf16.msra.mxu0 0
  %636 = vmatprep.subr.bf16.mxu0 0
  %637 = vmatpush2.bf16.msra.mxu0 0
  %638 = vmatprep.subr.bf16.mxu0 0
  %639 = vmatpush2.bf16.msra.mxu0 0
  %640 = vmatprep.subr.bf16.mxu0 0
  %641 = vmatpush2.bf16.msra.mxu0 0
  %642 = vmatprep.subr.bf16.mxu0 0
  %643 = vmatpush2.bf16.msra.mxu0 0
  %644 = vmatprep.mubr.bf16.mxu0 0
  %645 = vmatmul.mubr.bf16.gmra.mxu0 %v565
  %v646 = vpop.f32.mrf.mxu0
  %v647 = vadd.f32 0.0, %v646
  %v648 = vpop.f32.mrf.mxu0
  %v649 = vpop.f32.mrf.mxu0
  %v650 = vadd.f32 0.0, %v649
  %v651 = vpop.f32.mrf.mxu0
  %652 = vmatprep.mubr.bf16.mxu0 0
  %653 = vmatmul.mubr.bf16.gmra.mxu0 %v568
  %v654 = vpop.f32.mrf.mxu0
  %v655 = vadd.f32 0.0, %v654
  %v656 = vpop.f32.mrf.mxu0
  %v657 = vpop.f32.mrf.mxu0
  %v658 = vadd.f32 0.0, %v657
  %v659 = vpop.f32.mrf.mxu0
  %660 = vmatprep.mubr.bf16.mxu0 0
  %661 = vmatmul.mubr.bf16.gmra.mxu0 %v571
  %v662 = vpop.f32.mrf.mxu0
  %v663 = vadd.f32 0.0, %v662
  %v664 = vpop.f32.mrf.mxu0
  %v665 = vpop.f32.mrf.mxu0
  %v666 = vadd.f32 0.0, %v665
  %v667 = vpop.f32.mrf.mxu0
  %668 = vmatprep.mubr.bf16.mxu0 0
  %669 = vmatmul.mubr.bf16.gmra.mxu0 %v574
  %v670 = vpop.f32.mrf.mxu0
  %v671 = vadd.f32 0.0, %v670
  %v672 = vpop.f32.mrf.mxu0
  %v673 = vpop.f32.mrf.mxu0
  %v674 = vadd.f32 0.0, %v673
  %v675 = vpop.f32.mrf.mxu0
  %676 = vmatprep.mubr.bf16.mxu0 0
  %677 = vmatmul.mubr.bf16.gmra.mxu0 %v577
  %v678 = vpop.f32.mrf.mxu0
  %v679 = vadd.f32 0.0, %v678
  %v680 = vpop.f32.mrf.mxu0
  %v681 = vpop.f32.mrf.mxu0
  %v682 = vadd.f32 0.0, %v681
  %v683 = vpop.f32.mrf.mxu0
  %684 = vmatprep.mubr.bf16.mxu0 0
  %685 = vmatmul.mubr.bf16.gmra.mxu0 %v580
  %v686 = vpop.f32.mrf.mxu0
  %v687 = vadd.f32 0.0, %v686
  %v688 = vpop.f32.mrf.mxu0
  %v689 = vpop.f32.mrf.mxu0
  %v690 = vadd.f32 0.0, %v689
  %v691 = vpop.f32.mrf.mxu0
  %692 = vmatprep.mubr.bf16.mxu0 0
  %693 = vmatmul.mubr.bf16.gmra.mxu0 %v583
  %v694 = vpop.f32.mrf.mxu0
  %v695 = vadd.f32 0.0, %v694
  %v696 = vpop.f32.mrf.mxu0
  %v697 = vpop.f32.mrf.mxu0
  %v698 = vadd.f32 0.0, %v697
  %v699 = vpop.f32.mrf.mxu0
  %700 = vmatprep.mubr.bf16.mxu0 0
  %701 = vmatmul.mubr.bf16.gmra.mxu0 %v586
  %v702 = vpop.f32.mrf.mxu0
  %v703 = vadd.f32 0.0, %v702
  %v704 = vpop.f32.mrf.mxu0
  %v705 = vpop.f32.mrf.mxu0
  %v706 = vadd.f32 0.0, %v705
  %v707 = vpop.f32.mrf.mxu0
  %708 = vmatprep.mubr.bf16.mxu0 0
  %709 = vmatmul.mubr.bf16.gmra.mxu0 %v589
  %v710 = vpop.f32.mrf.mxu0
  %v711 = vadd.f32 0.0, %v710
  %v712 = vpop.f32.mrf.mxu0
  %v713 = vpop.f32.mrf.mxu0
  %v714 = vadd.f32 0.0, %v713
  %v715 = vpop.f32.mrf.mxu0
  %716 = vmatprep.mubr.bf16.mxu0 0
  %717 = vmatmul.mubr.bf16.gmra.mxu0 %v592
  %v718 = vpop.f32.mrf.mxu0
  %v719 = vadd.f32 0.0, %v718
  %v720 = vpop.f32.mrf.mxu0
  %v721 = vpop.f32.mrf.mxu0
  %v722 = vadd.f32 0.0, %v721
  %v723 = vpop.f32.mrf.mxu0
  %724 = vmatprep.mubr.bf16.mxu0 0
  %725 = vmatmul.mubr.bf16.gmra.mxu0 %v595
  %v726 = vpop.f32.mrf.mxu0
  %v727 = vadd.f32 0.0, %v726
  %v728 = vpop.f32.mrf.mxu0
  %v729 = vpop.f32.mrf.mxu0
  %v730 = vadd.f32 0.0, %v729
  %v731 = vpop.f32.mrf.mxu0
  %732 = vmatprep.mubr.bf16.mxu0 0
  %733 = vmatmul.mubr.bf16.gmra.mxu0 %v598
  %v734 = vpop.f32.mrf.mxu0
  %v735 = vadd.f32 0.0, %v734
  %v736 = vpop.f32.mrf.mxu0
  %v737 = vpop.f32.mrf.mxu0
  %v738 = vadd.f32 0.0, %v737
  %v739 = vpop.f32.mrf.mxu0
  %740 = vmatprep.mubr.bf16.mxu0 0
  %741 = vmatmul.mubr.bf16.gmra.mxu0 %v601
  %v742 = vpop.f32.mrf.mxu0
  %v743 = vadd.f32 0.0, %v742
  %v744 = vpop.f32.mrf.mxu0
  %v745 = vpop.f32.mrf.mxu0
  %v746 = vadd.f32 0.0, %v745
  %v747 = vpop.f32.mrf.mxu0
  %748 = vmatprep.mubr.bf16.mxu0 0
  %749 = vmatmul.mubr.bf16.gmra.mxu0 %v604
  %v750 = vpop.f32.mrf.mxu0
  %v751 = vadd.f32 0.0, %v750
  %v752 = vpop.f32.mrf.mxu0
  %v753 = vpop.f32.mrf.mxu0
  %v754 = vadd.f32 0.0, %v753
  %v755 = vpop.f32.mrf.mxu0
  %756 = vmatprep.mubr.bf16.mxu0 0
  %757 = vmatmul.mubr.bf16.gmra.mxu0 %v607
  %v758 = vpop.f32.mrf.mxu0
  %v759 = vadd.f32 0.0, %v758
  %v760 = vpop.f32.mrf.mxu0
  %v761 = vpop.f32.mrf.mxu0
  %v762 = vadd.f32 0.0, %v761
  %v763 = vpop.f32.mrf.mxu0
  %764 = vmatprep.mubr.bf16.mxu0 0
  %765 = vmatmul.mubr.bf16.gmra.mxu0 %v610
  %v766 = vpop.f32.mrf.mxu0
  %v767 = vadd.f32 0.0, %v766
  %v768 = vpop.f32.mrf.mxu0
  %v769 = vpop.f32.mrf.mxu0
  %v770 = vadd.f32 0.0, %v769
  %v771 = vpop.f32.mrf.mxu0
  %772 = vdwg.mxu0
  %v773 = vld [vmem:[%s5] sm:$0x1]
  %v775 = vlaneseq
  %v776 = vshrl.u32 %v775, 7
  %v777 = vsub.s32 0, %v776
  %v778 = vrot.slane %v773, %v777
  %v780 = vmul.f32 %v647, %v778
  %v781 = vmul.f32 %v650, %v778
  %v782 = vmul.f32 %v655, %v778
  %v783 = vmul.f32 %v658, %v778
  %v784 = vmul.f32 %v663, %v778
  %v785 = vmul.f32 %v666, %v778
  %v786 = vmul.f32 %v671, %v778
  %v787 = vmul.f32 %v674, %v778
  %v788 = vmul.f32 %v679, %v778
  %v789 = vmul.f32 %v682, %v778
  %v790 = vmul.f32 %v687, %v778
  %v791 = vmul.f32 %v690, %v778
  %v792 = vmul.f32 %v695, %v778
  %v793 = vmul.f32 %v698, %v778
  %v794 = vmul.f32 %v703, %v778
  %v795 = vmul.f32 %v706, %v778
  %v796 = vmul.f32 %v711, %v778
  %v797 = vmul.f32 %v714, %v778
  %v798 = vmul.f32 %v719, %v778
  %v799 = vmul.f32 %v722, %v778
  %v800 = vmul.f32 %v727, %v778
  %v801 = vmul.f32 %v730, %v778
  %v802 = vmul.f32 %v735, %v778
  %v803 = vmul.f32 %v738, %v778
  %v804 = vmul.f32 %v743, %v778
  %v805 = vmul.f32 %v746, %v778
  %v806 = vmul.f32 %v751, %v778
  %v807 = vmul.f32 %v754, %v778
  %v808 = vmul.f32 %v759, %v778
  %v809 = vmul.f32 %v762, %v778
  %v810 = vmul.f32 %v767, %v778
  %v811 = vmul.f32 %v770, %v778
  %v812 = vld [vmem:[%s6] sm:$0x1]
  %v814 = vlaneseq
  %v815 = vshrl.u32 %v814, 7
  %v816 = vsub.s32 0, %v815
  %v817 = vrot.slane %v812, %v816
  %v819 = vadd.f32 %v780, %v817
  %v820 = vadd.f32 %v781, %v817
  %v821 = vadd.f32 %v782, %v817
  %v822 = vadd.f32 %v783, %v817
  %v823 = vadd.f32 %v784, %v817
  %v824 = vadd.f32 %v785, %v817
  %v825 = vadd.f32 %v786, %v817
  %v826 = vadd.f32 %v787, %v817
  %v827 = vadd.f32 %v788, %v817
  %v828 = vadd.f32 %v789, %v817
  %v829 = vadd.f32 %v790, %v817
  %v830 = vadd.f32 %v791, %v817
  %v831 = vadd.f32 %v792, %v817
  %v832 = vadd.f32 %v793, %v817
  %v833 = vadd.f32 %v794, %v817
  %v834 = vadd.f32 %v795, %v817
  %v835 = vadd.f32 %v796, %v817
  %v836 = vadd.f32 %v797, %v817
  %v837 = vadd.f32 %v798, %v817
  %v838 = vadd.f32 %v799, %v817
  %v839 = vadd.f32 %v800, %v817
  %v840 = vadd.f32 %v801, %v817
  %v841 = vadd.f32 %v802, %v817
  %v842 = vadd.f32 %v803, %v817
  %v843 = vadd.f32 %v804, %v817
  %v844 = vadd.f32 %v805, %v817
  %v845 = vadd.f32 %v806, %v817
  %v846 = vadd.f32 %v807, %v817
  %v847 = vadd.f32 %v808, %v817
  %v848 = vadd.f32 %v809, %v817
  %v849 = vadd.f32 %v810, %v817
  %v850 = vadd.f32 %v811, %v817
  %v851 = vmax.f32 %v819, 0.0
  %v852 = vmax.f32 %v820, 0.0
  %v853 = vmax.f32 %v821, 0.0
  %v854 = vmax.f32 %v822, 0.0
  %v855 = vmax.f32 %v823, 0.0
  %v856 = vmax.f32 %v824, 0.0
  %v857 = vmax.f32 %v825, 0.0
  %v858 = vmax.f32 %v826, 0.0
  %v859 = vmax.f32 %v827, 0.0
  %v860 = vmax.f32 %v828, 0.0
  %v861 = vmax.f32 %v829, 0.0
  %v862 = vmax.f32 %v830, 0.0
  %v863 = vmax.f32 %v831, 0.0
  %v864 = vmax.f32 %v832, 0.0
  %v865 = vmax.f32 %v833, 0.0
  %v866 = vmax.f32 %v834, 0.0
  %v867 = vmax.f32 %v835, 0.0
  %v868 = vmax.f32 %v836, 0.0
  %v869 = vmax.f32 %v837, 0.0
  %v870 = vmax.f32 %v838, 0.0
  %v871 = vmax.f32 %v839, 0.0
  %v872 = vmax.f32 %v840, 0.0
  %v873 = vmax.f32 %v841, 0.0
  %v874 = vmax.f32 %v842, 0.0
  %v875 = vmax.f32 %v843, 0.0
  %v876 = vmax.f32 %v844, 0.0
  %v877 = vmax.f32 %v845, 0.0
  %v878 = vmax.f32 %v846, 0.0
  %v879 = vmax.f32 %v847, 0.0
  %v880 = vmax.f32 %v848, 0.0
  %v881 = vmax.f32 %v849, 0.0
  %v882 = vmax.f32 %v850, 0.0
  %v883 = vpack.c.bf16 %v852, %v851
  %v884 = vpack.c.bf16 %v854, %v853
  %v885 = vpack.c.bf16 %v856, %v855
  %v886 = vpack.c.bf16 %v858, %v857
  %v887 = vpack.c.bf16 %v860, %v859
  %v888 = vpack.c.bf16 %v862, %v861
  %v889 = vpack.c.bf16 %v864, %v863
  %v890 = vpack.c.bf16 %v866, %v865
  %v891 = vpack.c.bf16 %v868, %v867
  %v892 = vpack.c.bf16 %v870, %v869
  %v893 = vpack.c.bf16 %v872, %v871
  %v894 = vpack.c.bf16 %v874, %v873
  %v895 = vpack.c.bf16 %v876, %v875
  %v896 = vpack.c.bf16 %v878, %v877
  %v897 = vpack.c.bf16 %v880, %v879
  %v898 = vpack.c.bf16 %v882, %v881
  %v899 = vld [vmem:[%s7] sm:$0xff]
  %v900 = vld [vmem:[%s7 + $0x8] sm:$0xff]
  %v901 = vld [vmem:[%s7 + $0x10] sm:$0xff]
  %v902 = vld [vmem:[%s7 + $0x18] sm:$0xff]
  %v903 = vld [vmem:[%s7 + $0x20] sm:$0xff]
  %v904 = vld [vmem:[%s7 + $0x28] sm:$0xff]
  %v905 = vld [vmem:[%s7 + $0x30] sm:$0xff]
  %v906 = vld [vmem:[%s7 + $0x38] sm:$0xff]
  %v907 = vld [vmem:[%s7 + $0x40] sm:$0xff]
  %v908 = vld [vmem:[%s7 + $0x48] sm:$0xff]
  %v909 = vld [vmem:[%s7 + $0x50] sm:$0xff]
  %v910 = vld [vmem:[%s7 + $0x58] sm:$0xff]
  %v911 = vld [vmem:[%s7 + $0x60] sm:$0xff]
  %v912 = vld [vmem:[%s7 + $0x68] sm:$0xff]
  %v913 = vld [vmem:[%s7 + $0x70] sm:$0xff]
  %v914 = vld [vmem:[%s7 + $0x78] sm:$0xff]
  %v915 = vld [vmem:[%s7 + $0x80] sm:$0xff]
  %v916 = vld [vmem:[%s7 + $0x88] sm:$0xff]
  %v917 = vld [vmem:[%s7 + $0x90] sm:$0xff]
  %v918 = vld [vmem:[%s7 + $0x98] sm:$0xff]
  %v919 = vld [vmem:[%s7 + $0xa0] sm:$0xff]
  %v920 = vld [vmem:[%s7 + $0xa8] sm:$0xff]
  %v921 = vld [vmem:[%s7 + $0xb0] sm:$0xff]
  %v922 = vld [vmem:[%s7 + $0xb8] sm:$0xff]
  %v923 = vld [vmem:[%s7 + $0xc0] sm:$0xff]
  %v924 = vld [vmem:[%s7 + $0xc8] sm:$0xff]
  %v925 = vld [vmem:[%s7 + $0xd0] sm:$0xff]
  %v926 = vld [vmem:[%s7 + $0xd8] sm:$0xff]
  %v927 = vld [vmem:[%s7 + $0xe0] sm:$0xff]
  %v928 = vld [vmem:[%s7 + $0xe8] sm:$0xff]
  %v929 = vld [vmem:[%s7 + $0xf0] sm:$0xff]
  %v930 = vld [vmem:[%s7 + $0xf8] sm:$0xff]
  %v931 = vld [vmem:[%s7 + $0x100] sm:$0xff]
  %v932 = vld [vmem:[%s7 + $0x108] sm:$0xff]
  %v933 = vld [vmem:[%s7 + $0x110] sm:$0xff]
  %v934 = vld [vmem:[%s7 + $0x118] sm:$0xff]
  %v935 = vld [vmem:[%s7 + $0x120] sm:$0xff]
  %v936 = vld [vmem:[%s7 + $0x128] sm:$0xff]
  %v937 = vld [vmem:[%s7 + $0x130] sm:$0xff]
  %v938 = vld [vmem:[%s7 + $0x138] sm:$0xff]
  %v939 = vld [vmem:[%s7 + $0x140] sm:$0xff]
  %v940 = vld [vmem:[%s7 + $0x148] sm:$0xff]
  %v941 = vld [vmem:[%s7 + $0x150] sm:$0xff]
  %v942 = vld [vmem:[%s7 + $0x158] sm:$0xff]
  %v943 = vld [vmem:[%s7 + $0x160] sm:$0xff]
  %v944 = vld [vmem:[%s7 + $0x168] sm:$0xff]
  %v945 = vld [vmem:[%s7 + $0x170] sm:$0xff]
  %v946 = vld [vmem:[%s7 + $0x178] sm:$0xff]
  %v947 = vld [vmem:[%s7 + $0x180] sm:$0xff]
  %v948 = vld [vmem:[%s7 + $0x188] sm:$0xff]
  %v949 = vld [vmem:[%s7 + $0x190] sm:$0xff]
  %v950 = vld [vmem:[%s7 + $0x198] sm:$0xff]
  %v951 = vld [vmem:[%s7 + $0x1a0] sm:$0xff]
  %v952 = vld [vmem:[%s7 + $0x1a8] sm:$0xff]
  %v953 = vld [vmem:[%s7 + $0x1b0] sm:$0xff]
  %v954 = vld [vmem:[%s7 + $0x1b8] sm:$0xff]
  %v955 = vld [vmem:[%s7 + $0x1c0] sm:$0xff]
  %v956 = vld [vmem:[%s7 + $0x1c8] sm:$0xff]
  %v957 = vld [vmem:[%s7 + $0x1d0] sm:$0xff]
  %v958 = vld [vmem:[%s7 + $0x1d8] sm:$0xff]
  %v959 = vld [vmem:[%s7 + $0x1e0] sm:$0xff]
  %v960 = vld [vmem:[%s7 + $0x1e8] sm:$0xff]
  %v961 = vld [vmem:[%s7 + $0x1f0] sm:$0xff]
  %v962 = vld [vmem:[%s7 + $0x1f8] sm:$0xff]
  %v1027 = vunpack.c.l.b16 %v899
  %v1028 = vunpack.c.h.b16 %v899
  %v1029 = vunpack.c.l.b16 %v900
  %v1030 = vunpack.c.h.b16 %v900
  %v1031 = vunpack.c.l.b16 %v901
  %v1032 = vunpack.c.h.b16 %v901
  %v1033 = vunpack.c.l.b16 %v902
  %v1034 = vunpack.c.h.b16 %v902
  %v1035 = vunpack.c.l.b16 %v903
  %v1036 = vunpack.c.h.b16 %v903
  %v1037 = vunpack.c.l.b16 %v904
  %v1038 = vunpack.c.h.b16 %v904
  %v1039 = vunpack.c.l.b16 %v905
  %v1040 = vunpack.c.h.b16 %v905
  %v1041 = vunpack.c.l.b16 %v906
  %v1042 = vunpack.c.h.b16 %v906
  %v1043 = vunpack.c.l.b16 %v907
  %v1044 = vunpack.c.h.b16 %v907
  %v1045 = vunpack.c.l.b16 %v908
  %v1046 = vunpack.c.h.b16 %v908
  %v1047 = vunpack.c.l.b16 %v909
  %v1048 = vunpack.c.h.b16 %v909
  %v1049 = vunpack.c.l.b16 %v910
  %v1050 = vunpack.c.h.b16 %v910
  %v1051 = vunpack.c.l.b16 %v911
  %v1052 = vunpack.c.h.b16 %v911
  %v1053 = vunpack.c.l.b16 %v912
  %v1054 = vunpack.c.h.b16 %v912
  %v1055 = vunpack.c.l.b16 %v913
  %v1056 = vunpack.c.h.b16 %v913
  %v1057 = vunpack.c.l.b16 %v914
  %v1058 = vunpack.c.h.b16 %v914
  %v1059 = vunpack.c.l.b16 %v915
  %v1060 = vunpack.c.h.b16 %v915
  %v1061 = vunpack.c.l.b16 %v916
  %v1062 = vunpack.c.h.b16 %v916
  %v1063 = vunpack.c.l.b16 %v917
  %v1064 = vunpack.c.h.b16 %v917
  %v1065 = vunpack.c.l.b16 %v918
  %v1066 = vunpack.c.h.b16 %v918
  %v1067 = vunpack.c.l.b16 %v919
  %v1068 = vunpack.c.h.b16 %v919
  %v1069 = vunpack.c.l.b16 %v920
  %v1070 = vunpack.c.h.b16 %v920
  %v1071 = vunpack.c.l.b16 %v921
  %v1072 = vunpack.c.h.b16 %v921
  %v1073 = vunpack.c.l.b16 %v922
  %v1074 = vunpack.c.h.b16 %v922
  %v1075 = vunpack.c.l.b16 %v923
  %v1076 = vunpack.c.h.b16 %v923
  %v1077 = vunpack.c.l.b16 %v924
  %v1078 = vunpack.c.h.b16 %v924
  %v1079 = vunpack.c.l.b16 %v925
  %v1080 = vunpack.c.h.b16 %v925
  %v1081 = vunpack.c.l.b16 %v926
  %v1082 = vunpack.c.h.b16 %v926
  %v1083 = vunpack.c.l.b16 %v927
  %v1084 = vunpack.c.h.b16 %v927
  %v1085 = vunpack.c.l.b16 %v928
  %v1086 = vunpack.c.h.b16 %v928
  %v1087 = vunpack.c.l.b16 %v929
  %v1088 = vunpack.c.h.b16 %v929
  %v1089 = vunpack.c.l.b16 %v930
  %v1090 = vunpack.c.h.b16 %v930
  %v1091 = vunpack.c.l.b16 %v931
  %v1092 = vunpack.c.h.b16 %v931
  %v1093 = vunpack.c.l.b16 %v932
  %v1094 = vunpack.c.h.b16 %v932
  %v1095 = vunpack.c.l.b16 %v933
  %v1096 = vunpack.c.h.b16 %v933
  %v1097 = vunpack.c.l.b16 %v934
  %v1098 = vunpack.c.h.b16 %v934
  %v1099 = vunpack.c.l.b16 %v935
  %v1100 = vunpack.c.h.b16 %v935
  %v1101 = vunpack.c.l.b16 %v936
  %v1102 = vunpack.c.h.b16 %v936
  %v1103 = vunpack.c.l.b16 %v937
  %v1104 = vunpack.c.h.b16 %v937
  %v1105 = vunpack.c.l.b16 %v938
  %v1106 = vunpack.c.h.b16 %v938
  %v1107 = vunpack.c.l.b16 %v939
  %v1108 = vunpack.c.h.b16 %v939
  %v1109 = vunpack.c.l.b16 %v940
  %v1110 = vunpack.c.h.b16 %v940
  %v1111 = vunpack.c.l.b16 %v941
  %v1112 = vunpack.c.h.b16 %v941
  %v1113 = vunpack.c.l.b16 %v942
  %v1114 = vunpack.c.h.b16 %v942
  %v1115 = vunpack.c.l.b16 %v943
  %v1116 = vunpack.c.h.b16 %v943
  %v1117 = vunpack.c.l.b16 %v944
  %v1118 = vunpack.c.h.b16 %v944
  %v1119 = vunpack.c.l.b16 %v945
  %v1120 = vunpack.c.h.b16 %v945
  %v1121 = vunpack.c.l.b16 %v946
  %v1122 = vunpack.c.h.b16 %v946
  %v1123 = vunpack.c.l.b16 %v947
  %v1124 = vunpack.c.h.b16 %v947
  %v1125 = vunpack.c.l.b16 %v948
  %v1126 = vunpack.c.h.b16 %v948
  %v1127 = vunpack.c.l.b16 %v949
  %v1128 = vunpack.c.h.b16 %v949
  %v1129 = vunpack.c.l.b16 %v950
  %v1130 = vunpack.c.h.b16 %v950
  %v1131 = vunpack.c.l.b16 %v951
  %v1132 = vunpack.c.h.b16 %v951
  %v1133 = vunpack.c.l.b16 %v952
  %v1134 = vunpack.c.h.b16 %v952
  %v1135 = vunpack.c.l.b16 %v953
  %v1136 = vunpack.c.h.b16 %v953
  %v1137 = vunpack.c.l.b16 %v954
  %v1138 = vunpack.c.h.b16 %v954
  %v1139 = vunpack.c.l.b16 %v955
  %v1140 = vunpack.c.h.b16 %v955
  %v1141 = vunpack.c.l.b16 %v956
  %v1142 = vunpack.c.h.b16 %v956
  %v1143 = vunpack.c.l.b16 %v957
  %v1144 = vunpack.c.h.b16 %v957
  %v1145 = vunpack.c.l.b16 %v958
  %v1146 = vunpack.c.h.b16 %v958
  %v1147 = vunpack.c.l.b16 %v959
  %v1148 = vunpack.c.h.b16 %v959
  %v1149 = vunpack.c.l.b16 %v960
  %v1150 = vunpack.c.h.b16 %v960
  %v1151 = vunpack.c.l.b16 %v961
  %v1152 = vunpack.c.h.b16 %v961
  %v1153 = vunpack.c.l.b16 %v962
  %v1154 = vunpack.c.h.b16 %v962
  %v1155 = vpack.c.b16 %v1035, %v1027
  %v1156 = vpack.c.b16 %v1036, %v1028
  %v1157 = vpack.c.b16 %v1037, %v1029
  %v1158 = vpack.c.b16 %v1038, %v1030
  %v1159 = vpack.c.b16 %v1039, %v1031
  %v1160 = vpack.c.b16 %v1040, %v1032
  %v1161 = vpack.c.b16 %v1041, %v1033
  %v1162 = vpack.c.b16 %v1042, %v1034
  %v1163 = vpack.c.b16 %v1051, %v1043
  %v1164 = vpack.c.b16 %v1052, %v1044
  %v1165 = vpack.c.b16 %v1053, %v1045
  %v1166 = vpack.c.b16 %v1054, %v1046
  %v1167 = vpack.c.b16 %v1055, %v1047
  %v1168 = vpack.c.b16 %v1056, %v1048
  %v1169 = vpack.c.b16 %v1057, %v1049
  %v1170 = vpack.c.b16 %v1058, %v1050
  %v1171 = vpack.c.b16 %v1067, %v1059
  %v1172 = vpack.c.b16 %v1068, %v1060
  %v1173 = vpack.c.b16 %v1069, %v1061
  %v1174 = vpack.c.b16 %v1070, %v1062
  %v1175 = vpack.c.b16 %v1071, %v1063
  %v1176 = vpack.c.b16 %v1072, %v1064
  %v1177 = vpack.c.b16 %v1073, %v1065
  %v1178 = vpack.c.b16 %v1074, %v1066
  %v1179 = vpack.c.b16 %v1083, %v1075
  %v1180 = vpack.c.b16 %v1084, %v1076
  %v1181 = vpack.c.b16 %v1085, %v1077
  %v1182 = vpack.c.b16 %v1086, %v1078
  %v1183 = vpack.c.b16 %v1087, %v1079
  %v1184 = vpack.c.b16 %v1088, %v1080
  %v1185 = vpack.c.b16 %v1089, %v1081
  %v1186 = vpack.c.b16 %v1090, %v1082
  %v1187 = vpack.c.b16 %v1099, %v1091
  %v1188 = vpack.c.b16 %v1100, %v1092
  %v1189 = vpack.c.b16 %v1101, %v1093
  %v1190 = vpack.c.b16 %v1102, %v1094
  %v1191 = vpack.c.b16 %v1103, %v1095
  %v1192 = vpack.c.b16 %v1104, %v1096
  %v1193 = vpack.c.b16 %v1105, %v1097
  %v1194 = vpack.c.b16 %v1106, %v1098
  %v1195 = vpack.c.b16 %v1115, %v1107
  %v1196 = vpack.c.b16 %v1116, %v1108
  %v1197 = vpack.c.b16 %v1117, %v1109
  %v1198 = vpack.c.b16 %v1118, %v1110
  %v1199 = vpack.c.b16 %v1119, %v1111
  %v1200 = vpack.c.b16 %v1120, %v1112
  %v1201 = vpack.c.b16 %v1121, %v1113
  %v1202 = vpack.c.b16 %v1122, %v1114
  %v1203 = vpack.c.b16 %v1131, %v1123
  %v1204 = vpack.c.b16 %v1132, %v1124
  %v1205 = vpack.c.b16 %v1133, %v1125
  %v1206 = vpack.c.b16 %v1134, %v1126
  %v1207 = vpack.c.b16 %v1135, %v1127
  %v1208 = vpack.c.b16 %v1136, %v1128
  %v1209 = vpack.c.b16 %v1137, %v1129
  %v1210 = vpack.c.b16 %v1138, %v1130
  %v1211 = vpack.c.b16 %v1147, %v1139
  %v1212 = vpack.c.b16 %v1148, %v1140
  %v1213 = vpack.c.b16 %v1149, %v1141
  %v1214 = vpack.c.b16 %v1150, %v1142
  %v1215 = vpack.c.b16 %v1151, %v1143
  %v1216 = vpack.c.b16 %v1152, %v1144
  %v1217 = vpack.c.b16 %v1153, %v1145
  %v1218 = vpack.c.b16 %v1154, %v1146
  %1283 = vmatprep.subr.bf16.mxu0 %v1212
  %1284 = vmatpush1.bf16.msra.mxu0 %v1211
  %1285 = vmatprep.subr.bf16.mxu0 %v1204
  %1286 = vmatpush1.bf16.msra.mxu0 %v1203
  %1287 = vmatprep.subr.bf16.mxu0 %v1196
  %1288 = vmatpush1.bf16.msra.mxu0 %v1195
  %1289 = vmatprep.subr.bf16.mxu0 %v1188
  %1290 = vmatpush1.bf16.msra.mxu0 %v1187
  %1291 = vmatprep.subr.bf16.mxu0 %v1180
  %1292 = vmatpush1.bf16.msra.mxu0 %v1179
  %1293 = vmatprep.subr.bf16.mxu0 %v1172
  %1294 = vmatpush1.bf16.msra.mxu0 %v1171
  %1295 = vmatprep.subr.bf16.mxu0 %v1164
  %1296 = vmatpush1.bf16.msra.mxu0 %v1163
  %1297 = vmatprep.subr.bf16.mxu0 %v1156
  %1298 = vmatpush1.bf16.msra.mxu0 %v1155
  %1299 = vmatprep.subr.bf16.mxu0 0
  %1300 = vmatpush2.bf16.msra.mxu0 0
  %1301 = vmatprep.subr.bf16.mxu0 0
  %1302 = vmatpush2.bf16.msra.mxu0 0
  %1303 = vmatprep.subr.bf16.mxu0 0
  %1304 = vmatpush2.bf16.msra.mxu0 0
  %1305 = vmatprep.subr.bf16.mxu0 0
  %1306 = vmatpush2.bf16.msra.mxu0 0
  %1307 = vmatprep.subr.bf16.mxu0 0
  %1308 = vmatpush2.bf16.msra.mxu0 0
  %1309 = vmatprep.subr.bf16.mxu0 0
  %1310 = vmatpush2.bf16.msra.mxu0 0
  %1311 = vmatprep.subr.bf16.mxu0 0
  %1312 = vmatpush2.bf16.msra.mxu0 0
  %1313 = vmatprep.subr.bf16.mxu0 0
  %1314 = vmatpush2.bf16.msra.mxu0 0
  %1315 = vmatprep.mubr.bf16.mxu0 0
  %1316 = vmatmul.mubr.bf16.gmra.mxu0 %v883
  %v1317 = vpop.f32.mrf.mxu0
  %v1318 = vadd.f32 0.0, %v1317
  %v1319 = vpop.f32.mrf.mxu0
  %v1320 = vadd.f32 0.0, %v1319
  %v1321 = vpop.f32.mrf.mxu0
  %v1322 = vadd.f32 0.0, %v1321
  %v1323 = vpop.f32.mrf.mxu0
  %v1324 = vadd.f32 0.0, %v1323
  %1325 = vmatprep.mubr.bf16.mxu0 0
  %1326 = vmatmul.mubr.bf16.gmra.mxu0 %v884
  %v1327 = vpop.f32.mrf.mxu0
  %v1328 = vadd.f32 0.0, %v1327
  %v1329 = vpop.f32.mrf.mxu0
  %v1330 = vadd.f32 0.0, %v1329
  %v1331 = vpop.f32.mrf.mxu0
  %v1332 = vadd.f32 0.0, %v1331
  %v1333 = vpop.f32.mrf.mxu0
  %v1334 = vadd.f32 0.0, %v1333
  %1335 = vmatprep.mubr.bf16.mxu0 0
  %1336 = vmatmul.mubr.bf16.gmra.mxu0 %v885
  %v1337 = vpop.f32.mrf.mxu0
  %v1338 = vadd.f32 0.0, %v1337
  %v1339 = vpop.f32.mrf.mxu0
  %v1340 = vadd.f32 0.0, %v1339
  %v1341 = vpop.f32.mrf.mxu0
  %v1342 = vadd.f32 0.0, %v1341
  %v1343 = vpop.f32.mrf.mxu0
  %v1344 = vadd.f32 0.0, %v1343
  %1345 = vmatprep.mubr.bf16.mxu0 0
  %1346 = vmatmul.mubr.bf16.gmra.mxu0 %v886
  %v1347 = vpop.f32.mrf.mxu0
  %v1348 = vadd.f32 0.0, %v1347
  %v1349 = vpop.f32.mrf.mxu0
  %v1350 = vadd.f32 0.0, %v1349
  %v1351 = vpop.f32.mrf.mxu0
  %v1352 = vadd.f32 0.0, %v1351
  %v1353 = vpop.f32.mrf.mxu0
  %v1354 = vadd.f32 0.0, %v1353
  %1355 = vmatprep.mubr.bf16.mxu0 0
  %1356 = vmatmul.mubr.bf16.gmra.mxu0 %v887
  %v1357 = vpop.f32.mrf.mxu0
  %v1358 = vadd.f32 0.0, %v1357
  %v1359 = vpop.f32.mrf.mxu0
  %v1360 = vadd.f32 0.0, %v1359
  %v1361 = vpop.f32.mrf.mxu0
  %v1362 = vadd.f32 0.0, %v1361
  %v1363 = vpop.f32.mrf.mxu0
  %v1364 = vadd.f32 0.0, %v1363
  %1365 = vmatprep.mubr.bf16.mxu0 0
  %1366 = vmatmul.mubr.bf16.gmra.mxu0 %v888
  %v1367 = vpop.f32.mrf.mxu0
  %v1368 = vadd.f32 0.0, %v1367
  %v1369 = vpop.f32.mrf.mxu0
  %v1370 = vadd.f32 0.0, %v1369
  %v1371 = vpop.f32.mrf.mxu0
  %v1372 = vadd.f32 0.0, %v1371
  %v1373 = vpop.f32.mrf.mxu0
  %v1374 = vadd.f32 0.0, %v1373
  %1375 = vmatprep.mubr.bf16.mxu0 0
  %1376 = vmatmul.mubr.bf16.gmra.mxu0 %v889
  %v1377 = vpop.f32.mrf.mxu0
  %v1378 = vadd.f32 0.0, %v1377
  %v1379 = vpop.f32.mrf.mxu0
  %v1380 = vadd.f32 0.0, %v1379
  %v1381 = vpop.f32.mrf.mxu0
  %v1382 = vadd.f32 0.0, %v1381
  %v1383 = vpop.f32.mrf.mxu0
  %v1384 = vadd.f32 0.0, %v1383
  %1385 = vmatprep.mubr.bf16.mxu0 0
  %1386 = vmatmul.mubr.bf16.gmra.mxu0 %v890
  %v1387 = vpop.f32.mrf.mxu0
  %v1388 = vadd.f32 0.0, %v1387
  %v1389 = vpop.f32.mrf.mxu0
  %v1390 = vadd.f32 0.0, %v1389
  %v1391 = vpop.f32.mrf.mxu0
  %v1392 = vadd.f32 0.0, %v1391
  %v1393 = vpop.f32.mrf.mxu0
  %v1394 = vadd.f32 0.0, %v1393
  %1395 = vmatprep.mubr.bf16.mxu0 0
  %1396 = vmatmul.mubr.bf16.gmra.mxu0 %v891
  %v1397 = vpop.f32.mrf.mxu0
  %v1398 = vadd.f32 0.0, %v1397
  %v1399 = vpop.f32.mrf.mxu0
  %v1400 = vadd.f32 0.0, %v1399
  %v1401 = vpop.f32.mrf.mxu0
  %v1402 = vadd.f32 0.0, %v1401
  %v1403 = vpop.f32.mrf.mxu0
  %v1404 = vadd.f32 0.0, %v1403
  %1405 = vmatprep.mubr.bf16.mxu0 0
  %1406 = vmatmul.mubr.bf16.gmra.mxu0 %v892
  %v1407 = vpop.f32.mrf.mxu0
  %v1408 = vadd.f32 0.0, %v1407
  %v1409 = vpop.f32.mrf.mxu0
  %v1410 = vadd.f32 0.0, %v1409
  %v1411 = vpop.f32.mrf.mxu0
  %v1412 = vadd.f32 0.0, %v1411
  %v1413 = vpop.f32.mrf.mxu0
  %v1414 = vadd.f32 0.0, %v1413
  %1415 = vmatprep.mubr.bf16.mxu0 0
  %1416 = vmatmul.mubr.bf16.gmra.mxu0 %v893
  %v1417 = vpop.f32.mrf.mxu0
  %v1418 = vadd.f32 0.0, %v1417
  %v1419 = vpop.f32.mrf.mxu0
  %v1420 = vadd.f32 0.0, %v1419
  %v1421 = vpop.f32.mrf.mxu0
  %v1422 = vadd.f32 0.0, %v1421
  %v1423 = vpop.f32.mrf.mxu0
  %v1424 = vadd.f32 0.0, %v1423
  %1425 = vmatprep.mubr.bf16.mxu0 0
  %1426 = vmatmul.mubr.bf16.gmra.mxu0 %v894
  %v1427 = vpop.f32.mrf.mxu0
  %v1428 = vadd.f32 0.0, %v1427
  %v1429 = vpop.f32.mrf.mxu0
  %v1430 = vadd.f32 0.0, %v1429
  %v1431 = vpop.f32.mrf.mxu0
  %v1432 = vadd.f32 0.0, %v1431
  %v1433 = vpop.f32.mrf.mxu0
  %v1434 = vadd.f32 0.0, %v1433
  %1435 = vmatprep.mubr.bf16.mxu0 0
  %1436 = vmatmul.mubr.bf16.gmra.mxu0 %v895
  %v1437 = vpop.f32.mrf.mxu0
  %v1438 = vadd.f32 0.0, %v1437
  %v1439 = vpop.f32.mrf.mxu0
  %v1440 = vadd.f32 0.0, %v1439
  %v1441 = vpop.f32.mrf.mxu0
  %v1442 = vadd.f32 0.0, %v1441
  %v1443 = vpop.f32.mrf.mxu0
  %v1444 = vadd.f32 0.0, %v1443
  %1445 = vmatprep.mubr.bf16.mxu0 0
  %1446 = vmatmul.mubr.bf16.gmra.mxu0 %v896
  %v1447 = vpop.f32.mrf.mxu0
  %v1448 = vadd.f32 0.0, %v1447
  %v1449 = vpop.f32.mrf.mxu0
  %v1450 = vadd.f32 0.0, %v1449
  %v1451 = vpop.f32.mrf.mxu0
  %v1452 = vadd.f32 0.0, %v1451
  %v1453 = vpop.f32.mrf.mxu0
  %v1454 = vadd.f32 0.0, %v1453
  %1455 = vmatprep.mubr.bf16.mxu0 0
  %1456 = vmatmul.mubr.bf16.gmra.mxu0 %v897
  %v1457 = vpop.f32.mrf.mxu0
  %v1458 = vadd.f32 0.0, %v1457
  %v1459 = vpop.f32.mrf.mxu0
  %v1460 = vadd.f32 0.0, %v1459
  %v1461 = vpop.f32.mrf.mxu0
  %v1462 = vadd.f32 0.0, %v1461
  %v1463 = vpop.f32.mrf.mxu0
  %v1464 = vadd.f32 0.0, %v1463
  %1465 = vmatprep.mubr.bf16.mxu0 0
  %1466 = vmatmul.mubr.bf16.gmra.mxu0 %v898
  %v1467 = vpop.f32.mrf.mxu0
  %v1468 = vadd.f32 0.0, %v1467
  %v1469 = vpop.f32.mrf.mxu0
  %v1470 = vadd.f32 0.0, %v1469
  %v1471 = vpop.f32.mrf.mxu0
  %v1472 = vadd.f32 0.0, %v1471
  %v1473 = vpop.f32.mrf.mxu0
  %v1474 = vadd.f32 0.0, %v1473
  %1475 = vdwg.mxu0
  %1476 = vmatprep.subr.bf16.mxu0 %v1214
  %1477 = vmatpush1.bf16.msra.mxu0 %v1213
  %1478 = vmatprep.subr.bf16.mxu0 %v1206
  %1479 = vmatpush1.bf16.msra.mxu0 %v1205
  %1480 = vmatprep.subr.bf16.mxu0 %v1198
  %1481 = vmatpush1.bf16.msra.mxu0 %v1197
  %1482 = vmatprep.subr.bf16.mxu0 %v1190
  %1483 = vmatpush1.bf16.msra.mxu0 %v1189
  %1484 = vmatprep.subr.bf16.mxu0 %v1182
  %1485 = vmatpush1.bf16.msra.mxu0 %v1181
  %1486 = vmatprep.subr.bf16.mxu0 %v1174
  %1487 = vmatpush1.bf16.msra.mxu0 %v1173
  %1488 = vmatprep.subr.bf16.mxu0 %v1166
  %1489 = vmatpush1.bf16.msra.mxu0 %v1165
  %1490 = vmatprep.subr.bf16.mxu0 %v1158
  %1491 = vmatpush1.bf16.msra.mxu0 %v1157
  %1492 = vmatprep.subr.bf16.mxu0 0
  %1493 = vmatpush2.bf16.msra.mxu0 0
  %1494 = vmatprep.subr.bf16.mxu0 0
  %1495 = vmatpush2.bf16.msra.mxu0 0
  %1496 = vmatprep.subr.bf16.mxu0 0
  %1497 = vmatpush2.bf16.msra.mxu0 0
  %1498 = vmatprep.subr.bf16.mxu0 0
  %1499 = vmatpush2.bf16.msra.mxu0 0
  %1500 = vmatprep.subr.bf16.mxu0 0
  %1501 = vmatpush2.bf16.msra.mxu0 0
  %1502 = vmatprep.subr.bf16.mxu0 0
  %1503 = vmatpush2.bf16.msra.mxu0 0
  %1504 = vmatprep.subr.bf16.mxu0 0
  %1505 = vmatpush2.bf16.msra.mxu0 0
  %1506 = vmatprep.subr.bf16.mxu0 0
  %1507 = vmatpush2.bf16.msra.mxu0 0
  %1508 = vmatprep.mubr.bf16.mxu0 0
  %1509 = vmatmul.mubr.bf16.gmra.mxu0 %v883
  %v1510 = vpop.f32.mrf.mxu0
  %v1511 = vadd.f32 0.0, %v1510
  %v1512 = vpop.f32.mrf.mxu0
  %v1513 = vadd.f32 0.0, %v1512
  %v1514 = vpop.f32.mrf.mxu0
  %v1515 = vadd.f32 0.0, %v1514
  %v1516 = vpop.f32.mrf.mxu0
  %v1517 = vadd.f32 0.0, %v1516
  %1518 = vmatprep.mubr.bf16.mxu0 0
  %1519 = vmatmul.mubr.bf16.gmra.mxu0 %v884
  %v1520 = vpop.f32.mrf.mxu0
  %v1521 = vadd.f32 0.0, %v1520
  %v1522 = vpop.f32.mrf.mxu0
  %v1523 = vadd.f32 0.0, %v1522
  %v1524 = vpop.f32.mrf.mxu0
  %v1525 = vadd.f32 0.0, %v1524
  %v1526 = vpop.f32.mrf.mxu0
  %v1527 = vadd.f32 0.0, %v1526
  %1528 = vmatprep.mubr.bf16.mxu0 0
  %1529 = vmatmul.mubr.bf16.gmra.mxu0 %v885
  %v1530 = vpop.f32.mrf.mxu0
  %v1531 = vadd.f32 0.0, %v1530
  %v1532 = vpop.f32.mrf.mxu0
  %v1533 = vadd.f32 0.0, %v1532
  %v1534 = vpop.f32.mrf.mxu0
  %v1535 = vadd.f32 0.0, %v1534
  %v1536 = vpop.f32.mrf.mxu0
  %v1537 = vadd.f32 0.0, %v1536
  %1538 = vmatprep.mubr.bf16.mxu0 0
  %1539 = vmatmul.mubr.bf16.gmra.mxu0 %v886
  %v1540 = vpop.f32.mrf.mxu0
  %v1541 = vadd.f32 0.0, %v1540
  %v1542 = vpop.f32.mrf.mxu0
  %v1543 = vadd.f32 0.0, %v1542
  %v1544 = vpop.f32.mrf.mxu0
  %v1545 = vadd.f32 0.0, %v1544
  %v1546 = vpop.f32.mrf.mxu0
  %v1547 = vadd.f32 0.0, %v1546
  %1548 = vmatprep.mubr.bf16.mxu0 0
  %1549 = vmatmul.mubr.bf16.gmra.mxu0 %v887
  %v1550 = vpop.f32.mrf.mxu0
  %v1551 = vadd.f32 0.0, %v1550
  %v1552 = vpop.f32.mrf.mxu0
  %v1553 = vadd.f32 0.0, %v1552
  %v1554 = vpop.f32.mrf.mxu0
  %v1555 = vadd.f32 0.0, %v1554
  %v1556 = vpop.f32.mrf.mxu0
  %v1557 = vadd.f32 0.0, %v1556
  %1558 = vmatprep.mubr.bf16.mxu0 0
  %1559 = vmatmul.mubr.bf16.gmra.mxu0 %v888
  %v1560 = vpop.f32.mrf.mxu0
  %v1561 = vadd.f32 0.0, %v1560
  %v1562 = vpop.f32.mrf.mxu0
  %v1563 = vadd.f32 0.0, %v1562
  %v1564 = vpop.f32.mrf.mxu0
  %v1565 = vadd.f32 0.0, %v1564
  %v1566 = vpop.f32.mrf.mxu0
  %v1567 = vadd.f32 0.0, %v1566
  %1568 = vmatprep.mubr.bf16.mxu0 0
  %1569 = vmatmul.mubr.bf16.gmra.mxu0 %v889
  %v1570 = vpop.f32.mrf.mxu0
  %v1571 = vadd.f32 0.0, %v1570
  %v1572 = vpop.f32.mrf.mxu0
  %v1573 = vadd.f32 0.0, %v1572
  %v1574 = vpop.f32.mrf.mxu0
  %v1575 = vadd.f32 0.0, %v1574
  %v1576 = vpop.f32.mrf.mxu0
  %v1577 = vadd.f32 0.0, %v1576
  %1578 = vmatprep.mubr.bf16.mxu0 0
  %1579 = vmatmul.mubr.bf16.gmra.mxu0 %v890
  %v1580 = vpop.f32.mrf.mxu0
  %v1581 = vadd.f32 0.0, %v1580
  %v1582 = vpop.f32.mrf.mxu0
  %v1583 = vadd.f32 0.0, %v1582
  %v1584 = vpop.f32.mrf.mxu0
  %v1585 = vadd.f32 0.0, %v1584
  %v1586 = vpop.f32.mrf.mxu0
  %v1587 = vadd.f32 0.0, %v1586
  %1588 = vmatprep.mubr.bf16.mxu0 0
  %1589 = vmatmul.mubr.bf16.gmra.mxu0 %v891
  %v1590 = vpop.f32.mrf.mxu0
  %v1591 = vadd.f32 0.0, %v1590
  %v1592 = vpop.f32.mrf.mxu0
  %v1593 = vadd.f32 0.0, %v1592
  %v1594 = vpop.f32.mrf.mxu0
  %v1595 = vadd.f32 0.0, %v1594
  %v1596 = vpop.f32.mrf.mxu0
  %v1597 = vadd.f32 0.0, %v1596
  %1598 = vmatprep.mubr.bf16.mxu0 0
  %1599 = vmatmul.mubr.bf16.gmra.mxu0 %v892
  %v1600 = vpop.f32.mrf.mxu0
  %v1601 = vadd.f32 0.0, %v1600
  %v1602 = vpop.f32.mrf.mxu0
  %v1603 = vadd.f32 0.0, %v1602
  %v1604 = vpop.f32.mrf.mxu0
  %v1605 = vadd.f32 0.0, %v1604
  %v1606 = vpop.f32.mrf.mxu0
  %v1607 = vadd.f32 0.0, %v1606
  %1608 = vmatprep.mubr.bf16.mxu0 0
  %1609 = vmatmul.mubr.bf16.gmra.mxu0 %v893
  %v1610 = vpop.f32.mrf.mxu0
  %v1611 = vadd.f32 0.0, %v1610
  %v1612 = vpop.f32.mrf.mxu0
  %v1613 = vadd.f32 0.0, %v1612
  %v1614 = vpop.f32.mrf.mxu0
  %v1615 = vadd.f32 0.0, %v1614
  %v1616 = vpop.f32.mrf.mxu0
  %v1617 = vadd.f32 0.0, %v1616
  %1618 = vmatprep.mubr.bf16.mxu0 0
  %1619 = vmatmul.mubr.bf16.gmra.mxu0 %v894
  %v1620 = vpop.f32.mrf.mxu0
  %v1621 = vadd.f32 0.0, %v1620
  %v1622 = vpop.f32.mrf.mxu0
  %v1623 = vadd.f32 0.0, %v1622
  %v1624 = vpop.f32.mrf.mxu0
  %v1625 = vadd.f32 0.0, %v1624
  %v1626 = vpop.f32.mrf.mxu0
  %v1627 = vadd.f32 0.0, %v1626
  %1628 = vmatprep.mubr.bf16.mxu0 0
  %1629 = vmatmul.mubr.bf16.gmra.mxu0 %v895
  %v1630 = vpop.f32.mrf.mxu0
  %v1631 = vadd.f32 0.0, %v1630
  %v1632 = vpop.f32.mrf.mxu0
  %v1633 = vadd.f32 0.0, %v1632
  %v1634 = vpop.f32.mrf.mxu0
  %v1635 = vadd.f32 0.0, %v1634
  %v1636 = vpop.f32.mrf.mxu0
  %v1637 = vadd.f32 0.0, %v1636
  %1638 = vmatprep.mubr.bf16.mxu0 0
  %1639 = vmatmul.mubr.bf16.gmra.mxu0 %v896
  %v1640 = vpop.f32.mrf.mxu0
  %v1641 = vadd.f32 0.0, %v1640
  %v1642 = vpop.f32.mrf.mxu0
  %v1643 = vadd.f32 0.0, %v1642
  %v1644 = vpop.f32.mrf.mxu0
  %v1645 = vadd.f32 0.0, %v1644
  %v1646 = vpop.f32.mrf.mxu0
  %v1647 = vadd.f32 0.0, %v1646
  %1648 = vmatprep.mubr.bf16.mxu0 0
  %1649 = vmatmul.mubr.bf16.gmra.mxu0 %v897
  %v1650 = vpop.f32.mrf.mxu0
  %v1651 = vadd.f32 0.0, %v1650
  %v1652 = vpop.f32.mrf.mxu0
  %v1653 = vadd.f32 0.0, %v1652
  %v1654 = vpop.f32.mrf.mxu0
  %v1655 = vadd.f32 0.0, %v1654
  %v1656 = vpop.f32.mrf.mxu0
  %v1657 = vadd.f32 0.0, %v1656
  %1658 = vmatprep.mubr.bf16.mxu0 0
  %1659 = vmatmul.mubr.bf16.gmra.mxu0 %v898
  %v1660 = vpop.f32.mrf.mxu0
  %v1661 = vadd.f32 0.0, %v1660
  %v1662 = vpop.f32.mrf.mxu0
  %v1663 = vadd.f32 0.0, %v1662
  %v1664 = vpop.f32.mrf.mxu0
  %v1665 = vadd.f32 0.0, %v1664
  %v1666 = vpop.f32.mrf.mxu0
  %v1667 = vadd.f32 0.0, %v1666
  %1668 = vdwg.mxu0
  %1669 = vmatprep.subr.bf16.mxu0 %v1216
  %1670 = vmatpush1.bf16.msra.mxu0 %v1215
  %1671 = vmatprep.subr.bf16.mxu0 %v1208
  %1672 = vmatpush1.bf16.msra.mxu0 %v1207
  %1673 = vmatprep.subr.bf16.mxu0 %v1200
  %1674 = vmatpush1.bf16.msra.mxu0 %v1199
  %1675 = vmatprep.subr.bf16.mxu0 %v1192
  %1676 = vmatpush1.bf16.msra.mxu0 %v1191
  %1677 = vmatprep.subr.bf16.mxu0 %v1184
  %1678 = vmatpush1.bf16.msra.mxu0 %v1183
  %1679 = vmatprep.subr.bf16.mxu0 %v1176
  %1680 = vmatpush1.bf16.msra.mxu0 %v1175
  %1681 = vmatprep.subr.bf16.mxu0 %v1168
  %1682 = vmatpush1.bf16.msra.mxu0 %v1167
  %1683 = vmatprep.subr.bf16.mxu0 %v1160
  %1684 = vmatpush1.bf16.msra.mxu0 %v1159
  %1685 = vmatprep.subr.bf16.mxu0 0
  %1686 = vmatpush2.bf16.msra.mxu0 0
  %1687 = vmatprep.subr.bf16.mxu0 0
  %1688 = vmatpush2.bf16.msra.mxu0 0
  %1689 = vmatprep.subr.bf16.mxu0 0
  %1690 = vmatpush2.bf16.msra.mxu0 0
  %1691 = vmatprep.subr.bf16.mxu0 0
  %1692 = vmatpush2.bf16.msra.mxu0 0
  %1693 = vmatprep.subr.bf16.mxu0 0
  %1694 = vmatpush2.bf16.msra.mxu0 0
  %1695 = vmatprep.subr.bf16.mxu0 0
  %1696 = vmatpush2.bf16.msra.mxu0 0
  %1697 = vmatprep.subr.bf16.mxu0 0
  %1698 = vmatpush2.bf16.msra.mxu0 0
  %1699 = vmatprep.subr.bf16.mxu0 0
  %1700 = vmatpush2.bf16.msra.mxu0 0
  %1701 = vmatprep.mubr.bf16.mxu0 0
  %1702 = vmatmul.mubr.bf16.gmra.mxu0 %v883
  %v1703 = vpop.f32.mrf.mxu0
  %v1704 = vadd.f32 0.0, %v1703
  %v1705 = vpop.f32.mrf.mxu0
  %v1706 = vadd.f32 0.0, %v1705
  %v1707 = vpop.f32.mrf.mxu0
  %v1708 = vadd.f32 0.0, %v1707
  %v1709 = vpop.f32.mrf.mxu0
  %v1710 = vadd.f32 0.0, %v1709
  %1711 = vmatprep.mubr.bf16.mxu0 0
  %1712 = vmatmul.mubr.bf16.gmra.mxu0 %v884
  %v1713 = vpop.f32.mrf.mxu0
  %v1714 = vadd.f32 0.0, %v1713
  %v1715 = vpop.f32.mrf.mxu0
  %v1716 = vadd.f32 0.0, %v1715
  %v1717 = vpop.f32.mrf.mxu0
  %v1718 = vadd.f32 0.0, %v1717
  %v1719 = vpop.f32.mrf.mxu0
  %v1720 = vadd.f32 0.0, %v1719
  %1721 = vmatprep.mubr.bf16.mxu0 0
  %1722 = vmatmul.mubr.bf16.gmra.mxu0 %v885
  %v1723 = vpop.f32.mrf.mxu0
  %v1724 = vadd.f32 0.0, %v1723
  %v1725 = vpop.f32.mrf.mxu0
  %v1726 = vadd.f32 0.0, %v1725
  %v1727 = vpop.f32.mrf.mxu0
  %v1728 = vadd.f32 0.0, %v1727
  %v1729 = vpop.f32.mrf.mxu0
  %v1730 = vadd.f32 0.0, %v1729
  %1731 = vmatprep.mubr.bf16.mxu0 0
  %1732 = vmatmul.mubr.bf16.gmra.mxu0 %v886
  %v1733 = vpop.f32.mrf.mxu0
  %v1734 = vadd.f32 0.0, %v1733
  %v1735 = vpop.f32.mrf.mxu0
  %v1736 = vadd.f32 0.0, %v1735
  %v1737 = vpop.f32.mrf.mxu0
  %v1738 = vadd.f32 0.0, %v1737
  %v1739 = vpop.f32.mrf.mxu0
  %v1740 = vadd.f32 0.0, %v1739
  %1741 = vmatprep.mubr.bf16.mxu0 0
  %1742 = vmatmul.mubr.bf16.gmra.mxu0 %v887
  %v1743 = vpop.f32.mrf.mxu0
  %v1744 = vadd.f32 0.0, %v1743
  %v1745 = vpop.f32.mrf.mxu0
  %v1746 = vadd.f32 0.0, %v1745
  %v1747 = vpop.f32.mrf.mxu0
  %v1748 = vadd.f32 0.0, %v1747
  %v1749 = vpop.f32.mrf.mxu0
  %v1750 = vadd.f32 0.0, %v1749
  %1751 = vmatprep.mubr.bf16.mxu0 0
  %1752 = vmatmul.mubr.bf16.gmra.mxu0 %v888
  %v1753 = vpop.f32.mrf.mxu0
  %v1754 = vadd.f32 0.0, %v1753
  %v1755 = vpop.f32.mrf.mxu0
  %v1756 = vadd.f32 0.0, %v1755
  %v1757 = vpop.f32.mrf.mxu0
  %v1758 = vadd.f32 0.0, %v1757
  %v1759 = vpop.f32.mrf.mxu0
  %v1760 = vadd.f32 0.0, %v1759
  %1761 = vmatprep.mubr.bf16.mxu0 0
  %1762 = vmatmul.mubr.bf16.gmra.mxu0 %v889
  %v1763 = vpop.f32.mrf.mxu0
  %v1764 = vadd.f32 0.0, %v1763
  %v1765 = vpop.f32.mrf.mxu0
  %v1766 = vadd.f32 0.0, %v1765
  %v1767 = vpop.f32.mrf.mxu0
  %v1768 = vadd.f32 0.0, %v1767
  %v1769 = vpop.f32.mrf.mxu0
  %v1770 = vadd.f32 0.0, %v1769
  %1771 = vmatprep.mubr.bf16.mxu0 0
  %1772 = vmatmul.mubr.bf16.gmra.mxu0 %v890
  %v1773 = vpop.f32.mrf.mxu0
  %v1774 = vadd.f32 0.0, %v1773
  %v1775 = vpop.f32.mrf.mxu0
  %v1776 = vadd.f32 0.0, %v1775
  %v1777 = vpop.f32.mrf.mxu0
  %v1778 = vadd.f32 0.0, %v1777
  %v1779 = vpop.f32.mrf.mxu0
  %v1780 = vadd.f32 0.0, %v1779
  %1781 = vmatprep.mubr.bf16.mxu0 0
  %1782 = vmatmul.mubr.bf16.gmra.mxu0 %v891
  %v1783 = vpop.f32.mrf.mxu0
  %v1784 = vadd.f32 0.0, %v1783
  %v1785 = vpop.f32.mrf.mxu0
  %v1786 = vadd.f32 0.0, %v1785
  %v1787 = vpop.f32.mrf.mxu0
  %v1788 = vadd.f32 0.0, %v1787
  %v1789 = vpop.f32.mrf.mxu0
  %v1790 = vadd.f32 0.0, %v1789
  %1791 = vmatprep.mubr.bf16.mxu0 0
  %1792 = vmatmul.mubr.bf16.gmra.mxu0 %v892
  %v1793 = vpop.f32.mrf.mxu0
  %v1794 = vadd.f32 0.0, %v1793
  %v1795 = vpop.f32.mrf.mxu0
  %v1796 = vadd.f32 0.0, %v1795
  %v1797 = vpop.f32.mrf.mxu0
  %v1798 = vadd.f32 0.0, %v1797
  %v1799 = vpop.f32.mrf.mxu0
  %v1800 = vadd.f32 0.0, %v1799
  %1801 = vmatprep.mubr.bf16.mxu0 0
  %1802 = vmatmul.mubr.bf16.gmra.mxu0 %v893
  %v1803 = vpop.f32.mrf.mxu0
  %v1804 = vadd.f32 0.0, %v1803
  %v1805 = vpop.f32.mrf.mxu0
  %v1806 = vadd.f32 0.0, %v1805
  %v1807 = vpop.f32.mrf.mxu0
  %v1808 = vadd.f32 0.0, %v1807
  %v1809 = vpop.f32.mrf.mxu0
  %v1810 = vadd.f32 0.0, %v1809
  %1811 = vmatprep.mubr.bf16.mxu0 0
  %1812 = vmatmul.mubr.bf16.gmra.mxu0 %v894
  %v1813 = vpop.f32.mrf.mxu0
  %v1814 = vadd.f32 0.0, %v1813
  %v1815 = vpop.f32.mrf.mxu0
  %v1816 = vadd.f32 0.0, %v1815
  %v1817 = vpop.f32.mrf.mxu0
  %v1818 = vadd.f32 0.0, %v1817
  %v1819 = vpop.f32.mrf.mxu0
  %v1820 = vadd.f32 0.0, %v1819
  %1821 = vmatprep.mubr.bf16.mxu0 0
  %1822 = vmatmul.mubr.bf16.gmra.mxu0 %v895
  %v1823 = vpop.f32.mrf.mxu0
  %v1824 = vadd.f32 0.0, %v1823
  %v1825 = vpop.f32.mrf.mxu0
  %v1826 = vadd.f32 0.0, %v1825
  %v1827 = vpop.f32.mrf.mxu0
  %v1828 = vadd.f32 0.0, %v1827
  %v1829 = vpop.f32.mrf.mxu0
  %v1830 = vadd.f32 0.0, %v1829
  %1831 = vmatprep.mubr.bf16.mxu0 0
  %1832 = vmatmul.mubr.bf16.gmra.mxu0 %v896
  %v1833 = vpop.f32.mrf.mxu0
  %v1834 = vadd.f32 0.0, %v1833
  %v1835 = vpop.f32.mrf.mxu0
  %v1836 = vadd.f32 0.0, %v1835
  %v1837 = vpop.f32.mrf.mxu0
  %v1838 = vadd.f32 0.0, %v1837
  %v1839 = vpop.f32.mrf.mxu0
  %v1840 = vadd.f32 0.0, %v1839
  %1841 = vmatprep.mubr.bf16.mxu0 0
  %1842 = vmatmul.mubr.bf16.gmra.mxu0 %v897
  %v1843 = vpop.f32.mrf.mxu0
  %v1844 = vadd.f32 0.0, %v1843
  %v1845 = vpop.f32.mrf.mxu0
  %v1846 = vadd.f32 0.0, %v1845
  %v1847 = vpop.f32.mrf.mxu0
  %v1848 = vadd.f32 0.0, %v1847
  %v1849 = vpop.f32.mrf.mxu0
  %v1850 = vadd.f32 0.0, %v1849
  %1851 = vmatprep.mubr.bf16.mxu0 0
  %1852 = vmatmul.mubr.bf16.gmra.mxu0 %v898
  %v1853 = vpop.f32.mrf.mxu0
  %v1854 = vadd.f32 0.0, %v1853
  %v1855 = vpop.f32.mrf.mxu0
  %v1856 = vadd.f32 0.0, %v1855
  %v1857 = vpop.f32.mrf.mxu0
  %v1858 = vadd.f32 0.0, %v1857
  %v1859 = vpop.f32.mrf.mxu0
  %v1860 = vadd.f32 0.0, %v1859
  %1861 = vdwg.mxu0
  %1862 = vmatprep.subr.bf16.mxu0 %v1218
  %1863 = vmatpush1.bf16.msra.mxu0 %v1217
  %1864 = vmatprep.subr.bf16.mxu0 %v1210
  %1865 = vmatpush1.bf16.msra.mxu0 %v1209
  %1866 = vmatprep.subr.bf16.mxu0 %v1202
  %1867 = vmatpush1.bf16.msra.mxu0 %v1201
  %1868 = vmatprep.subr.bf16.mxu0 %v1194
  %1869 = vmatpush1.bf16.msra.mxu0 %v1193
  %1870 = vmatprep.subr.bf16.mxu0 %v1186
  %1871 = vmatpush1.bf16.msra.mxu0 %v1185
  %1872 = vmatprep.subr.bf16.mxu0 %v1178
  %1873 = vmatpush1.bf16.msra.mxu0 %v1177
  %1874 = vmatprep.subr.bf16.mxu0 %v1170
  %1875 = vmatpush1.bf16.msra.mxu0 %v1169
  %1876 = vmatprep.subr.bf16.mxu0 %v1162
  %1877 = vmatpush1.bf16.msra.mxu0 %v1161
  %1878 = vmatprep.subr.bf16.mxu0 0
  %1879 = vmatpush2.bf16.msra.mxu0 0
  %1880 = vmatprep.subr.bf16.mxu0 0
  %1881 = vmatpush2.bf16.msra.mxu0 0
  %1882 = vmatprep.subr.bf16.mxu0 0
  %1883 = vmatpush2.bf16.msra.mxu0 0
  %1884 = vmatprep.subr.bf16.mxu0 0
  %1885 = vmatpush2.bf16.msra.mxu0 0
  %1886 = vmatprep.subr.bf16.mxu0 0
  %1887 = vmatpush2.bf16.msra.mxu0 0
  %1888 = vmatprep.subr.bf16.mxu0 0
  %1889 = vmatpush2.bf16.msra.mxu0 0
  %1890 = vmatprep.subr.bf16.mxu0 0
  %1891 = vmatpush2.bf16.msra.mxu0 0
  %1892 = vmatprep.subr.bf16.mxu0 0
  %1893 = vmatpush2.bf16.msra.mxu0 0
  %1894 = vmatprep.mubr.bf16.mxu0 0
  %1895 = vmatmul.mubr.bf16.gmra.mxu0 %v883
  %v1896 = vpop.f32.mrf.mxu0
  %v1897 = vadd.f32 0.0, %v1896
  %v1898 = vpop.f32.mrf.mxu0
  %v1899 = vadd.f32 0.0, %v1898
  %v1900 = vpop.f32.mrf.mxu0
  %v1901 = vadd.f32 0.0, %v1900
  %v1902 = vpop.f32.mrf.mxu0
  %v1903 = vadd.f32 0.0, %v1902
  %1904 = vmatprep.mubr.bf16.mxu0 0
  %1905 = vmatmul.mubr.bf16.gmra.mxu0 %v884
  %v1906 = vpop.f32.mrf.mxu0
  %v1907 = vadd.f32 0.0, %v1906
  %v1908 = vpop.f32.mrf.mxu0
  %v1909 = vadd.f32 0.0, %v1908
  %v1910 = vpop.f32.mrf.mxu0
  %v1911 = vadd.f32 0.0, %v1910
  %v1912 = vpop.f32.mrf.mxu0
  %v1913 = vadd.f32 0.0, %v1912
  %1914 = vmatprep.mubr.bf16.mxu0 0
  %1915 = vmatmul.mubr.bf16.gmra.mxu0 %v885
  %v1916 = vpop.f32.mrf.mxu0
  %v1917 = vadd.f32 0.0, %v1916
  %v1918 = vpop.f32.mrf.mxu0
  %v1919 = vadd.f32 0.0, %v1918
  %v1920 = vpop.f32.mrf.mxu0
  %v1921 = vadd.f32 0.0, %v1920
  %v1922 = vpop.f32.mrf.mxu0
  %v1923 = vadd.f32 0.0, %v1922
  %1924 = vmatprep.mubr.bf16.mxu0 0
  %1925 = vmatmul.mubr.bf16.gmra.mxu0 %v886
  %v1926 = vpop.f32.mrf.mxu0
  %v1927 = vadd.f32 0.0, %v1926
  %v1928 = vpop.f32.mrf.mxu0
  %v1929 = vadd.f32 0.0, %v1928
  %v1930 = vpop.f32.mrf.mxu0
  %v1931 = vadd.f32 0.0, %v1930
  %v1932 = vpop.f32.mrf.mxu0
  %v1933 = vadd.f32 0.0, %v1932
  %1934 = vmatprep.mubr.bf16.mxu0 0
  %1935 = vmatmul.mubr.bf16.gmra.mxu0 %v887
  %v1936 = vpop.f32.mrf.mxu0
  %v1937 = vadd.f32 0.0, %v1936
  %v1938 = vpop.f32.mrf.mxu0
  %v1939 = vadd.f32 0.0, %v1938
  %v1940 = vpop.f32.mrf.mxu0
  %v1941 = vadd.f32 0.0, %v1940
  %v1942 = vpop.f32.mrf.mxu0
  %v1943 = vadd.f32 0.0, %v1942
  %1944 = vmatprep.mubr.bf16.mxu0 0
  %1945 = vmatmul.mubr.bf16.gmra.mxu0 %v888
  %v1946 = vpop.f32.mrf.mxu0
  %v1947 = vadd.f32 0.0, %v1946
  %v1948 = vpop.f32.mrf.mxu0
  %v1949 = vadd.f32 0.0, %v1948
  %v1950 = vpop.f32.mrf.mxu0
  %v1951 = vadd.f32 0.0, %v1950
  %v1952 = vpop.f32.mrf.mxu0
  %v1953 = vadd.f32 0.0, %v1952
  %1954 = vmatprep.mubr.bf16.mxu0 0
  %1955 = vmatmul.mubr.bf16.gmra.mxu0 %v889
  %v1956 = vpop.f32.mrf.mxu0
  %v1957 = vadd.f32 0.0, %v1956
  %v1958 = vpop.f32.mrf.mxu0
  %v1959 = vadd.f32 0.0, %v1958
  %v1960 = vpop.f32.mrf.mxu0
  %v1961 = vadd.f32 0.0, %v1960
  %v1962 = vpop.f32.mrf.mxu0
  %v1963 = vadd.f32 0.0, %v1962
  %1964 = vmatprep.mubr.bf16.mxu0 0
  %1965 = vmatmul.mubr.bf16.gmra.mxu0 %v890
  %v1966 = vpop.f32.mrf.mxu0
  %v1967 = vadd.f32 0.0, %v1966
  %v1968 = vpop.f32.mrf.mxu0
  %v1969 = vadd.f32 0.0, %v1968
  %v1970 = vpop.f32.mrf.mxu0
  %v1971 = vadd.f32 0.0, %v1970
  %v1972 = vpop.f32.mrf.mxu0
  %v1973 = vadd.f32 0.0, %v1972
  %1974 = vmatprep.mubr.bf16.mxu0 0
  %1975 = vmatmul.mubr.bf16.gmra.mxu0 %v891
  %v1976 = vpop.f32.mrf.mxu0
  %v1977 = vadd.f32 0.0, %v1976
  %v1978 = vpop.f32.mrf.mxu0
  %v1979 = vadd.f32 0.0, %v1978
  %v1980 = vpop.f32.mrf.mxu0
  %v1981 = vadd.f32 0.0, %v1980
  %v1982 = vpop.f32.mrf.mxu0
  %v1983 = vadd.f32 0.0, %v1982
  %1984 = vmatprep.mubr.bf16.mxu0 0
  %1985 = vmatmul.mubr.bf16.gmra.mxu0 %v892
  %v1986 = vpop.f32.mrf.mxu0
  %v1987 = vadd.f32 0.0, %v1986
  %v1988 = vpop.f32.mrf.mxu0
  %v1989 = vadd.f32 0.0, %v1988
  %v1990 = vpop.f32.mrf.mxu0
  %v1991 = vadd.f32 0.0, %v1990
  %v1992 = vpop.f32.mrf.mxu0
  %v1993 = vadd.f32 0.0, %v1992
  %1994 = vmatprep.mubr.bf16.mxu0 0
  %1995 = vmatmul.mubr.bf16.gmra.mxu0 %v893
  %v1996 = vpop.f32.mrf.mxu0
  %v1997 = vadd.f32 0.0, %v1996
  %v1998 = vpop.f32.mrf.mxu0
  %v1999 = vadd.f32 0.0, %v1998
  %v2000 = vpop.f32.mrf.mxu0
  %v2001 = vadd.f32 0.0, %v2000
  %v2002 = vpop.f32.mrf.mxu0
  %v2003 = vadd.f32 0.0, %v2002
  %2004 = vmatprep.mubr.bf16.mxu0 0
  %2005 = vmatmul.mubr.bf16.gmra.mxu0 %v894
  %v2006 = vpop.f32.mrf.mxu0
  %v2007 = vadd.f32 0.0, %v2006
  %v2008 = vpop.f32.mrf.mxu0
  %v2009 = vadd.f32 0.0, %v2008
  %v2010 = vpop.f32.mrf.mxu0
  %v2011 = vadd.f32 0.0, %v2010
  %v2012 = vpop.f32.mrf.mxu0
  %v2013 = vadd.f32 0.0, %v2012
  %2014 = vmatprep.mubr.bf16.mxu0 0
  %2015 = vmatmul.mubr.bf16.gmra.mxu0 %v895
  %v2016 = vpop.f32.mrf.mxu0
  %v2017 = vadd.f32 0.0, %v2016
  %v2018 = vpop.f32.mrf.mxu0
  %v2019 = vadd.f32 0.0, %v2018
  %v2020 = vpop.f32.mrf.mxu0
  %v2021 = vadd.f32 0.0, %v2020
  %v2022 = vpop.f32.mrf.mxu0
  %v2023 = vadd.f32 0.0, %v2022
  %2024 = vmatprep.mubr.bf16.mxu0 0
  %2025 = vmatmul.mubr.bf16.gmra.mxu0 %v896
  %v2026 = vpop.f32.mrf.mxu0
  %v2027 = vadd.f32 0.0, %v2026
  %v2028 = vpop.f32.mrf.mxu0
  %v2029 = vadd.f32 0.0, %v2028
  %v2030 = vpop.f32.mrf.mxu0
  %v2031 = vadd.f32 0.0, %v2030
  %v2032 = vpop.f32.mrf.mxu0
  %v2033 = vadd.f32 0.0, %v2032
  %2034 = vmatprep.mubr.bf16.mxu0 0
  %2035 = vmatmul.mubr.bf16.gmra.mxu0 %v897
  %v2036 = vpop.f32.mrf.mxu0
  %v2037 = vadd.f32 0.0, %v2036
  %v2038 = vpop.f32.mrf.mxu0
  %v2039 = vadd.f32 0.0, %v2038
  %v2040 = vpop.f32.mrf.mxu0
  %v2041 = vadd.f32 0.0, %v2040
  %v2042 = vpop.f32.mrf.mxu0
  %v2043 = vadd.f32 0.0, %v2042
  %2044 = vmatprep.mubr.bf16.mxu0 0
  %2045 = vmatmul.mubr.bf16.gmra.mxu0 %v898
  %v2046 = vpop.f32.mrf.mxu0
  %v2047 = vadd.f32 0.0, %v2046
  %v2048 = vpop.f32.mrf.mxu0
  %v2049 = vadd.f32 0.0, %v2048
  %v2050 = vpop.f32.mrf.mxu0
  %v2051 = vadd.f32 0.0, %v2050
  %v2052 = vpop.f32.mrf.mxu0
  %v2053 = vadd.f32 0.0, %v2052
  %2054 = vdwg.mxu0
  %v2055 = vld [vmem:[%s8] sm:$0xff]
  %v2057 = vlaneseq
  %v2058 = vshrl.u32 %v2057, 7
  %v2059 = vsub.s32 0, %v2058
  %v2060 = vrot.slane %v2055, %v2059
  %v2061 = vlaneseq
  %v2062 = vshrl.u32 %v2061, 7
  %v2063 = vsub.s32 1, %v2062
  %v2064 = vrot.slane %v2055, %v2063
  %v2065 = vlaneseq
  %v2066 = vshrl.u32 %v2065, 7
  %v2067 = vsub.s32 2, %v2066
  %v2068 = vrot.slane %v2055, %v2067
  %v2069 = vlaneseq
  %v2070 = vshrl.u32 %v2069, 7
  %v2071 = vsub.s32 3, %v2070
  %v2072 = vrot.slane %v2055, %v2071
  %v2073 = vlaneseq
  %v2074 = vshrl.u32 %v2073, 7
  %v2075 = vsub.s32 4, %v2074
  %v2076 = vrot.slane %v2055, %v2075
  %v2077 = vlaneseq
  %v2078 = vshrl.u32 %v2077, 7
  %v2079 = vsub.s32 5, %v2078
  %v2080 = vrot.slane %v2055, %v2079
  %v2081 = vlaneseq
  %v2082 = vshrl.u32 %v2081, 7
  %v2083 = vsub.s32 6, %v2082
  %v2084 = vrot.slane %v2055, %v2083
  %v2085 = vlaneseq
  %v2086 = vshrl.u32 %v2085, 7
  %v2087 = vsub.s32 7, %v2086
  %v2088 = vrot.slane %v2055, %v2087
  %v2097 = vmul.f32 %v1318, %v2060
  %v2098 = vmul.f32 %v1320, %v2064
  %v2099 = vmul.f32 %v1511, %v2068
  %v2100 = vmul.f32 %v1513, %v2072
  %v2101 = vmul.f32 %v1704, %v2076
  %v2102 = vmul.f32 %v1706, %v2080
  %v2103 = vmul.f32 %v1897, %v2084
  %v2104 = vmul.f32 %v1899, %v2088
  %v2105 = vmul.f32 %v1322, %v2060
  %v2106 = vmul.f32 %v1324, %v2064
  %v2107 = vmul.f32 %v1515, %v2068
  %v2108 = vmul.f32 %v1517, %v2072
  %v2109 = vmul.f32 %v1708, %v2076
  %v2110 = vmul.f32 %v1710, %v2080
  %v2111 = vmul.f32 %v1901, %v2084
  %v2112 = vmul.f32 %v1903, %v2088
  %v2113 = vmul.f32 %v1328, %v2060
  %v2114 = vmul.f32 %v1330, %v2064
  %v2115 = vmul.f32 %v1521, %v2068
  %v2116 = vmul.f32 %v1523, %v2072
  %v2117 = vmul.f32 %v1714, %v2076
  %v2118 = vmul.f32 %v1716, %v2080
  %v2119 = vmul.f32 %v1907, %v2084
  %v2120 = vmul.f32 %v1909, %v2088
  %v2121 = vmul.f32 %v1332, %v2060
  %v2122 = vmul.f32 %v1334, %v2064
  %v2123 = vmul.f32 %v1525, %v2068
  %v2124 = vmul.f32 %v1527, %v2072
  %v2125 = vmul.f32 %v1718, %v2076
  %v2126 = vmul.f32 %v1720, %v2080
  %v2127 = vmul.f32 %v1911, %v2084
  %v2128 = vmul.f32 %v1913, %v2088
  %v2129 = vmul.f32 %v1338, %v2060
  %v2130 = vmul.f32 %v1340, %v2064
  %v2131 = vmul.f32 %v1531, %v2068
  %v2132 = vmul.f32 %v1533, %v2072
  %v2133 = vmul.f32 %v1724, %v2076
  %v2134 = vmul.f32 %v1726, %v2080
  %v2135 = vmul.f32 %v1917, %v2084
  %v2136 = vmul.f32 %v1919, %v2088
  %v2137 = vmul.f32 %v1342, %v2060
  %v2138 = vmul.f32 %v1344, %v2064
  %v2139 = vmul.f32 %v1535, %v2068
  %v2140 = vmul.f32 %v1537, %v2072
  %v2141 = vmul.f32 %v1728, %v2076
  %v2142 = vmul.f32 %v1730, %v2080
  %v2143 = vmul.f32 %v1921, %v2084
  %v2144 = vmul.f32 %v1923, %v2088
  %v2145 = vmul.f32 %v1348, %v2060
  %v2146 = vmul.f32 %v1350, %v2064
  %v2147 = vmul.f32 %v1541, %v2068
  %v2148 = vmul.f32 %v1543, %v2072
  %v2149 = vmul.f32 %v1734, %v2076
  %v2150 = vmul.f32 %v1736, %v2080
  %v2151 = vmul.f32 %v1927, %v2084
  %v2152 = vmul.f32 %v1929, %v2088
  %v2153 = vmul.f32 %v1352, %v2060
  %v2154 = vmul.f32 %v1354, %v2064
  %v2155 = vmul.f32 %v1545, %v2068
  %v2156 = vmul.f32 %v1547, %v2072
  %v2157 = vmul.f32 %v1738, %v2076
  %v2158 = vmul.f32 %v1740, %v2080
  %v2159 = vmul.f32 %v1931, %v2084
  %v2160 = vmul.f32 %v1933, %v2088
  %v2161 = vmul.f32 %v1358, %v2060
  %v2162 = vmul.f32 %v1360, %v2064
  %v2163 = vmul.f32 %v1551, %v2068
  %v2164 = vmul.f32 %v1553, %v2072
  %v2165 = vmul.f32 %v1744, %v2076
  %v2166 = vmul.f32 %v1746, %v2080
  %v2167 = vmul.f32 %v1937, %v2084
  %v2168 = vmul.f32 %v1939, %v2088
  %v2169 = vmul.f32 %v1362, %v2060
  %v2170 = vmul.f32 %v1364, %v2064
  %v2171 = vmul.f32 %v1555, %v2068
  %v2172 = vmul.f32 %v1557, %v2072
  %v2173 = vmul.f32 %v1748, %v2076
  %v2174 = vmul.f32 %v1750, %v2080
  %v2175 = vmul.f32 %v1941, %v2084
  %v2176 = vmul.f32 %v1943, %v2088
  %v2177 = vmul.f32 %v1368, %v2060
  %v2178 = vmul.f32 %v1370, %v2064
  %v2179 = vmul.f32 %v1561, %v2068
  %v2180 = vmul.f32 %v1563, %v2072
  %v2181 = vmul.f32 %v1754, %v2076
  %v2182 = vmul.f32 %v1756, %v2080
  %v2183 = vmul.f32 %v1947, %v2084
  %v2184 = vmul.f32 %v1949, %v2088
  %v2185 = vmul.f32 %v1372, %v2060
  %v2186 = vmul.f32 %v1374, %v2064
  %v2187 = vmul.f32 %v1565, %v2068
  %v2188 = vmul.f32 %v1567, %v2072
  %v2189 = vmul.f32 %v1758, %v2076
  %v2190 = vmul.f32 %v1760, %v2080
  %v2191 = vmul.f32 %v1951, %v2084
  %v2192 = vmul.f32 %v1953, %v2088
  %v2193 = vmul.f32 %v1378, %v2060
  %v2194 = vmul.f32 %v1380, %v2064
  %v2195 = vmul.f32 %v1571, %v2068
  %v2196 = vmul.f32 %v1573, %v2072
  %v2197 = vmul.f32 %v1764, %v2076
  %v2198 = vmul.f32 %v1766, %v2080
  %v2199 = vmul.f32 %v1957, %v2084
  %v2200 = vmul.f32 %v1959, %v2088
  %v2201 = vmul.f32 %v1382, %v2060
  %v2202 = vmul.f32 %v1384, %v2064
  %v2203 = vmul.f32 %v1575, %v2068
  %v2204 = vmul.f32 %v1577, %v2072
  %v2205 = vmul.f32 %v1768, %v2076
  %v2206 = vmul.f32 %v1770, %v2080
  %v2207 = vmul.f32 %v1961, %v2084
  %v2208 = vmul.f32 %v1963, %v2088
  %v2209 = vmul.f32 %v1388, %v2060
  %v2210 = vmul.f32 %v1390, %v2064
  %v2211 = vmul.f32 %v1581, %v2068
  %v2212 = vmul.f32 %v1583, %v2072
  %v2213 = vmul.f32 %v1774, %v2076
  %v2214 = vmul.f32 %v1776, %v2080
  %v2215 = vmul.f32 %v1967, %v2084
  %v2216 = vmul.f32 %v1969, %v2088
  %v2217 = vmul.f32 %v1392, %v2060
  %v2218 = vmul.f32 %v1394, %v2064
  %v2219 = vmul.f32 %v1585, %v2068
  %v2220 = vmul.f32 %v1587, %v2072
  %v2221 = vmul.f32 %v1778, %v2076
  %v2222 = vmul.f32 %v1780, %v2080
  %v2223 = vmul.f32 %v1971, %v2084
  %v2224 = vmul.f32 %v1973, %v2088
  %v2225 = vmul.f32 %v1398, %v2060
  %v2226 = vmul.f32 %v1400, %v2064
  %v2227 = vmul.f32 %v1591, %v2068
  %v2228 = vmul.f32 %v1593, %v2072
  %v2229 = vmul.f32 %v1784, %v2076
  %v2230 = vmul.f32 %v1786, %v2080
  %v2231 = vmul.f32 %v1977, %v2084
  %v2232 = vmul.f32 %v1979, %v2088
  %v2233 = vmul.f32 %v1402, %v2060
  %v2234 = vmul.f32 %v1404, %v2064
  %v2235 = vmul.f32 %v1595, %v2068
  %v2236 = vmul.f32 %v1597, %v2072
  %v2237 = vmul.f32 %v1788, %v2076
  %v2238 = vmul.f32 %v1790, %v2080
  %v2239 = vmul.f32 %v1981, %v2084
  %v2240 = vmul.f32 %v1983, %v2088
  %v2241 = vmul.f32 %v1408, %v2060
  %v2242 = vmul.f32 %v1410, %v2064
  %v2243 = vmul.f32 %v1601, %v2068
  %v2244 = vmul.f32 %v1603, %v2072
  %v2245 = vmul.f32 %v1794, %v2076
  %v2246 = vmul.f32 %v1796, %v2080
  %v2247 = vmul.f32 %v1987, %v2084
  %v2248 = vmul.f32 %v1989, %v2088
  %v2249 = vmul.f32 %v1412, %v2060
  %v2250 = vmul.f32 %v1414, %v2064
  %v2251 = vmul.f32 %v1605, %v2068
  %v2252 = vmul.f32 %v1607, %v2072
  %v2253 = vmul.f32 %v1798, %v2076
  %v2254 = vmul.f32 %v1800, %v2080
  %v2255 = vmul.f32 %v1991, %v2084
  %v2256 = vmul.f32 %v1993, %v2088
  %v2257 = vmul.f32 %v1418, %v2060
  %v2258 = vmul.f32 %v1420, %v2064
  %v2259 = vmul.f32 %v1611, %v2068
  %v2260 = vmul.f32 %v1613, %v2072
  %v2261 = vmul.f32 %v1804, %v2076
  %v2262 = vmul.f32 %v1806, %v2080
  %v2263 = vmul.f32 %v1997, %v2084
  %v2264 = vmul.f32 %v1999, %v2088
  %v2265 = vmul.f32 %v1422, %v2060
  %v2266 = vmul.f32 %v1424, %v2064
  %v2267 = vmul.f32 %v1615, %v2068
  %v2268 = vmul.f32 %v1617, %v2072
  %v2269 = vmul.f32 %v1808, %v2076
  %v2270 = vmul.f32 %v1810, %v2080
  %v2271 = vmul.f32 %v2001, %v2084
  %v2272 = vmul.f32 %v2003, %v2088
  %v2273 = vmul.f32 %v1428, %v2060
  %v2274 = vmul.f32 %v1430, %v2064
  %v2275 = vmul.f32 %v1621, %v2068
  %v2276 = vmul.f32 %v1623, %v2072
  %v2277 = vmul.f32 %v1814, %v2076
  %v2278 = vmul.f32 %v1816, %v2080
  %v2279 = vmul.f32 %v2007, %v2084
  %v2280 = vmul.f32 %v2009, %v2088
  %v2281 = vmul.f32 %v1432, %v2060
  %v2282 = vmul.f32 %v1434, %v2064
  %v2283 = vmul.f32 %v1625, %v2068
  %v2284 = vmul.f32 %v1627, %v2072
  %v2285 = vmul.f32 %v1818, %v2076
  %v2286 = vmul.f32 %v1820, %v2080
  %v2287 = vmul.f32 %v2011, %v2084
  %v2288 = vmul.f32 %v2013, %v2088
  %v2289 = vmul.f32 %v1438, %v2060
  %v2290 = vmul.f32 %v1440, %v2064
  %v2291 = vmul.f32 %v1631, %v2068
  %v2292 = vmul.f32 %v1633, %v2072
  %v2293 = vmul.f32 %v1824, %v2076
  %v2294 = vmul.f32 %v1826, %v2080
  %v2295 = vmul.f32 %v2017, %v2084
  %v2296 = vmul.f32 %v2019, %v2088
  %v2297 = vmul.f32 %v1442, %v2060
  %v2298 = vmul.f32 %v1444, %v2064
  %v2299 = vmul.f32 %v1635, %v2068
  %v2300 = vmul.f32 %v1637, %v2072
  %v2301 = vmul.f32 %v1828, %v2076
  %v2302 = vmul.f32 %v1830, %v2080
  %v2303 = vmul.f32 %v2021, %v2084
  %v2304 = vmul.f32 %v2023, %v2088
  %v2305 = vmul.f32 %v1448, %v2060
  %v2306 = vmul.f32 %v1450, %v2064
  %v2307 = vmul.f32 %v1641, %v2068
  %v2308 = vmul.f32 %v1643, %v2072
  %v2309 = vmul.f32 %v1834, %v2076
  %v2310 = vmul.f32 %v1836, %v2080
  %v2311 = vmul.f32 %v2027, %v2084
  %v2312 = vmul.f32 %v2029, %v2088
  %v2313 = vmul.f32 %v1452, %v2060
  %v2314 = vmul.f32 %v1454, %v2064
  %v2315 = vmul.f32 %v1645, %v2068
  %v2316 = vmul.f32 %v1647, %v2072
  %v2317 = vmul.f32 %v1838, %v2076
  %v2318 = vmul.f32 %v1840, %v2080
  %v2319 = vmul.f32 %v2031, %v2084
  %v2320 = vmul.f32 %v2033, %v2088
  %v2321 = vmul.f32 %v1458, %v2060
  %v2322 = vmul.f32 %v1460, %v2064
  %v2323 = vmul.f32 %v1651, %v2068
  %v2324 = vmul.f32 %v1653, %v2072
  %v2325 = vmul.f32 %v1844, %v2076
  %v2326 = vmul.f32 %v1846, %v2080
  %v2327 = vmul.f32 %v2037, %v2084
  %v2328 = vmul.f32 %v2039, %v2088
  %v2329 = vmul.f32 %v1462, %v2060
  %v2330 = vmul.f32 %v1464, %v2064
  %v2331 = vmul.f32 %v1655, %v2068
  %v2332 = vmul.f32 %v1657, %v2072
  %v2333 = vmul.f32 %v1848, %v2076
  %v2334 = vmul.f32 %v1850, %v2080
  %v2335 = vmul.f32 %v2041, %v2084
  %v2336 = vmul.f32 %v2043, %v2088
  %v2337 = vmul.f32 %v1468, %v2060
  %v2338 = vmul.f32 %v1470, %v2064
  %v2339 = vmul.f32 %v1661, %v2068
  %v2340 = vmul.f32 %v1663, %v2072
  %v2341 = vmul.f32 %v1854, %v2076
  %v2342 = vmul.f32 %v1856, %v2080
  %v2343 = vmul.f32 %v2047, %v2084
  %v2344 = vmul.f32 %v2049, %v2088
  %v2345 = vmul.f32 %v1472, %v2060
  %v2346 = vmul.f32 %v1474, %v2064
  %v2347 = vmul.f32 %v1665, %v2068
  %v2348 = vmul.f32 %v1667, %v2072
  %v2349 = vmul.f32 %v1858, %v2076
  %v2350 = vmul.f32 %v1860, %v2080
  %v2351 = vmul.f32 %v2051, %v2084
  %v2352 = vmul.f32 %v2053, %v2088
  %v2353 = vld [vmem:[%s9] sm:$0xff]
  %v2355 = vlaneseq
  %v2356 = vshrl.u32 %v2355, 7
  %v2357 = vsub.s32 0, %v2356
  %v2358 = vrot.slane %v2353, %v2357
  %v2359 = vlaneseq
  %v2360 = vshrl.u32 %v2359, 7
  %v2361 = vsub.s32 1, %v2360
  %v2362 = vrot.slane %v2353, %v2361
  %v2363 = vlaneseq
  %v2364 = vshrl.u32 %v2363, 7
  %v2365 = vsub.s32 2, %v2364
  %v2366 = vrot.slane %v2353, %v2365
  %v2367 = vlaneseq
  %v2368 = vshrl.u32 %v2367, 7
  %v2369 = vsub.s32 3, %v2368
  %v2370 = vrot.slane %v2353, %v2369
  %v2371 = vlaneseq
  %v2372 = vshrl.u32 %v2371, 7
  %v2373 = vsub.s32 4, %v2372
  %v2374 = vrot.slane %v2353, %v2373
  %v2375 = vlaneseq
  %v2376 = vshrl.u32 %v2375, 7
  %v2377 = vsub.s32 5, %v2376
  %v2378 = vrot.slane %v2353, %v2377
  %v2379 = vlaneseq
  %v2380 = vshrl.u32 %v2379, 7
  %v2381 = vsub.s32 6, %v2380
  %v2382 = vrot.slane %v2353, %v2381
  %v2383 = vlaneseq
  %v2384 = vshrl.u32 %v2383, 7
  %v2385 = vsub.s32 7, %v2384
  %v2386 = vrot.slane %v2353, %v2385
  %v2395 = vadd.f32 %v2097, %v2358
  %v2396 = vadd.f32 %v2098, %v2362
  %v2397 = vadd.f32 %v2099, %v2366
  %v2398 = vadd.f32 %v2100, %v2370
  %v2399 = vadd.f32 %v2101, %v2374
  %v2400 = vadd.f32 %v2102, %v2378
  %v2401 = vadd.f32 %v2103, %v2382
  %v2402 = vadd.f32 %v2104, %v2386
  %v2403 = vadd.f32 %v2105, %v2358
  %v2404 = vadd.f32 %v2106, %v2362
  %v2405 = vadd.f32 %v2107, %v2366
  %v2406 = vadd.f32 %v2108, %v2370
  %v2407 = vadd.f32 %v2109, %v2374
  %v2408 = vadd.f32 %v2110, %v2378
  %v2409 = vadd.f32 %v2111, %v2382
  %v2410 = vadd.f32 %v2112, %v2386
  %v2411 = vadd.f32 %v2113, %v2358
  %v2412 = vadd.f32 %v2114, %v2362
  %v2413 = vadd.f32 %v2115, %v2366
  %v2414 = vadd.f32 %v2116, %v2370
  %v2415 = vadd.f32 %v2117, %v2374
  %v2416 = vadd.f32 %v2118, %v2378
  %v2417 = vadd.f32 %v2119, %v2382
  %v2418 = vadd.f32 %v2120, %v2386
  %v2419 = vadd.f32 %v2121, %v2358
  %v2420 = vadd.f32 %v2122, %v2362
  %v2421 = vadd.f32 %v2123, %v2366
  %v2422 = vadd.f32 %v2124, %v2370
  %v2423 = vadd.f32 %v2125, %v2374
  %v2424 = vadd.f32 %v2126, %v2378
  %v2425 = vadd.f32 %v2127, %v2382
  %v2426 = vadd.f32 %v2128, %v2386
  %v2427 = vadd.f32 %v2129, %v2358
  %v2428 = vadd.f32 %v2130, %v2362
  %v2429 = vadd.f32 %v2131, %v2366
  %v2430 = vadd.f32 %v2132, %v2370
  %v2431 = vadd.f32 %v2133, %v2374
  %v2432 = vadd.f32 %v2134, %v2378
  %v2433 = vadd.f32 %v2135, %v2382
  %v2434 = vadd.f32 %v2136, %v2386
  %v2435 = vadd.f32 %v2137, %v2358
  %v2436 = vadd.f32 %v2138, %v2362
  %v2437 = vadd.f32 %v2139, %v2366
  %v2438 = vadd.f32 %v2140, %v2370
  %v2439 = vadd.f32 %v2141, %v2374
  %v2440 = vadd.f32 %v2142, %v2378
  %v2441 = vadd.f32 %v2143, %v2382
  %v2442 = vadd.f32 %v2144, %v2386
  %v2443 = vadd.f32 %v2145, %v2358
  %v2444 = vadd.f32 %v2146, %v2362
  %v2445 = vadd.f32 %v2147, %v2366
  %v2446 = vadd.f32 %v2148, %v2370
  %v2447 = vadd.f32 %v2149, %v2374
  %v2448 = vadd.f32 %v2150, %v2378
  %v2449 = vadd.f32 %v2151, %v2382
  %v2450 = vadd.f32 %v2152, %v2386
  %v2451 = vadd.f32 %v2153, %v2358
  %v2452 = vadd.f32 %v2154, %v2362
  %v2453 = vadd.f32 %v2155, %v2366
  %v2454 = vadd.f32 %v2156, %v2370
  %v2455 = vadd.f32 %v2157, %v2374
  %v2456 = vadd.f32 %v2158, %v2378
  %v2457 = vadd.f32 %v2159, %v2382
  %v2458 = vadd.f32 %v2160, %v2386
  %v2459 = vadd.f32 %v2161, %v2358
  %v2460 = vadd.f32 %v2162, %v2362
  %v2461 = vadd.f32 %v2163, %v2366
  %v2462 = vadd.f32 %v2164, %v2370
  %v2463 = vadd.f32 %v2165, %v2374
  %v2464 = vadd.f32 %v2166, %v2378
  %v2465 = vadd.f32 %v2167, %v2382
  %v2466 = vadd.f32 %v2168, %v2386
  %v2467 = vadd.f32 %v2169, %v2358
  %v2468 = vadd.f32 %v2170, %v2362
  %v2469 = vadd.f32 %v2171, %v2366
  %v2470 = vadd.f32 %v2172, %v2370
  %v2471 = vadd.f32 %v2173, %v2374
  %v2472 = vadd.f32 %v2174, %v2378
  %v2473 = vadd.f32 %v2175, %v2382
  %v2474 = vadd.f32 %v2176, %v2386
  %v2475 = vadd.f32 %v2177, %v2358
  %v2476 = vadd.f32 %v2178, %v2362
  %v2477 = vadd.f32 %v2179, %v2366
  %v2478 = vadd.f32 %v2180, %v2370
  %v2479 = vadd.f32 %v2181, %v2374
  %v2480 = vadd.f32 %v2182, %v2378
  %v2481 = vadd.f32 %v2183, %v2382
  %v2482 = vadd.f32 %v2184, %v2386
  %v2483 = vadd.f32 %v2185, %v2358
  %v2484 = vadd.f32 %v2186, %v2362
  %v2485 = vadd.f32 %v2187, %v2366
  %v2486 = vadd.f32 %v2188, %v2370
  %v2487 = vadd.f32 %v2189, %v2374
  %v2488 = vadd.f32 %v2190, %v2378
  %v2489 = vadd.f32 %v2191, %v2382
  %v2490 = vadd.f32 %v2192, %v2386
  %v2491 = vadd.f32 %v2193, %v2358
  %v2492 = vadd.f32 %v2194, %v2362
  %v2493 = vadd.f32 %v2195, %v2366
  %v2494 = vadd.f32 %v2196, %v2370
  %v2495 = vadd.f32 %v2197, %v2374
  %v2496 = vadd.f32 %v2198, %v2378
  %v2497 = vadd.f32 %v2199, %v2382
  %v2498 = vadd.f32 %v2200, %v2386
  %v2499 = vadd.f32 %v2201, %v2358
  %v2500 = vadd.f32 %v2202, %v2362
  %v2501 = vadd.f32 %v2203, %v2366
  %v2502 = vadd.f32 %v2204, %v2370
  %v2503 = vadd.f32 %v2205, %v2374
  %v2504 = vadd.f32 %v2206, %v2378
  %v2505 = vadd.f32 %v2207, %v2382
  %v2506 = vadd.f32 %v2208, %v2386
  %v2507 = vadd.f32 %v2209, %v2358
  %v2508 = vadd.f32 %v2210, %v2362
  %v2509 = vadd.f32 %v2211, %v2366
  %v2510 = vadd.f32 %v2212, %v2370
  %v2511 = vadd.f32 %v2213, %v2374
  %v2512 = vadd.f32 %v2214, %v2378
  %v2513 = vadd.f32 %v2215, %v2382
  %v2514 = vadd.f32 %v2216, %v2386
  %v2515 = vadd.f32 %v2217, %v2358
  %v2516 = vadd.f32 %v2218, %v2362
  %v2517 = vadd.f32 %v2219, %v2366
  %v2518 = vadd.f32 %v2220, %v2370
  %v2519 = vadd.f32 %v2221, %v2374
  %v2520 = vadd.f32 %v2222, %v2378
  %v2521 = vadd.f32 %v2223, %v2382
  %v2522 = vadd.f32 %v2224, %v2386
  %v2523 = vadd.f32 %v2225, %v2358
  %v2524 = vadd.f32 %v2226, %v2362
  %v2525 = vadd.f32 %v2227, %v2366
  %v2526 = vadd.f32 %v2228, %v2370
  %v2527 = vadd.f32 %v2229, %v2374
  %v2528 = vadd.f32 %v2230, %v2378
  %v2529 = vadd.f32 %v2231, %v2382
  %v2530 = vadd.f32 %v2232, %v2386
  %v2531 = vadd.f32 %v2233, %v2358
  %v2532 = vadd.f32 %v2234, %v2362
  %v2533 = vadd.f32 %v2235, %v2366
  %v2534 = vadd.f32 %v2236, %v2370
  %v2535 = vadd.f32 %v2237, %v2374
  %v2536 = vadd.f32 %v2238, %v2378
  %v2537 = vadd.f32 %v2239, %v2382
  %v2538 = vadd.f32 %v2240, %v2386
  %v2539 = vadd.f32 %v2241, %v2358
  %v2540 = vadd.f32 %v2242, %v2362
  %v2541 = vadd.f32 %v2243, %v2366
  %v2542 = vadd.f32 %v2244, %v2370
  %v2543 = vadd.f32 %v2245, %v2374
  %v2544 = vadd.f32 %v2246, %v2378
  %v2545 = vadd.f32 %v2247, %v2382
  %v2546 = vadd.f32 %v2248, %v2386
  %v2547 = vadd.f32 %v2249, %v2358
  %v2548 = vadd.f32 %v2250, %v2362
  %v2549 = vadd.f32 %v2251, %v2366
  %v2550 = vadd.f32 %v2252, %v2370
  %v2551 = vadd.f32 %v2253, %v2374
  %v2552 = vadd.f32 %v2254, %v2378
  %v2553 = vadd.f32 %v2255, %v2382
  %v2554 = vadd.f32 %v2256, %v2386
  %v2555 = vadd.f32 %v2257, %v2358
  %v2556 = vadd.f32 %v2258, %v2362
  %v2557 = vadd.f32 %v2259, %v2366
  %v2558 = vadd.f32 %v2260, %v2370
  %v2559 = vadd.f32 %v2261, %v2374
  %v2560 = vadd.f32 %v2262, %v2378
  %v2561 = vadd.f32 %v2263, %v2382
  %v2562 = vadd.f32 %v2264, %v2386
  %v2563 = vadd.f32 %v2265, %v2358
  %v2564 = vadd.f32 %v2266, %v2362
  %v2565 = vadd.f32 %v2267, %v2366
  %v2566 = vadd.f32 %v2268, %v2370
  %v2567 = vadd.f32 %v2269, %v2374
  %v2568 = vadd.f32 %v2270, %v2378
  %v2569 = vadd.f32 %v2271, %v2382
  %v2570 = vadd.f32 %v2272, %v2386
  %v2571 = vadd.f32 %v2273, %v2358
  %v2572 = vadd.f32 %v2274, %v2362
  %v2573 = vadd.f32 %v2275, %v2366
  %v2574 = vadd.f32 %v2276, %v2370
  %v2575 = vadd.f32 %v2277, %v2374
  %v2576 = vadd.f32 %v2278, %v2378
  %v2577 = vadd.f32 %v2279, %v2382
  %v2578 = vadd.f32 %v2280, %v2386
  %v2579 = vadd.f32 %v2281, %v2358
  %v2580 = vadd.f32 %v2282, %v2362
  %v2581 = vadd.f32 %v2283, %v2366
  %v2582 = vadd.f32 %v2284, %v2370
  %v2583 = vadd.f32 %v2285, %v2374
  %v2584 = vadd.f32 %v2286, %v2378
  %v2585 = vadd.f32 %v2287, %v2382
  %v2586 = vadd.f32 %v2288, %v2386
  %v2587 = vadd.f32 %v2289, %v2358
  %v2588 = vadd.f32 %v2290, %v2362
  %v2589 = vadd.f32 %v2291, %v2366
  %v2590 = vadd.f32 %v2292, %v2370
  %v2591 = vadd.f32 %v2293, %v2374
  %v2592 = vadd.f32 %v2294, %v2378
  %v2593 = vadd.f32 %v2295, %v2382
  %v2594 = vadd.f32 %v2296, %v2386
  %v2595 = vadd.f32 %v2297, %v2358
  %v2596 = vadd.f32 %v2298, %v2362
  %v2597 = vadd.f32 %v2299, %v2366
  %v2598 = vadd.f32 %v2300, %v2370
  %v2599 = vadd.f32 %v2301, %v2374
  %v2600 = vadd.f32 %v2302, %v2378
  %v2601 = vadd.f32 %v2303, %v2382
  %v2602 = vadd.f32 %v2304, %v2386
  %v2603 = vadd.f32 %v2305, %v2358
  %v2604 = vadd.f32 %v2306, %v2362
  %v2605 = vadd.f32 %v2307, %v2366
  %v2606 = vadd.f32 %v2308, %v2370
  %v2607 = vadd.f32 %v2309, %v2374
  %v2608 = vadd.f32 %v2310, %v2378
  %v2609 = vadd.f32 %v2311, %v2382
  %v2610 = vadd.f32 %v2312, %v2386
  %v2611 = vadd.f32 %v2313, %v2358
  %v2612 = vadd.f32 %v2314, %v2362
  %v2613 = vadd.f32 %v2315, %v2366
  %v2614 = vadd.f32 %v2316, %v2370
  %v2615 = vadd.f32 %v2317, %v2374
  %v2616 = vadd.f32 %v2318, %v2378
  %v2617 = vadd.f32 %v2319, %v2382
  %v2618 = vadd.f32 %v2320, %v2386
  %v2619 = vadd.f32 %v2321, %v2358
  %v2620 = vadd.f32 %v2322, %v2362
  %v2621 = vadd.f32 %v2323, %v2366
  %v2622 = vadd.f32 %v2324, %v2370
  %v2623 = vadd.f32 %v2325, %v2374
  %v2624 = vadd.f32 %v2326, %v2378
  %v2625 = vadd.f32 %v2327, %v2382
  %v2626 = vadd.f32 %v2328, %v2386
  %v2627 = vadd.f32 %v2329, %v2358
  %v2628 = vadd.f32 %v2330, %v2362
  %v2629 = vadd.f32 %v2331, %v2366
  %v2630 = vadd.f32 %v2332, %v2370
  %v2631 = vadd.f32 %v2333, %v2374
  %v2632 = vadd.f32 %v2334, %v2378
  %v2633 = vadd.f32 %v2335, %v2382
  %v2634 = vadd.f32 %v2336, %v2386
  %v2635 = vadd.f32 %v2337, %v2358
  %v2636 = vadd.f32 %v2338, %v2362
  %v2637 = vadd.f32 %v2339, %v2366
  %v2638 = vadd.f32 %v2340, %v2370
  %v2639 = vadd.f32 %v2341, %v2374
  %v2640 = vadd.f32 %v2342, %v2378
  %v2641 = vadd.f32 %v2343, %v2382
  %v2642 = vadd.f32 %v2344, %v2386
  %v2643 = vadd.f32 %v2345, %v2358
  %v2644 = vadd.f32 %v2346, %v2362
  %v2645 = vadd.f32 %v2347, %v2366
  %v2646 = vadd.f32 %v2348, %v2370
  %v2647 = vadd.f32 %v2349, %v2374
  %v2648 = vadd.f32 %v2350, %v2378
  %v2649 = vadd.f32 %v2351, %v2382
  %v2650 = vadd.f32 %v2352, %v2386
  %v2651 = vmax.f32 %v2395, 0.0
  %v2652 = vmax.f32 %v2396, 0.0
  %v2653 = vmax.f32 %v2397, 0.0
  %v2654 = vmax.f32 %v2398, 0.0
  %v2655 = vmax.f32 %v2399, 0.0
  %v2656 = vmax.f32 %v2400, 0.0
  %v2657 = vmax.f32 %v2401, 0.0
  %v2658 = vmax.f32 %v2402, 0.0
  %v2659 = vmax.f32 %v2403, 0.0
  %v2660 = vmax.f32 %v2404, 0.0
  %v2661 = vmax.f32 %v2405, 0.0
  %v2662 = vmax.f32 %v2406, 0.0
  %v2663 = vmax.f32 %v2407, 0.0
  %v2664 = vmax.f32 %v2408, 0.0
  %v2665 = vmax.f32 %v2409, 0.0
  %v2666 = vmax.f32 %v2410, 0.0
  %v2667 = vmax.f32 %v2411, 0.0
  %v2668 = vmax.f32 %v2412, 0.0
  %v2669 = vmax.f32 %v2413, 0.0
  %v2670 = vmax.f32 %v2414, 0.0
  %v2671 = vmax.f32 %v2415, 0.0
  %v2672 = vmax.f32 %v2416, 0.0
  %v2673 = vmax.f32 %v2417, 0.0
  %v2674 = vmax.f32 %v2418, 0.0
  %v2675 = vmax.f32 %v2419, 0.0
  %v2676 = vmax.f32 %v2420, 0.0
  %v2677 = vmax.f32 %v2421, 0.0
  %v2678 = vmax.f32 %v2422, 0.0
  %v2679 = vmax.f32 %v2423, 0.0
  %v2680 = vmax.f32 %v2424, 0.0
  %v2681 = vmax.f32 %v2425, 0.0
  %v2682 = vmax.f32 %v2426, 0.0
  %v2683 = vmax.f32 %v2427, 0.0
  %v2684 = vmax.f32 %v2428, 0.0
  %v2685 = vmax.f32 %v2429, 0.0
  %v2686 = vmax.f32 %v2430, 0.0
  %v2687 = vmax.f32 %v2431, 0.0
  %v2688 = vmax.f32 %v2432, 0.0
  %v2689 = vmax.f32 %v2433, 0.0
  %v2690 = vmax.f32 %v2434, 0.0
  %v2691 = vmax.f32 %v2435, 0.0
  %v2692 = vmax.f32 %v2436, 0.0
  %v2693 = vmax.f32 %v2437, 0.0
  %v2694 = vmax.f32 %v2438, 0.0
  %v2695 = vmax.f32 %v2439, 0.0
  %v2696 = vmax.f32 %v2440, 0.0
  %v2697 = vmax.f32 %v2441, 0.0
  %v2698 = vmax.f32 %v2442, 0.0
  %v2699 = vmax.f32 %v2443, 0.0
  %v2700 = vmax.f32 %v2444, 0.0
  %v2701 = vmax.f32 %v2445, 0.0
  %v2702 = vmax.f32 %v2446, 0.0
  %v2703 = vmax.f32 %v2447, 0.0
  %v2704 = vmax.f32 %v2448, 0.0
  %v2705 = vmax.f32 %v2449, 0.0
  %v2706 = vmax.f32 %v2450, 0.0
  %v2707 = vmax.f32 %v2451, 0.0
  %v2708 = vmax.f32 %v2452, 0.0
  %v2709 = vmax.f32 %v2453, 0.0
  %v2710 = vmax.f32 %v2454, 0.0
  %v2711 = vmax.f32 %v2455, 0.0
  %v2712 = vmax.f32 %v2456, 0.0
  %v2713 = vmax.f32 %v2457, 0.0
  %v2714 = vmax.f32 %v2458, 0.0
  %v2715 = vmax.f32 %v2459, 0.0
  %v2716 = vmax.f32 %v2460, 0.0
  %v2717 = vmax.f32 %v2461, 0.0
  %v2718 = vmax.f32 %v2462, 0.0
  %v2719 = vmax.f32 %v2463, 0.0
  %v2720 = vmax.f32 %v2464, 0.0
  %v2721 = vmax.f32 %v2465, 0.0
  %v2722 = vmax.f32 %v2466, 0.0
  %v2723 = vmax.f32 %v2467, 0.0
  %v2724 = vmax.f32 %v2468, 0.0
  %v2725 = vmax.f32 %v2469, 0.0
  %v2726 = vmax.f32 %v2470, 0.0
  %v2727 = vmax.f32 %v2471, 0.0
  %v2728 = vmax.f32 %v2472, 0.0
  %v2729 = vmax.f32 %v2473, 0.0
  %v2730 = vmax.f32 %v2474, 0.0
  %v2731 = vmax.f32 %v2475, 0.0
  %v2732 = vmax.f32 %v2476, 0.0
  %v2733 = vmax.f32 %v2477, 0.0
  %v2734 = vmax.f32 %v2478, 0.0
  %v2735 = vmax.f32 %v2479, 0.0
  %v2736 = vmax.f32 %v2480, 0.0
  %v2737 = vmax.f32 %v2481, 0.0
  %v2738 = vmax.f32 %v2482, 0.0
  %v2739 = vmax.f32 %v2483, 0.0
  %v2740 = vmax.f32 %v2484, 0.0
  %v2741 = vmax.f32 %v2485, 0.0
  %v2742 = vmax.f32 %v2486, 0.0
  %v2743 = vmax.f32 %v2487, 0.0
  %v2744 = vmax.f32 %v2488, 0.0
  %v2745 = vmax.f32 %v2489, 0.0
  %v2746 = vmax.f32 %v2490, 0.0
  %v2747 = vmax.f32 %v2491, 0.0
  %v2748 = vmax.f32 %v2492, 0.0
  %v2749 = vmax.f32 %v2493, 0.0
  %v2750 = vmax.f32 %v2494, 0.0
  %v2751 = vmax.f32 %v2495, 0.0
  %v2752 = vmax.f32 %v2496, 0.0
  %v2753 = vmax.f32 %v2497, 0.0
  %v2754 = vmax.f32 %v2498, 0.0
  %v2755 = vmax.f32 %v2499, 0.0
  %v2756 = vmax.f32 %v2500, 0.0
  %v2757 = vmax.f32 %v2501, 0.0
  %v2758 = vmax.f32 %v2502, 0.0
  %v2759 = vmax.f32 %v2503, 0.0
  %v2760 = vmax.f32 %v2504, 0.0
  %v2761 = vmax.f32 %v2505, 0.0
  %v2762 = vmax.f32 %v2506, 0.0
  %v2763 = vmax.f32 %v2507, 0.0
  %v2764 = vmax.f32 %v2508, 0.0
  %v2765 = vmax.f32 %v2509, 0.0
  %v2766 = vmax.f32 %v2510, 0.0
  %v2767 = vmax.f32 %v2511, 0.0
  %v2768 = vmax.f32 %v2512, 0.0
  %v2769 = vmax.f32 %v2513, 0.0
  %v2770 = vmax.f32 %v2514, 0.0
  %v2771 = vmax.f32 %v2515, 0.0
  %v2772 = vmax.f32 %v2516, 0.0
  %v2773 = vmax.f32 %v2517, 0.0
  %v2774 = vmax.f32 %v2518, 0.0
  %v2775 = vmax.f32 %v2519, 0.0
  %v2776 = vmax.f32 %v2520, 0.0
  %v2777 = vmax.f32 %v2521, 0.0
  %v2778 = vmax.f32 %v2522, 0.0
  %v2779 = vmax.f32 %v2523, 0.0
  %v2780 = vmax.f32 %v2524, 0.0
  %v2781 = vmax.f32 %v2525, 0.0
  %v2782 = vmax.f32 %v2526, 0.0
  %v2783 = vmax.f32 %v2527, 0.0
  %v2784 = vmax.f32 %v2528, 0.0
  %v2785 = vmax.f32 %v2529, 0.0
  %v2786 = vmax.f32 %v2530, 0.0
  %v2787 = vmax.f32 %v2531, 0.0
  %v2788 = vmax.f32 %v2532, 0.0
  %v2789 = vmax.f32 %v2533, 0.0
  %v2790 = vmax.f32 %v2534, 0.0
  %v2791 = vmax.f32 %v2535, 0.0
  %v2792 = vmax.f32 %v2536, 0.0
  %v2793 = vmax.f32 %v2537, 0.0
  %v2794 = vmax.f32 %v2538, 0.0
  %v2795 = vmax.f32 %v2539, 0.0
  %v2796 = vmax.f32 %v2540, 0.0
  %v2797 = vmax.f32 %v2541, 0.0
  %v2798 = vmax.f32 %v2542, 0.0
  %v2799 = vmax.f32 %v2543, 0.0
  %v2800 = vmax.f32 %v2544, 0.0
  %v2801 = vmax.f32 %v2545, 0.0
  %v2802 = vmax.f32 %v2546, 0.0
  %v2803 = vmax.f32 %v2547, 0.0
  %v2804 = vmax.f32 %v2548, 0.0
  %v2805 = vmax.f32 %v2549, 0.0
  %v2806 = vmax.f32 %v2550, 0.0
  %v2807 = vmax.f32 %v2551, 0.0
  %v2808 = vmax.f32 %v2552, 0.0
  %v2809 = vmax.f32 %v2553, 0.0
  %v2810 = vmax.f32 %v2554, 0.0
  %v2811 = vmax.f32 %v2555, 0.0
  %v2812 = vmax.f32 %v2556, 0.0
  %v2813 = vmax.f32 %v2557, 0.0
  %v2814 = vmax.f32 %v2558, 0.0
  %v2815 = vmax.f32 %v2559, 0.0
  %v2816 = vmax.f32 %v2560, 0.0
  %v2817 = vmax.f32 %v2561, 0.0
  %v2818 = vmax.f32 %v2562, 0.0
  %v2819 = vmax.f32 %v2563, 0.0
  %v2820 = vmax.f32 %v2564, 0.0
  %v2821 = vmax.f32 %v2565, 0.0
  %v2822 = vmax.f32 %v2566, 0.0
  %v2823 = vmax.f32 %v2567, 0.0
  %v2824 = vmax.f32 %v2568, 0.0
  %v2825 = vmax.f32 %v2569, 0.0
  %v2826 = vmax.f32 %v2570, 0.0
  %v2827 = vmax.f32 %v2571, 0.0
  %v2828 = vmax.f32 %v2572, 0.0
  %v2829 = vmax.f32 %v2573, 0.0
  %v2830 = vmax.f32 %v2574, 0.0
  %v2831 = vmax.f32 %v2575, 0.0
  %v2832 = vmax.f32 %v2576, 0.0
  %v2833 = vmax.f32 %v2577, 0.0
  %v2834 = vmax.f32 %v2578, 0.0
  %v2835 = vmax.f32 %v2579, 0.0
  %v2836 = vmax.f32 %v2580, 0.0
  %v2837 = vmax.f32 %v2581, 0.0
  %v2838 = vmax.f32 %v2582, 0.0
  %v2839 = vmax.f32 %v2583, 0.0
  %v2840 = vmax.f32 %v2584, 0.0
  %v2841 = vmax.f32 %v2585, 0.0
  %v2842 = vmax.f32 %v2586, 0.0
  %v2843 = vmax.f32 %v2587, 0.0
  %v2844 = vmax.f32 %v2588, 0.0
  %v2845 = vmax.f32 %v2589, 0.0
  %v2846 = vmax.f32 %v2590, 0.0
  %v2847 = vmax.f32 %v2591, 0.0
  %v2848 = vmax.f32 %v2592, 0.0
  %v2849 = vmax.f32 %v2593, 0.0
  %v2850 = vmax.f32 %v2594, 0.0
  %v2851 = vmax.f32 %v2595, 0.0
  %v2852 = vmax.f32 %v2596, 0.0
  %v2853 = vmax.f32 %v2597, 0.0
  %v2854 = vmax.f32 %v2598, 0.0
  %v2855 = vmax.f32 %v2599, 0.0
  %v2856 = vmax.f32 %v2600, 0.0
  %v2857 = vmax.f32 %v2601, 0.0
  %v2858 = vmax.f32 %v2602, 0.0
  %v2859 = vmax.f32 %v2603, 0.0
  %v2860 = vmax.f32 %v2604, 0.0
  %v2861 = vmax.f32 %v2605, 0.0
  %v2862 = vmax.f32 %v2606, 0.0
  %v2863 = vmax.f32 %v2607, 0.0
  %v2864 = vmax.f32 %v2608, 0.0
  %v2865 = vmax.f32 %v2609, 0.0
  %v2866 = vmax.f32 %v2610, 0.0
  %v2867 = vmax.f32 %v2611, 0.0
  %v2868 = vmax.f32 %v2612, 0.0
  %v2869 = vmax.f32 %v2613, 0.0
  %v2870 = vmax.f32 %v2614, 0.0
  %v2871 = vmax.f32 %v2615, 0.0
  %v2872 = vmax.f32 %v2616, 0.0
  %v2873 = vmax.f32 %v2617, 0.0
  %v2874 = vmax.f32 %v2618, 0.0
  %v2875 = vmax.f32 %v2619, 0.0
  %v2876 = vmax.f32 %v2620, 0.0
  %v2877 = vmax.f32 %v2621, 0.0
  %v2878 = vmax.f32 %v2622, 0.0
  %v2879 = vmax.f32 %v2623, 0.0
  %v2880 = vmax.f32 %v2624, 0.0
  %v2881 = vmax.f32 %v2625, 0.0
  %v2882 = vmax.f32 %v2626, 0.0
  %v2883 = vmax.f32 %v2627, 0.0
  %v2884 = vmax.f32 %v2628, 0.0
  %v2885 = vmax.f32 %v2629, 0.0
  %v2886 = vmax.f32 %v2630, 0.0
  %v2887 = vmax.f32 %v2631, 0.0
  %v2888 = vmax.f32 %v2632, 0.0
  %v2889 = vmax.f32 %v2633, 0.0
  %v2890 = vmax.f32 %v2634, 0.0
  %v2891 = vmax.f32 %v2635, 0.0
  %v2892 = vmax.f32 %v2636, 0.0
  %v2893 = vmax.f32 %v2637, 0.0
  %v2894 = vmax.f32 %v2638, 0.0
  %v2895 = vmax.f32 %v2639, 0.0
  %v2896 = vmax.f32 %v2640, 0.0
  %v2897 = vmax.f32 %v2641, 0.0
  %v2898 = vmax.f32 %v2642, 0.0
  %v2899 = vmax.f32 %v2643, 0.0
  %v2900 = vmax.f32 %v2644, 0.0
  %v2901 = vmax.f32 %v2645, 0.0
  %v2902 = vmax.f32 %v2646, 0.0
  %v2903 = vmax.f32 %v2647, 0.0
  %v2904 = vmax.f32 %v2648, 0.0
  %v2905 = vmax.f32 %v2649, 0.0
  %v2906 = vmax.f32 %v2650, 0.0
  %v2907 = vlaneseq
  %v2908 = vshrl.u32 %v2907, 7
  %v2909 = vadd.s32 %v2908, 8
  %v2910 = vadd.s32 %v2908, 16
  %v2911 = vadd.s32 %v2908, 24
  %s2912 = smul.u32 0, 32
  %v2913 = vstv %s2912
  %v2914 = vadd.s32 %v2908, %v2913
  %v2915 = vadd.s32 %v2909, %v2913
  %v2916 = vadd.s32 %v2910, %v2913
  %v2917 = vadd.s32 %v2911, %v2913
  %vm2918 = vcmp.lt.s32.totalorder %v2914, 32
  %vm2919 = vcmp.lt.s32.totalorder %v2915, 32
  %vm2920 = vcmp.lt.s32.totalorder %v2916, 32
  %vm2921 = vcmp.lt.s32.totalorder %v2917, 32
  %v2922 = vsel %vm2918, 1, 0
  %v2923 = vsel %vm2919, 1, 0
  %v2924 = vsel %vm2920, 1, 0
  %v2925 = vsel %vm2921, 1, 0
  %vm2926 = vcmp.eq.s32.totalorder %v2922, 1
  %vm2927 = vcmp.eq.s32.totalorder %v2923, 1
  %vm2928 = vcmp.eq.s32.totalorder %v2924, 1
  %vm2929 = vcmp.eq.s32.totalorder %v2925, 1
  %v2930 = vsel %vm2926, %v2651, -inf
  %v2931 = vsel %vm2926, %v2652, -inf
  %v2932 = vsel %vm2926, %v2653, -inf
  %v2933 = vsel %vm2926, %v2654, -inf
  %v2934 = vsel %vm2926, %v2655, -inf
  %v2935 = vsel %vm2926, %v2656, -inf
  %v2936 = vsel %vm2926, %v2657, -inf
  %v2937 = vsel %vm2926, %v2658, -inf
  %v2938 = vsel %vm2927, %v2659, -inf
  %v2939 = vsel %vm2927, %v2660, -inf
  %v2940 = vsel %vm2927, %v2661, -inf
  %v2941 = vsel %vm2927, %v2662, -inf
  %v2942 = vsel %vm2927, %v2663, -inf
  %v2943 = vsel %vm2927, %v2664, -inf
  %v2944 = vsel %vm2927, %v2665, -inf
  %v2945 = vsel %vm2927, %v2666, -inf
  %v2946 = vsel %vm2928, %v2667, -inf
  %v2947 = vsel %vm2928, %v2668, -inf
  %v2948 = vsel %vm2928, %v2669, -inf
  %v2949 = vsel %vm2928, %v2670, -inf
  %v2950 = vsel %vm2928, %v2671, -inf
  %v2951 = vsel %vm2928, %v2672, -inf
  %v2952 = vsel %vm2928, %v2673, -inf
  %v2953 = vsel %vm2928, %v2674, -inf
  %v2954 = vsel %vm2929, %v2675, -inf
  %v2955 = vsel %vm2929, %v2676, -inf
  %v2956 = vsel %vm2929, %v2677, -inf
  %v2957 = vsel %vm2929, %v2678, -inf
  %v2958 = vsel %vm2929, %v2679, -inf
  %v2959 = vsel %vm2929, %v2680, -inf
  %v2960 = vsel %vm2929, %v2681, -inf
  %v2961 = vsel %vm2929, %v2682, -inf
  %v2962 = vsel %vm2926, %v2683, -inf
  %v2963 = vsel %vm2926, %v2684, -inf
  %v2964 = vsel %vm2926, %v2685, -inf
  %v2965 = vsel %vm2926, %v2686, -inf
  %v2966 = vsel %vm2926, %v2687, -inf
  %v2967 = vsel %vm2926, %v2688, -inf
  %v2968 = vsel %vm2926, %v2689, -inf
  %v2969 = vsel %vm2926, %v2690, -inf
  %v2970 = vsel %vm2927, %v2691, -inf
  %v2971 = vsel %vm2927, %v2692, -inf
  %v2972 = vsel %vm2927, %v2693, -inf
  %v2973 = vsel %vm2927, %v2694, -inf
  %v2974 = vsel %vm2927, %v2695, -inf
  %v2975 = vsel %vm2927, %v2696, -inf
  %v2976 = vsel %vm2927, %v2697, -inf
  %v2977 = vsel %vm2927, %v2698, -inf
  %v2978 = vsel %vm2928, %v2699, -inf
  %v2979 = vsel %vm2928, %v2700, -inf
  %v2980 = vsel %vm2928, %v2701, -inf
  %v2981 = vsel %vm2928, %v2702, -inf
  %v2982 = vsel %vm2928, %v2703, -inf
  %v2983 = vsel %vm2928, %v2704, -inf
  %v2984 = vsel %vm2928, %v2705, -inf
  %v2985 = vsel %vm2928, %v2706, -inf
  %v2986 = vsel %vm2929, %v2707, -inf
  %v2987 = vsel %vm2929, %v2708, -inf
  %v2988 = vsel %vm2929, %v2709, -inf
  %v2989 = vsel %vm2929, %v2710, -inf
  %v2990 = vsel %vm2929, %v2711, -inf
  %v2991 = vsel %vm2929, %v2712, -inf
  %v2992 = vsel %vm2929, %v2713, -inf
  %v2993 = vsel %vm2929, %v2714, -inf
  %v2994 = vsel %vm2926, %v2715, -inf
  %v2995 = vsel %vm2926, %v2716, -inf
  %v2996 = vsel %vm2926, %v2717, -inf
  %v2997 = vsel %vm2926, %v2718, -inf
  %v2998 = vsel %vm2926, %v2719, -inf
  %v2999 = vsel %vm2926, %v2720, -inf
  %v3000 = vsel %vm2926, %v2721, -inf
  %v3001 = vsel %vm2926, %v2722, -inf
  %v3002 = vsel %vm2927, %v2723, -inf
  %v3003 = vsel %vm2927, %v2724, -inf
  %v3004 = vsel %vm2927, %v2725, -inf
  %v3005 = vsel %vm2927, %v2726, -inf
  %v3006 = vsel %vm2927, %v2727, -inf
  %v3007 = vsel %vm2927, %v2728, -inf
  %v3008 = vsel %vm2927, %v2729, -inf
  %v3009 = vsel %vm2927, %v2730, -inf
  %v3010 = vsel %vm2928, %v2731, -inf
  %v3011 = vsel %vm2928, %v2732, -inf
  %v3012 = vsel %vm2928, %v2733, -inf
  %v3013 = vsel %vm2928, %v2734, -inf
  %v3014 = vsel %vm2928, %v2735, -inf
  %v3015 = vsel %vm2928, %v2736, -inf
  %v3016 = vsel %vm2928, %v2737, -inf
  %v3017 = vsel %vm2928, %v2738, -inf
  %v3018 = vsel %vm2929, %v2739, -inf
  %v3019 = vsel %vm2929, %v2740, -inf
  %v3020 = vsel %vm2929, %v2741, -inf
  %v3021 = vsel %vm2929, %v2742, -inf
  %v3022 = vsel %vm2929, %v2743, -inf
  %v3023 = vsel %vm2929, %v2744, -inf
  %v3024 = vsel %vm2929, %v2745, -inf
  %v3025 = vsel %vm2929, %v2746, -inf
  %v3026 = vsel %vm2926, %v2747, -inf
  %v3027 = vsel %vm2926, %v2748, -inf
  %v3028 = vsel %vm2926, %v2749, -inf
  %v3029 = vsel %vm2926, %v2750, -inf
  %v3030 = vsel %vm2926, %v2751, -inf
  %v3031 = vsel %vm2926, %v2752, -inf
  %v3032 = vsel %vm2926, %v2753, -inf
  %v3033 = vsel %vm2926, %v2754, -inf
  %v3034 = vsel %vm2927, %v2755, -inf
  %v3035 = vsel %vm2927, %v2756, -inf
  %v3036 = vsel %vm2927, %v2757, -inf
  %v3037 = vsel %vm2927, %v2758, -inf
  %v3038 = vsel %vm2927, %v2759, -inf
  %v3039 = vsel %vm2927, %v2760, -inf
  %v3040 = vsel %vm2927, %v2761, -inf
  %v3041 = vsel %vm2927, %v2762, -inf
  %v3042 = vsel %vm2928, %v2763, -inf
  %v3043 = vsel %vm2928, %v2764, -inf
  %v3044 = vsel %vm2928, %v2765, -inf
  %v3045 = vsel %vm2928, %v2766, -inf
  %v3046 = vsel %vm2928, %v2767, -inf
  %v3047 = vsel %vm2928, %v2768, -inf
  %v3048 = vsel %vm2928, %v2769, -inf
  %v3049 = vsel %vm2928, %v2770, -inf
  %v3050 = vsel %vm2929, %v2771, -inf
  %v3051 = vsel %vm2929, %v2772, -inf
  %v3052 = vsel %vm2929, %v2773, -inf
  %v3053 = vsel %vm2929, %v2774, -inf
  %v3054 = vsel %vm2929, %v2775, -inf
  %v3055 = vsel %vm2929, %v2776, -inf
  %v3056 = vsel %vm2929, %v2777, -inf
  %v3057 = vsel %vm2929, %v2778, -inf
  %v3058 = vsel %vm2926, %v2779, -inf
  %v3059 = vsel %vm2926, %v2780, -inf
  %v3060 = vsel %vm2926, %v2781, -inf
  %v3061 = vsel %vm2926, %v2782, -inf
  %v3062 = vsel %vm2926, %v2783, -inf
  %v3063 = vsel %vm2926, %v2784, -inf
  %v3064 = vsel %vm2926, %v2785, -inf
  %v3065 = vsel %vm2926, %v2786, -inf
  %v3066 = vsel %vm2927, %v2787, -inf
  %v3067 = vsel %vm2927, %v2788, -inf
  %v3068 = vsel %vm2927, %v2789, -inf
  %v3069 = vsel %vm2927, %v2790, -inf
  %v3070 = vsel %vm2927, %v2791, -inf
  %v3071 = vsel %vm2927, %v2792, -inf
  %v3072 = vsel %vm2927, %v2793, -inf
  %v3073 = vsel %vm2927, %v2794, -inf
  %v3074 = vsel %vm2928, %v2795, -inf
  %v3075 = vsel %vm2928, %v2796, -inf
  %v3076 = vsel %vm2928, %v2797, -inf
  %v3077 = vsel %vm2928, %v2798, -inf
  %v3078 = vsel %vm2928, %v2799, -inf
  %v3079 = vsel %vm2928, %v2800, -inf
  %v3080 = vsel %vm2928, %v2801, -inf
  %v3081 = vsel %vm2928, %v2802, -inf
  %v3082 = vsel %vm2929, %v2803, -inf
  %v3083 = vsel %vm2929, %v2804, -inf
  %v3084 = vsel %vm2929, %v2805, -inf
  %v3085 = vsel %vm2929, %v2806, -inf
  %v3086 = vsel %vm2929, %v2807, -inf
  %v3087 = vsel %vm2929, %v2808, -inf
  %v3088 = vsel %vm2929, %v2809, -inf
  %v3089 = vsel %vm2929, %v2810, -inf
  %v3090 = vsel %vm2926, %v2811, -inf
  %v3091 = vsel %vm2926, %v2812, -inf
  %v3092 = vsel %vm2926, %v2813, -inf
  %v3093 = vsel %vm2926, %v2814, -inf
  %v3094 = vsel %vm2926, %v2815, -inf
  %v3095 = vsel %vm2926, %v2816, -inf
  %v3096 = vsel %vm2926, %v2817, -inf
  %v3097 = vsel %vm2926, %v2818, -inf
  %v3098 = vsel %vm2927, %v2819, -inf
  %v3099 = vsel %vm2927, %v2820, -inf
  %v3100 = vsel %vm2927, %v2821, -inf
  %v3101 = vsel %vm2927, %v2822, -inf
  %v3102 = vsel %vm2927, %v2823, -inf
  %v3103 = vsel %vm2927, %v2824, -inf
  %v3104 = vsel %vm2927, %v2825, -inf
  %v3105 = vsel %vm2927, %v2826, -inf
  %v3106 = vsel %vm2928, %v2827, -inf
  %v3107 = vsel %vm2928, %v2828, -inf
  %v3108 = vsel %vm2928, %v2829, -inf
  %v3109 = vsel %vm2928, %v2830, -inf
  %v3110 = vsel %vm2928, %v2831, -inf
  %v3111 = vsel %vm2928, %v2832, -inf
  %v3112 = vsel %vm2928, %v2833, -inf
  %v3113 = vsel %vm2928, %v2834, -inf
  %v3114 = vsel %vm2929, %v2835, -inf
  %v3115 = vsel %vm2929, %v2836, -inf
  %v3116 = vsel %vm2929, %v2837, -inf
  %v3117 = vsel %vm2929, %v2838, -inf
  %v3118 = vsel %vm2929, %v2839, -inf
  %v3119 = vsel %vm2929, %v2840, -inf
  %v3120 = vsel %vm2929, %v2841, -inf
  %v3121 = vsel %vm2929, %v2842, -inf
  %v3122 = vsel %vm2926, %v2843, -inf
  %v3123 = vsel %vm2926, %v2844, -inf
  %v3124 = vsel %vm2926, %v2845, -inf
  %v3125 = vsel %vm2926, %v2846, -inf
  %v3126 = vsel %vm2926, %v2847, -inf
  %v3127 = vsel %vm2926, %v2848, -inf
  %v3128 = vsel %vm2926, %v2849, -inf
  %v3129 = vsel %vm2926, %v2850, -inf
  %v3130 = vsel %vm2927, %v2851, -inf
  %v3131 = vsel %vm2927, %v2852, -inf
  %v3132 = vsel %vm2927, %v2853, -inf
  %v3133 = vsel %vm2927, %v2854, -inf
  %v3134 = vsel %vm2927, %v2855, -inf
  %v3135 = vsel %vm2927, %v2856, -inf
  %v3136 = vsel %vm2927, %v2857, -inf
  %v3137 = vsel %vm2927, %v2858, -inf
  %v3138 = vsel %vm2928, %v2859, -inf
  %v3139 = vsel %vm2928, %v2860, -inf
  %v3140 = vsel %vm2928, %v2861, -inf
  %v3141 = vsel %vm2928, %v2862, -inf
  %v3142 = vsel %vm2928, %v2863, -inf
  %v3143 = vsel %vm2928, %v2864, -inf
  %v3144 = vsel %vm2928, %v2865, -inf
  %v3145 = vsel %vm2928, %v2866, -inf
  %v3146 = vsel %vm2929, %v2867, -inf
  %v3147 = vsel %vm2929, %v2868, -inf
  %v3148 = vsel %vm2929, %v2869, -inf
  %v3149 = vsel %vm2929, %v2870, -inf
  %v3150 = vsel %vm2929, %v2871, -inf
  %v3151 = vsel %vm2929, %v2872, -inf
  %v3152 = vsel %vm2929, %v2873, -inf
  %v3153 = vsel %vm2929, %v2874, -inf
  %v3154 = vsel %vm2926, %v2875, -inf
  %v3155 = vsel %vm2926, %v2876, -inf
  %v3156 = vsel %vm2926, %v2877, -inf
  %v3157 = vsel %vm2926, %v2878, -inf
  %v3158 = vsel %vm2926, %v2879, -inf
  %v3159 = vsel %vm2926, %v2880, -inf
  %v3160 = vsel %vm2926, %v2881, -inf
  %v3161 = vsel %vm2926, %v2882, -inf
  %v3162 = vsel %vm2927, %v2883, -inf
  %v3163 = vsel %vm2927, %v2884, -inf
  %v3164 = vsel %vm2927, %v2885, -inf
  %v3165 = vsel %vm2927, %v2886, -inf
  %v3166 = vsel %vm2927, %v2887, -inf
  %v3167 = vsel %vm2927, %v2888, -inf
  %v3168 = vsel %vm2927, %v2889, -inf
  %v3169 = vsel %vm2927, %v2890, -inf
  %v3170 = vsel %vm2928, %v2891, -inf
  %v3171 = vsel %vm2928, %v2892, -inf
  %v3172 = vsel %vm2928, %v2893, -inf
  %v3173 = vsel %vm2928, %v2894, -inf
  %v3174 = vsel %vm2928, %v2895, -inf
  %v3175 = vsel %vm2928, %v2896, -inf
  %v3176 = vsel %vm2928, %v2897, -inf
  %v3177 = vsel %vm2928, %v2898, -inf
  %v3178 = vsel %vm2929, %v2899, -inf
  %v3179 = vsel %vm2929, %v2900, -inf
  %v3180 = vsel %vm2929, %v2901, -inf
  %v3181 = vsel %vm2929, %v2902, -inf
  %v3182 = vsel %vm2929, %v2903, -inf
  %v3183 = vsel %vm2929, %v2904, -inf
  %v3184 = vsel %vm2929, %v2905, -inf
  %v3185 = vsel %vm2929, %v2906, -inf
  %v3186 = vld [vmem:[#allocation2] sm:$0xff]
  %v3187 = vld [vmem:[#allocation2 + $0x8] sm:$0xff]
  %v3188 = vld [vmem:[#allocation2 + $0x10] sm:$0xff]
  %v3189 = vld [vmem:[#allocation2 + $0x18] sm:$0xff]
  %v3190 = vld [vmem:[#allocation2 + $0x20] sm:$0xff]
  %v3191 = vld [vmem:[#allocation2 + $0x28] sm:$0xff]
  %v3192 = vld [vmem:[#allocation2 + $0x30] sm:$0xff]
  %v3193 = vld [vmem:[#allocation2 + $0x38] sm:$0xff]
  %v3194 = vmax.f32 %v2930, %v2938
  %v3195 = vmax.f32 %v3194, %v2946
  %v3196 = vmax.f32 %v3195, %v2954
  %v3197 = vrot.slane %v3196, 4
  %v3198 = vmax.f32 %v3196, %v3197
  %v3199 = vrot.slane %v3198, 2
  %v3200 = vmax.f32 %v3198, %v3199
  %v3201 = vrot.slane %v3200, 1
  %v3202 = vmax.f32 %v3200, %v3201
  %v3203 = vmax.f32 %v2931, %v2939
  %v3204 = vmax.f32 %v3203, %v2947
  %v3205 = vmax.f32 %v3204, %v2955
  %v3206 = vrot.slane %v3205, 4
  %v3207 = vmax.f32 %v3205, %v3206
  %v3208 = vrot.slane %v3207, 2
  %v3209 = vmax.f32 %v3207, %v3208
  %v3210 = vrot.slane %v3209, 1
  %v3211 = vmax.f32 %v3209, %v3210
  %v3212 = vmax.f32 %v2932, %v2940
  %v3213 = vmax.f32 %v3212, %v2948
  %v3214 = vmax.f32 %v3213, %v2956
  %v3215 = vrot.slane %v3214, 4
  %v3216 = vmax.f32 %v3214, %v3215
  %v3217 = vrot.slane %v3216, 2
  %v3218 = vmax.f32 %v3216, %v3217
  %v3219 = vrot.slane %v3218, 1
  %v3220 = vmax.f32 %v3218, %v3219
  %v3221 = vmax.f32 %v2933, %v2941
  %v3222 = vmax.f32 %v3221, %v2949
  %v3223 = vmax.f32 %v3222, %v2957
  %v3224 = vrot.slane %v3223, 4
  %v3225 = vmax.f32 %v3223, %v3224
  %v3226 = vrot.slane %v3225, 2
  %v3227 = vmax.f32 %v3225, %v3226
  %v3228 = vrot.slane %v3227, 1
  %v3229 = vmax.f32 %v3227, %v3228
  %v3230 = vmax.f32 %v2934, %v2942
  %v3231 = vmax.f32 %v3230, %v2950
  %v3232 = vmax.f32 %v3231, %v2958
  %v3233 = vrot.slane %v3232, 4
  %v3234 = vmax.f32 %v3232, %v3233
  %v3235 = vrot.slane %v3234, 2
  %v3236 = vmax.f32 %v3234, %v3235
  %v3237 = vrot.slane %v3236, 1
  %v3238 = vmax.f32 %v3236, %v3237
  %v3239 = vmax.f32 %v2935, %v2943
  %v3240 = vmax.f32 %v3239, %v2951
  %v3241 = vmax.f32 %v3240, %v2959
  %v3242 = vrot.slane %v3241, 4
  %v3243 = vmax.f32 %v3241, %v3242
  %v3244 = vrot.slane %v3243, 2
  %v3245 = vmax.f32 %v3243, %v3244
  %v3246 = vrot.slane %v3245, 1
  %v3247 = vmax.f32 %v3245, %v3246
  %v3248 = vmax.f32 %v2936, %v2944
  %v3249 = vmax.f32 %v3248, %v2952
  %v3250 = vmax.f32 %v3249, %v2960
  %v3251 = vrot.slane %v3250, 4
  %v3252 = vmax.f32 %v3250, %v3251
  %v3253 = vrot.slane %v3252, 2
  %v3254 = vmax.f32 %v3252, %v3253
  %v3255 = vrot.slane %v3254, 1
  %v3256 = vmax.f32 %v3254, %v3255
  %v3257 = vmax.f32 %v2937, %v2945
  %v3258 = vmax.f32 %v3257, %v2953
  %v3259 = vmax.f32 %v3258, %v2961
  %v3260 = vrot.slane %v3259, 4
  %v3261 = vmax.f32 %v3259, %v3260
  %v3262 = vrot.slane %v3261, 2
  %v3263 = vmax.f32 %v3261, %v3262
  %v3264 = vrot.slane %v3263, 1
  %v3265 = vmax.f32 %v3263, %v3264
  %v3266 = vmax.f32 %v2962, %v2970
  %v3267 = vmax.f32 %v3266, %v2978
  %v3268 = vmax.f32 %v3267, %v2986
  %v3269 = vrot.slane %v3268, 4
  %v3270 = vmax.f32 %v3268, %v3269
  %v3271 = vrot.slane %v3270, 2
  %v3272 = vmax.f32 %v3270, %v3271
  %v3273 = vrot.slane %v3272, 1
  %v3274 = vmax.f32 %v3272, %v3273
  %v3275 = vmax.f32 %v2963, %v2971
  %v3276 = vmax.f32 %v3275, %v2979
  %v3277 = vmax.f32 %v3276, %v2987
  %v3278 = vrot.slane %v3277, 4
  %v3279 = vmax.f32 %v3277, %v3278
  %v3280 = vrot.slane %v3279, 2
  %v3281 = vmax.f32 %v3279, %v3280
  %v3282 = vrot.slane %v3281, 1
  %v3283 = vmax.f32 %v3281, %v3282
  %v3284 = vmax.f32 %v2964, %v2972
  %v3285 = vmax.f32 %v3284, %v2980
  %v3286 = vmax.f32 %v3285, %v2988
  %v3287 = vrot.slane %v3286, 4
  %v3288 = vmax.f32 %v3286, %v3287
  %v3289 = vrot.slane %v3288, 2
  %v3290 = vmax.f32 %v3288, %v3289
  %v3291 = vrot.slane %v3290, 1
  %v3292 = vmax.f32 %v3290, %v3291
  %v3293 = vmax.f32 %v2965, %v2973
  %v3294 = vmax.f32 %v3293, %v2981
  %v3295 = vmax.f32 %v3294, %v2989
  %v3296 = vrot.slane %v3295, 4
  %v3297 = vmax.f32 %v3295, %v3296
  %v3298 = vrot.slane %v3297, 2
  %v3299 = vmax.f32 %v3297, %v3298
  %v3300 = vrot.slane %v3299, 1
  %v3301 = vmax.f32 %v3299, %v3300
  %v3302 = vmax.f32 %v2966, %v2974
  %v3303 = vmax.f32 %v3302, %v2982
  %v3304 = vmax.f32 %v3303, %v2990
  %v3305 = vrot.slane %v3304, 4
  %v3306 = vmax.f32 %v3304, %v3305
  %v3307 = vrot.slane %v3306, 2
  %v3308 = vmax.f32 %v3306, %v3307
  %v3309 = vrot.slane %v3308, 1
  %v3310 = vmax.f32 %v3308, %v3309
  %v3311 = vmax.f32 %v2967, %v2975
  %v3312 = vmax.f32 %v3311, %v2983
  %v3313 = vmax.f32 %v3312, %v2991
  %v3314 = vrot.slane %v3313, 4
  %v3315 = vmax.f32 %v3313, %v3314
  %v3316 = vrot.slane %v3315, 2
  %v3317 = vmax.f32 %v3315, %v3316
  %v3318 = vrot.slane %v3317, 1
  %v3319 = vmax.f32 %v3317, %v3318
  %v3320 = vmax.f32 %v2968, %v2976
  %v3321 = vmax.f32 %v3320, %v2984
  %v3322 = vmax.f32 %v3321, %v2992
  %v3323 = vrot.slane %v3322, 4
  %v3324 = vmax.f32 %v3322, %v3323
  %v3325 = vrot.slane %v3324, 2
  %v3326 = vmax.f32 %v3324, %v3325
  %v3327 = vrot.slane %v3326, 1
  %v3328 = vmax.f32 %v3326, %v3327
  %v3329 = vmax.f32 %v2969, %v2977
  %v3330 = vmax.f32 %v3329, %v2985
  %v3331 = vmax.f32 %v3330, %v2993
  %v3332 = vrot.slane %v3331, 4
  %v3333 = vmax.f32 %v3331, %v3332
  %v3334 = vrot.slane %v3333, 2
  %v3335 = vmax.f32 %v3333, %v3334
  %v3336 = vrot.slane %v3335, 1
  %v3337 = vmax.f32 %v3335, %v3336
  %v3338 = vmax.f32 %v2994, %v3002
  %v3339 = vmax.f32 %v3338, %v3010
  %v3340 = vmax.f32 %v3339, %v3018
  %v3341 = vrot.slane %v3340, 4
  %v3342 = vmax.f32 %v3340, %v3341
  %v3343 = vrot.slane %v3342, 2
  %v3344 = vmax.f32 %v3342, %v3343
  %v3345 = vrot.slane %v3344, 1
  %v3346 = vmax.f32 %v3344, %v3345
  %v3347 = vmax.f32 %v2995, %v3003
  %v3348 = vmax.f32 %v3347, %v3011
  %v3349 = vmax.f32 %v3348, %v3019
  %v3350 = vrot.slane %v3349, 4
  %v3351 = vmax.f32 %v3349, %v3350
  %v3352 = vrot.slane %v3351, 2
  %v3353 = vmax.f32 %v3351, %v3352
  %v3354 = vrot.slane %v3353, 1
  %v3355 = vmax.f32 %v3353, %v3354
  %v3356 = vmax.f32 %v2996, %v3004
  %v3357 = vmax.f32 %v3356, %v3012
  %v3358 = vmax.f32 %v3357, %v3020
  %v3359 = vrot.slane %v3358, 4
  %v3360 = vmax.f32 %v3358, %v3359
  %v3361 = vrot.slane %v3360, 2
  %v3362 = vmax.f32 %v3360, %v3361
  %v3363 = vrot.slane %v3362, 1
  %v3364 = vmax.f32 %v3362, %v3363
  %v3365 = vmax.f32 %v2997, %v3005
  %v3366 = vmax.f32 %v3365, %v3013
  %v3367 = vmax.f32 %v3366, %v3021
  %v3368 = vrot.slane %v3367, 4
  %v3369 = vmax.f32 %v3367, %v3368
  %v3370 = vrot.slane %v3369, 2
  %v3371 = vmax.f32 %v3369, %v3370
  %v3372 = vrot.slane %v3371, 1
  %v3373 = vmax.f32 %v3371, %v3372
  %v3374 = vmax.f32 %v2998, %v3006
  %v3375 = vmax.f32 %v3374, %v3014
  %v3376 = vmax.f32 %v3375, %v3022
  %v3377 = vrot.slane %v3376, 4
  %v3378 = vmax.f32 %v3376, %v3377
  %v3379 = vrot.slane %v3378, 2
  %v3380 = vmax.f32 %v3378, %v3379
  %v3381 = vrot.slane %v3380, 1
  %v3382 = vmax.f32 %v3380, %v3381
  %v3383 = vmax.f32 %v2999, %v3007
  %v3384 = vmax.f32 %v3383, %v3015
  %v3385 = vmax.f32 %v3384, %v3023
  %v3386 = vrot.slane %v3385, 4
  %v3387 = vmax.f32 %v3385, %v3386
  %v3388 = vrot.slane %v3387, 2
  %v3389 = vmax.f32 %v3387, %v3388
  %v3390 = vrot.slane %v3389, 1
  %v3391 = vmax.f32 %v3389, %v3390
  %v3392 = vmax.f32 %v3000, %v3008
  %v3393 = vmax.f32 %v3392, %v3016
  %v3394 = vmax.f32 %v3393, %v3024
  %v3395 = vrot.slane %v3394, 4
  %v3396 = vmax.f32 %v3394, %v3395
  %v3397 = vrot.slane %v3396, 2
  %v3398 = vmax.f32 %v3396, %v3397
  %v3399 = vrot.slane %v3398, 1
  %v3400 = vmax.f32 %v3398, %v3399
  %v3401 = vmax.f32 %v3001, %v3009
  %v3402 = vmax.f32 %v3401, %v3017
  %v3403 = vmax.f32 %v3402, %v3025
  %v3404 = vrot.slane %v3403, 4
  %v3405 = vmax.f32 %v3403, %v3404
  %v3406 = vrot.slane %v3405, 2
  %v3407 = vmax.f32 %v3405, %v3406
  %v3408 = vrot.slane %v3407, 1
  %v3409 = vmax.f32 %v3407, %v3408
  %v3410 = vmax.f32 %v3026, %v3034
  %v3411 = vmax.f32 %v3410, %v3042
  %v3412 = vmax.f32 %v3411, %v3050
  %v3413 = vrot.slane %v3412, 4
  %v3414 = vmax.f32 %v3412, %v3413
  %v3415 = vrot.slane %v3414, 2
  %v3416 = vmax.f32 %v3414, %v3415
  %v3417 = vrot.slane %v3416, 1
  %v3418 = vmax.f32 %v3416, %v3417
  %v3419 = vmax.f32 %v3027, %v3035
  %v3420 = vmax.f32 %v3419, %v3043
  %v3421 = vmax.f32 %v3420, %v3051
  %v3422 = vrot.slane %v3421, 4
  %v3423 = vmax.f32 %v3421, %v3422
  %v3424 = vrot.slane %v3423, 2
  %v3425 = vmax.f32 %v3423, %v3424
  %v3426 = vrot.slane %v3425, 1
  %v3427 = vmax.f32 %v3425, %v3426
  %v3428 = vmax.f32 %v3028, %v3036
  %v3429 = vmax.f32 %v3428, %v3044
  %v3430 = vmax.f32 %v3429, %v3052
  %v3431 = vrot.slane %v3430, 4
  %v3432 = vmax.f32 %v3430, %v3431
  %v3433 = vrot.slane %v3432, 2
  %v3434 = vmax.f32 %v3432, %v3433
  %v3435 = vrot.slane %v3434, 1
  %v3436 = vmax.f32 %v3434, %v3435
  %v3437 = vmax.f32 %v3029, %v3037
  %v3438 = vmax.f32 %v3437, %v3045
  %v3439 = vmax.f32 %v3438, %v3053
  %v3440 = vrot.slane %v3439, 4
  %v3441 = vmax.f32 %v3439, %v3440
  %v3442 = vrot.slane %v3441, 2
  %v3443 = vmax.f32 %v3441, %v3442
  %v3444 = vrot.slane %v3443, 1
  %v3445 = vmax.f32 %v3443, %v3444
  %v3446 = vmax.f32 %v3030, %v3038
  %v3447 = vmax.f32 %v3446, %v3046
  %v3448 = vmax.f32 %v3447, %v3054
  %v3449 = vrot.slane %v3448, 4
  %v3450 = vmax.f32 %v3448, %v3449
  %v3451 = vrot.slane %v3450, 2
  %v3452 = vmax.f32 %v3450, %v3451
  %v3453 = vrot.slane %v3452, 1
  %v3454 = vmax.f32 %v3452, %v3453
  %v3455 = vmax.f32 %v3031, %v3039
  %v3456 = vmax.f32 %v3455, %v3047
  %v3457 = vmax.f32 %v3456, %v3055
  %v3458 = vrot.slane %v3457, 4
  %v3459 = vmax.f32 %v3457, %v3458
  %v3460 = vrot.slane %v3459, 2
  %v3461 = vmax.f32 %v3459, %v3460
  %v3462 = vrot.slane %v3461, 1
  %v3463 = vmax.f32 %v3461, %v3462
  %v3464 = vmax.f32 %v3032, %v3040
  %v3465 = vmax.f32 %v3464, %v3048
  %v3466 = vmax.f32 %v3465, %v3056
  %v3467 = vrot.slane %v3466, 4
  %v3468 = vmax.f32 %v3466, %v3467
  %v3469 = vrot.slane %v3468, 2
  %v3470 = vmax.f32 %v3468, %v3469
  %v3471 = vrot.slane %v3470, 1
  %v3472 = vmax.f32 %v3470, %v3471
  %v3473 = vmax.f32 %v3033, %v3041
  %v3474 = vmax.f32 %v3473, %v3049
  %v3475 = vmax.f32 %v3474, %v3057
  %v3476 = vrot.slane %v3475, 4
  %v3477 = vmax.f32 %v3475, %v3476
  %v3478 = vrot.slane %v3477, 2
  %v3479 = vmax.f32 %v3477, %v3478
  %v3480 = vrot.slane %v3479, 1
  %v3481 = vmax.f32 %v3479, %v3480
  %v3482 = vmax.f32 %v3058, %v3066
  %v3483 = vmax.f32 %v3482, %v3074
  %v3484 = vmax.f32 %v3483, %v3082
  %v3485 = vrot.slane %v3484, 4
  %v3486 = vmax.f32 %v3484, %v3485
  %v3487 = vrot.slane %v3486, 2
  %v3488 = vmax.f32 %v3486, %v3487
  %v3489 = vrot.slane %v3488, 1
  %v3490 = vmax.f32 %v3488, %v3489
  %v3491 = vmax.f32 %v3059, %v3067
  %v3492 = vmax.f32 %v3491, %v3075
  %v3493 = vmax.f32 %v3492, %v3083
  %v3494 = vrot.slane %v3493, 4
  %v3495 = vmax.f32 %v3493, %v3494
  %v3496 = vrot.slane %v3495, 2
  %v3497 = vmax.f32 %v3495, %v3496
  %v3498 = vrot.slane %v3497, 1
  %v3499 = vmax.f32 %v3497, %v3498
  %v3500 = vmax.f32 %v3060, %v3068
  %v3501 = vmax.f32 %v3500, %v3076
  %v3502 = vmax.f32 %v3501, %v3084
  %v3503 = vrot.slane %v3502, 4
  %v3504 = vmax.f32 %v3502, %v3503
  %v3505 = vrot.slane %v3504, 2
  %v3506 = vmax.f32 %v3504, %v3505
  %v3507 = vrot.slane %v3506, 1
  %v3508 = vmax.f32 %v3506, %v3507
  %v3509 = vmax.f32 %v3061, %v3069
  %v3510 = vmax.f32 %v3509, %v3077
  %v3511 = vmax.f32 %v3510, %v3085
  %v3512 = vrot.slane %v3511, 4
  %v3513 = vmax.f32 %v3511, %v3512
  %v3514 = vrot.slane %v3513, 2
  %v3515 = vmax.f32 %v3513, %v3514
  %v3516 = vrot.slane %v3515, 1
  %v3517 = vmax.f32 %v3515, %v3516
  %v3518 = vmax.f32 %v3062, %v3070
  %v3519 = vmax.f32 %v3518, %v3078
  %v3520 = vmax.f32 %v3519, %v3086
  %v3521 = vrot.slane %v3520, 4
  %v3522 = vmax.f32 %v3520, %v3521
  %v3523 = vrot.slane %v3522, 2
  %v3524 = vmax.f32 %v3522, %v3523
  %v3525 = vrot.slane %v3524, 1
  %v3526 = vmax.f32 %v3524, %v3525
  %v3527 = vmax.f32 %v3063, %v3071
  %v3528 = vmax.f32 %v3527, %v3079
  %v3529 = vmax.f32 %v3528, %v3087
  %v3530 = vrot.slane %v3529, 4
  %v3531 = vmax.f32 %v3529, %v3530
  %v3532 = vrot.slane %v3531, 2
  %v3533 = vmax.f32 %v3531, %v3532
  %v3534 = vrot.slane %v3533, 1
  %v3535 = vmax.f32 %v3533, %v3534
  %v3536 = vmax.f32 %v3064, %v3072
  %v3537 = vmax.f32 %v3536, %v3080
  %v3538 = vmax.f32 %v3537, %v3088
  %v3539 = vrot.slane %v3538, 4
  %v3540 = vmax.f32 %v3538, %v3539
  %v3541 = vrot.slane %v3540, 2
  %v3542 = vmax.f32 %v3540, %v3541
  %v3543 = vrot.slane %v3542, 1
  %v3544 = vmax.f32 %v3542, %v3543
  %v3545 = vmax.f32 %v3065, %v3073
  %v3546 = vmax.f32 %v3545, %v3081
  %v3547 = vmax.f32 %v3546, %v3089
  %v3548 = vrot.slane %v3547, 4
  %v3549 = vmax.f32 %v3547, %v3548
  %v3550 = vrot.slane %v3549, 2
  %v3551 = vmax.f32 %v3549, %v3550
  %v3552 = vrot.slane %v3551, 1
  %v3553 = vmax.f32 %v3551, %v3552
  %v3554 = vmax.f32 %v3090, %v3098
  %v3555 = vmax.f32 %v3554, %v3106
  %v3556 = vmax.f32 %v3555, %v3114
  %v3557 = vrot.slane %v3556, 4
  %v3558 = vmax.f32 %v3556, %v3557
  %v3559 = vrot.slane %v3558, 2
  %v3560 = vmax.f32 %v3558, %v3559
  %v3561 = vrot.slane %v3560, 1
  %v3562 = vmax.f32 %v3560, %v3561
  %v3563 = vmax.f32 %v3091, %v3099
  %v3564 = vmax.f32 %v3563, %v3107
  %v3565 = vmax.f32 %v3564, %v3115
  %v3566 = vrot.slane %v3565, 4
  %v3567 = vmax.f32 %v3565, %v3566
  %v3568 = vrot.slane %v3567, 2
  %v3569 = vmax.f32 %v3567, %v3568
  %v3570 = vrot.slane %v3569, 1
  %v3571 = vmax.f32 %v3569, %v3570
  %v3572 = vmax.f32 %v3092, %v3100
  %v3573 = vmax.f32 %v3572, %v3108
  %v3574 = vmax.f32 %v3573, %v3116
  %v3575 = vrot.slane %v3574, 4
  %v3576 = vmax.f32 %v3574, %v3575
  %v3577 = vrot.slane %v3576, 2
  %v3578 = vmax.f32 %v3576, %v3577
  %v3579 = vrot.slane %v3578, 1
  %v3580 = vmax.f32 %v3578, %v3579
  %v3581 = vmax.f32 %v3093, %v3101
  %v3582 = vmax.f32 %v3581, %v3109
  %v3583 = vmax.f32 %v3582, %v3117
  %v3584 = vrot.slane %v3583, 4
  %v3585 = vmax.f32 %v3583, %v3584
  %v3586 = vrot.slane %v3585, 2
  %v3587 = vmax.f32 %v3585, %v3586
  %v3588 = vrot.slane %v3587, 1
  %v3589 = vmax.f32 %v3587, %v3588
  %v3590 = vmax.f32 %v3094, %v3102
  %v3591 = vmax.f32 %v3590, %v3110
  %v3592 = vmax.f32 %v3591, %v3118
  %v3593 = vrot.slane %v3592, 4
  %v3594 = vmax.f32 %v3592, %v3593
  %v3595 = vrot.slane %v3594, 2
  %v3596 = vmax.f32 %v3594, %v3595
  %v3597 = vrot.slane %v3596, 1
  %v3598 = vmax.f32 %v3596, %v3597
  %v3599 = vmax.f32 %v3095, %v3103
  %v3600 = vmax.f32 %v3599, %v3111
  %v3601 = vmax.f32 %v3600, %v3119
  %v3602 = vrot.slane %v3601, 4
  %v3603 = vmax.f32 %v3601, %v3602
  %v3604 = vrot.slane %v3603, 2
  %v3605 = vmax.f32 %v3603, %v3604
  %v3606 = vrot.slane %v3605, 1
  %v3607 = vmax.f32 %v3605, %v3606
  %v3608 = vmax.f32 %v3096, %v3104
  %v3609 = vmax.f32 %v3608, %v3112
  %v3610 = vmax.f32 %v3609, %v3120
  %v3611 = vrot.slane %v3610, 4
  %v3612 = vmax.f32 %v3610, %v3611
  %v3613 = vrot.slane %v3612, 2
  %v3614 = vmax.f32 %v3612, %v3613
  %v3615 = vrot.slane %v3614, 1
  %v3616 = vmax.f32 %v3614, %v3615
  %v3617 = vmax.f32 %v3097, %v3105
  %v3618 = vmax.f32 %v3617, %v3113
  %v3619 = vmax.f32 %v3618, %v3121
  %v3620 = vrot.slane %v3619, 4
  %v3621 = vmax.f32 %v3619, %v3620
  %v3622 = vrot.slane %v3621, 2
  %v3623 = vmax.f32 %v3621, %v3622
  %v3624 = vrot.slane %v3623, 1
  %v3625 = vmax.f32 %v3623, %v3624
  %v3626 = vmax.f32 %v3122, %v3130
  %v3627 = vmax.f32 %v3626, %v3138
  %v3628 = vmax.f32 %v3627, %v3146
  %v3629 = vrot.slane %v3628, 4
  %v3630 = vmax.f32 %v3628, %v3629
  %v3631 = vrot.slane %v3630, 2
  %v3632 = vmax.f32 %v3630, %v3631
  %v3633 = vrot.slane %v3632, 1
  %v3634 = vmax.f32 %v3632, %v3633
  %v3635 = vmax.f32 %v3123, %v3131
  %v3636 = vmax.f32 %v3635, %v3139
  %v3637 = vmax.f32 %v3636, %v3147
  %v3638 = vrot.slane %v3637, 4
  %v3639 = vmax.f32 %v3637, %v3638
  %v3640 = vrot.slane %v3639, 2
  %v3641 = vmax.f32 %v3639, %v3640
  %v3642 = vrot.slane %v3641, 1
  %v3643 = vmax.f32 %v3641, %v3642
  %v3644 = vmax.f32 %v3124, %v3132
  %v3645 = vmax.f32 %v3644, %v3140
  %v3646 = vmax.f32 %v3645, %v3148
  %v3647 = vrot.slane %v3646, 4
  %v3648 = vmax.f32 %v3646, %v3647
  %v3649 = vrot.slane %v3648, 2
  %v3650 = vmax.f32 %v3648, %v3649
  %v3651 = vrot.slane %v3650, 1
  %v3652 = vmax.f32 %v3650, %v3651
  %v3653 = vmax.f32 %v3125, %v3133
  %v3654 = vmax.f32 %v3653, %v3141
  %v3655 = vmax.f32 %v3654, %v3149
  %v3656 = vrot.slane %v3655, 4
  %v3657 = vmax.f32 %v3655, %v3656
  %v3658 = vrot.slane %v3657, 2
  %v3659 = vmax.f32 %v3657, %v3658
  %v3660 = vrot.slane %v3659, 1
  %v3661 = vmax.f32 %v3659, %v3660
  %v3662 = vmax.f32 %v3126, %v3134
  %v3663 = vmax.f32 %v3662, %v3142
  %v3664 = vmax.f32 %v3663, %v3150
  %v3665 = vrot.slane %v3664, 4
  %v3666 = vmax.f32 %v3664, %v3665
  %v3667 = vrot.slane %v3666, 2
  %v3668 = vmax.f32 %v3666, %v3667
  %v3669 = vrot.slane %v3668, 1
  %v3670 = vmax.f32 %v3668, %v3669
  %v3671 = vmax.f32 %v3127, %v3135
  %v3672 = vmax.f32 %v3671, %v3143
  %v3673 = vmax.f32 %v3672, %v3151
  %v3674 = vrot.slane %v3673, 4
  %v3675 = vmax.f32 %v3673, %v3674
  %v3676 = vrot.slane %v3675, 2
  %v3677 = vmax.f32 %v3675, %v3676
  %v3678 = vrot.slane %v3677, 1
  %v3679 = vmax.f32 %v3677, %v3678
  %v3680 = vmax.f32 %v3128, %v3136
  %v3681 = vmax.f32 %v3680, %v3144
  %v3682 = vmax.f32 %v3681, %v3152
  %v3683 = vrot.slane %v3682, 4
  %v3684 = vmax.f32 %v3682, %v3683
  %v3685 = vrot.slane %v3684, 2
  %v3686 = vmax.f32 %v3684, %v3685
  %v3687 = vrot.slane %v3686, 1
  %v3688 = vmax.f32 %v3686, %v3687
  %v3689 = vmax.f32 %v3129, %v3137
  %v3690 = vmax.f32 %v3689, %v3145
  %v3691 = vmax.f32 %v3690, %v3153
  %v3692 = vrot.slane %v3691, 4
  %v3693 = vmax.f32 %v3691, %v3692
  %v3694 = vrot.slane %v3693, 2
  %v3695 = vmax.f32 %v3693, %v3694
  %v3696 = vrot.slane %v3695, 1
  %v3697 = vmax.f32 %v3695, %v3696
  %v3698 = vmax.f32 %v3154, %v3162
  %v3699 = vmax.f32 %v3698, %v3170
  %v3700 = vmax.f32 %v3699, %v3178
  %v3701 = vrot.slane %v3700, 4
  %v3702 = vmax.f32 %v3700, %v3701
  %v3703 = vrot.slane %v3702, 2
  %v3704 = vmax.f32 %v3702, %v3703
  %v3705 = vrot.slane %v3704, 1
  %v3706 = vmax.f32 %v3704, %v3705
  %v3707 = vmax.f32 %v3155, %v3163
  %v3708 = vmax.f32 %v3707, %v3171
  %v3709 = vmax.f32 %v3708, %v3179
  %v3710 = vrot.slane %v3709, 4
  %v3711 = vmax.f32 %v3709, %v3710
  %v3712 = vrot.slane %v3711, 2
  %v3713 = vmax.f32 %v3711, %v3712
  %v3714 = vrot.slane %v3713, 1
  %v3715 = vmax.f32 %v3713, %v3714
  %v3716 = vmax.f32 %v3156, %v3164
  %v3717 = vmax.f32 %v3716, %v3172
  %v3718 = vmax.f32 %v3717, %v3180
  %v3719 = vrot.slane %v3718, 4
  %v3720 = vmax.f32 %v3718, %v3719
  %v3721 = vrot.slane %v3720, 2
  %v3722 = vmax.f32 %v3720, %v3721
  %v3723 = vrot.slane %v3722, 1
  %v3724 = vmax.f32 %v3722, %v3723
  %v3725 = vmax.f32 %v3157, %v3165
  %v3726 = vmax.f32 %v3725, %v3173
  %v3727 = vmax.f32 %v3726, %v3181
  %v3728 = vrot.slane %v3727, 4
  %v3729 = vmax.f32 %v3727, %v3728
  %v3730 = vrot.slane %v3729, 2
  %v3731 = vmax.f32 %v3729, %v3730
  %v3732 = vrot.slane %v3731, 1
  %v3733 = vmax.f32 %v3731, %v3732
  %v3734 = vmax.f32 %v3158, %v3166
  %v3735 = vmax.f32 %v3734, %v3174
  %v3736 = vmax.f32 %v3735, %v3182
  %v3737 = vrot.slane %v3736, 4
  %v3738 = vmax.f32 %v3736, %v3737
  %v3739 = vrot.slane %v3738, 2
  %v3740 = vmax.f32 %v3738, %v3739
  %v3741 = vrot.slane %v3740, 1
  %v3742 = vmax.f32 %v3740, %v3741
  %v3743 = vmax.f32 %v3159, %v3167
  %v3744 = vmax.f32 %v3743, %v3175
  %v3745 = vmax.f32 %v3744, %v3183
  %v3746 = vrot.slane %v3745, 4
  %v3747 = vmax.f32 %v3745, %v3746
  %v3748 = vrot.slane %v3747, 2
  %v3749 = vmax.f32 %v3747, %v3748
  %v3750 = vrot.slane %v3749, 1
  %v3751 = vmax.f32 %v3749, %v3750
  %v3752 = vmax.f32 %v3160, %v3168
  %v3753 = vmax.f32 %v3752, %v3176
  %v3754 = vmax.f32 %v3753, %v3184
  %v3755 = vrot.slane %v3754, 4
  %v3756 = vmax.f32 %v3754, %v3755
  %v3757 = vrot.slane %v3756, 2
  %v3758 = vmax.f32 %v3756, %v3757
  %v3759 = vrot.slane %v3758, 1
  %v3760 = vmax.f32 %v3758, %v3759
  %v3761 = vmax.f32 %v3161, %v3169
  %v3762 = vmax.f32 %v3761, %v3177
  %v3763 = vmax.f32 %v3762, %v3185
  %v3764 = vrot.slane %v3763, 4
  %v3765 = vmax.f32 %v3763, %v3764
  %v3766 = vrot.slane %v3765, 2
  %v3767 = vmax.f32 %v3765, %v3766
  %v3768 = vrot.slane %v3767, 1
  %v3769 = vmax.f32 %v3767, %v3768
  %vm3834 = vcmask 1041409
  %v3835 = vsel %vm3834, %v3274, %v3202
  %vm3836 = vcmask 1042434
  %v3837 = vsel %vm3836, %v3346, %v3835
  %vm3838 = vcmask 1043459
  %v3839 = vsel %vm3838, %v3418, %v3837
  %vm3840 = vcmask 1044484
  %v3841 = vsel %vm3840, %v3490, %v3839
  %vm3842 = vcmask 1045509
  %v3843 = vsel %vm3842, %v3562, %v3841
  %vm3844 = vcmask 1046534
  %v3845 = vsel %vm3844, %v3634, %v3843
  %vm3846 = vcmask 1047559
  %v3847 = vsel %vm3846, %v3706, %v3845
  %v3848 = vsel %vm3834, %v3283, %v3211
  %v3849 = vsel %vm3836, %v3355, %v3848
  %v3850 = vsel %vm3838, %v3427, %v3849
  %v3851 = vsel %vm3840, %v3499, %v3850
  %v3852 = vsel %vm3842, %v3571, %v3851
  %v3853 = vsel %vm3844, %v3643, %v3852
  %v3854 = vsel %vm3846, %v3715, %v3853
  %v3855 = vsel %vm3834, %v3292, %v3220
  %v3856 = vsel %vm3836, %v3364, %v3855
  %v3857 = vsel %vm3838, %v3436, %v3856
  %v3858 = vsel %vm3840, %v3508, %v3857
  %v3859 = vsel %vm3842, %v3580, %v3858
  %v3860 = vsel %vm3844, %v3652, %v3859
  %v3861 = vsel %vm3846, %v3724, %v3860
  %v3862 = vsel %vm3834, %v3301, %v3229
  %v3863 = vsel %vm3836, %v3373, %v3862
  %v3864 = vsel %vm3838, %v3445, %v3863
  %v3865 = vsel %vm3840, %v3517, %v3864
  %v3866 = vsel %vm3842, %v3589, %v3865
  %v3867 = vsel %vm3844, %v3661, %v3866
  %v3868 = vsel %vm3846, %v3733, %v3867
  %v3869 = vsel %vm3834, %v3310, %v3238
  %v3870 = vsel %vm3836, %v3382, %v3869
  %v3871 = vsel %vm3838, %v3454, %v3870
  %v3872 = vsel %vm3840, %v3526, %v3871
  %v3873 = vsel %vm3842, %v3598, %v3872
  %v3874 = vsel %vm3844, %v3670, %v3873
  %v3875 = vsel %vm3846, %v3742, %v3874
  %v3876 = vsel %vm3834, %v3319, %v3247
  %v3877 = vsel %vm3836, %v3391, %v3876
  %v3878 = vsel %vm3838, %v3463, %v3877
  %v3879 = vsel %vm3840, %v3535, %v3878
  %v3880 = vsel %vm3842, %v3607, %v3879
  %v3881 = vsel %vm3844, %v3679, %v3880
  %v3882 = vsel %vm3846, %v3751, %v3881
  %v3883 = vsel %vm3834, %v3328, %v3256
  %v3884 = vsel %vm3836, %v3400, %v3883
  %v3885 = vsel %vm3838, %v3472, %v3884
  %v3886 = vsel %vm3840, %v3544, %v3885
  %v3887 = vsel %vm3842, %v3616, %v3886
  %v3888 = vsel %vm3844, %v3688, %v3887
  %v3889 = vsel %vm3846, %v3760, %v3888
  %v3890 = vsel %vm3834, %v3337, %v3265
  %v3891 = vsel %vm3836, %v3409, %v3890
  %v3892 = vsel %vm3838, %v3481, %v3891
  %v3893 = vsel %vm3840, %v3553, %v3892
  %v3894 = vsel %vm3842, %v3625, %v3893
  %v3895 = vsel %vm3844, %v3697, %v3894
  %v3896 = vsel %vm3846, %v3769, %v3895
  %v3905 = vmax.f32 %v3186, %v3847
  %v3906 = vmax.f32 %v3187, %v3854
  %v3907 = vmax.f32 %v3188, %v3861
  %v3908 = vmax.f32 %v3189, %v3868
  %v3909 = vmax.f32 %v3190, %v3875
  %v3910 = vmax.f32 %v3191, %v3882
  %v3911 = vmax.f32 %v3192, %v3889
  %v3912 = vmax.f32 %v3193, %v3896
  %3913 = vst [vmem:[#allocation2] sm:$0xff] %v3905
  %3914 = vst [vmem:[#allocation2 + $0x8] sm:$0xff] %v3906
  %3915 = vst [vmem:[#allocation2 + $0x10] sm:$0xff] %v3907
  %3916 = vst [vmem:[#allocation2 + $0x18] sm:$0xff] %v3908
  %3917 = vst [vmem:[#allocation2 + $0x20] sm:$0xff] %v3909
  %3918 = vst [vmem:[#allocation2 + $0x28] sm:$0xff] %v3910
  %3919 = vst [vmem:[#allocation2 + $0x30] sm:$0xff] %v3911
  %3920 = vst [vmem:[#allocation2 + $0x38] sm:$0xff] %v3912
  // Predicated region
  $region82: #{tnetkd_forward.1} parent=0 // pred_check
    %p3921 = pneg %p63
  $region83: #{tnetkd_forward.1} parent=0 // pred_check_branch
    %3923 = sbr.rel (%p3921) target = $region85
  $region84: #{tnetkd_forward.1} parent=0 // pred_region
    %v3924 = vld [vmem:[#allocation2] sm:$0xff]
    %v3925 = vld [vmem:[#allocation2 + $0x8] sm:$0xff]
    %v3926 = vld [vmem:[#allocation2 + $0x10] sm:$0xff]
    %v3927 = vld [vmem:[#allocation2 + $0x18] sm:$0xff]
    %v3928 = vld [vmem:[#allocation2 + $0x20] sm:$0xff]
    %v3929 = vld [vmem:[#allocation2 + $0x28] sm:$0xff]
    %v3930 = vld [vmem:[#allocation2 + $0x30] sm:$0xff]
    %v3931 = vld [vmem:[#allocation2 + $0x38] sm:$0xff]
    %v3932 = vpack.c.bf16 %v3924, %v3924
    %v3933 = vpack.c.bf16 %v3925, %v3925
    %v3934 = vpack.c.bf16 %v3926, %v3926
    %v3935 = vpack.c.bf16 %v3927, %v3927
    %v3936 = vpack.c.bf16 %v3928, %v3928
    %v3937 = vpack.c.bf16 %v3929, %v3929
    %v3938 = vpack.c.bf16 %v3930, %v3930
    %v3939 = vpack.c.bf16 %v3931, %v3931
    %v3940 = vld [vmem:[%s10] sm:$0xff]
    %v3941 = vld [vmem:[%s10 + $0x8] sm:$0xff]
    %v3942 = vld [vmem:[%s10 + $0x10] sm:$0xff]
    %v3943 = vld [vmem:[%s10 + $0x18] sm:$0xff]
    %v3944 = vld [vmem:[%s10 + $0x20] sm:$0xff]
    %v3945 = vld [vmem:[%s10 + $0x28] sm:$0xff]
    %v3946 = vld [vmem:[%s10 + $0x30] sm:$0xff]
    %v3947 = vld [vmem:[%s10 + $0x38] sm:$0xff]
    %v3948 = vld [vmem:[%s10 + $0x40] sm:$0xff]
    %v3949 = vld [vmem:[%s10 + $0x48] sm:$0xff]
    %v3950 = vld [vmem:[%s10 + $0x50] sm:$0xff]
    %v3951 = vld [vmem:[%s10 + $0x58] sm:$0xff]
    %v3952 = vld [vmem:[%s10 + $0x60] sm:$0xff]
    %v3953 = vld [vmem:[%s10 + $0x68] sm:$0xff]
    %v3954 = vld [vmem:[%s10 + $0x70] sm:$0xff]
    %v3955 = vld [vmem:[%s10 + $0x78] sm:$0xff]
    %v3956 = vld [vmem:[%s10 + $0x80] sm:$0xff]
    %v3957 = vld [vmem:[%s10 + $0x88] sm:$0xff]
    %v3958 = vld [vmem:[%s10 + $0x90] sm:$0xff]
    %v3959 = vld [vmem:[%s10 + $0x98] sm:$0xff]
    %v3960 = vld [vmem:[%s10 + $0xa0] sm:$0xff]
    %v3961 = vld [vmem:[%s10 + $0xa8] sm:$0xff]
    %v3962 = vld [vmem:[%s10 + $0xb0] sm:$0xff]
    %v3963 = vld [vmem:[%s10 + $0xb8] sm:$0xff]
    %v3964 = vld [vmem:[%s10 + $0xc0] sm:$0xff]
    %v3965 = vld [vmem:[%s10 + $0xc8] sm:$0xff]
    %v3966 = vld [vmem:[%s10 + $0xd0] sm:$0xff]
    %v3967 = vld [vmem:[%s10 + $0xd8] sm:$0xff]
    %v3968 = vld [vmem:[%s10 + $0xe0] sm:$0xff]
    %v3969 = vld [vmem:[%s10 + $0xe8] sm:$0xff]
    %v3970 = vld [vmem:[%s10 + $0xf0] sm:$0xff]
    %v3971 = vld [vmem:[%s10 + $0xf8] sm:$0xff]
    %v3972 = vld [vmem:[%s10 + $0x100] sm:$0xff]
    %v3973 = vld [vmem:[%s10 + $0x108] sm:$0xff]
    %v3974 = vld [vmem:[%s10 + $0x110] sm:$0xff]
    %v3975 = vld [vmem:[%s10 + $0x118] sm:$0xff]
    %v3976 = vld [vmem:[%s10 + $0x120] sm:$0xff]
    %v3977 = vld [vmem:[%s10 + $0x128] sm:$0xff]
    %v3978 = vld [vmem:[%s10 + $0x130] sm:$0xff]
    %v3979 = vld [vmem:[%s10 + $0x138] sm:$0xff]
    %v3980 = vld [vmem:[%s10 + $0x140] sm:$0xff]
    %v3981 = vld [vmem:[%s10 + $0x148] sm:$0xff]
    %v3982 = vld [vmem:[%s10 + $0x150] sm:$0xff]
    %v3983 = vld [vmem:[%s10 + $0x158] sm:$0xff]
    %v3984 = vld [vmem:[%s10 + $0x160] sm:$0xff]
    %v3985 = vld [vmem:[%s10 + $0x168] sm:$0xff]
    %v3986 = vld [vmem:[%s10 + $0x170] sm:$0xff]
    %v3987 = vld [vmem:[%s10 + $0x178] sm:$0xff]
    %v3988 = vld [vmem:[%s10 + $0x180] sm:$0xff]
    %v3989 = vld [vmem:[%s10 + $0x188] sm:$0xff]
    %v3990 = vld [vmem:[%s10 + $0x190] sm:$0xff]
    %v3991 = vld [vmem:[%s10 + $0x198] sm:$0xff]
    %v3992 = vld [vmem:[%s10 + $0x1a0] sm:$0xff]
    %v3993 = vld [vmem:[%s10 + $0x1a8] sm:$0xff]
    %v3994 = vld [vmem:[%s10 + $0x1b0] sm:$0xff]
    %v3995 = vld [vmem:[%s10 + $0x1b8] sm:$0xff]
    %v3996 = vld [vmem:[%s10 + $0x1c0] sm:$0xff]
    %v3997 = vld [vmem:[%s10 + $0x1c8] sm:$0xff]
    %v3998 = vld [vmem:[%s10 + $0x1d0] sm:$0xff]
    %v3999 = vld [vmem:[%s10 + $0x1d8] sm:$0xff]
    %v4000 = vld [vmem:[%s10 + $0x1e0] sm:$0xff]
    %v4001 = vld [vmem:[%s10 + $0x1e8] sm:$0xff]
    %v4002 = vld [vmem:[%s10 + $0x1f0] sm:$0xff]
    %v4003 = vld [vmem:[%s10 + $0x1f8] sm:$0xff]
    %v4004 = vld [vmem:[%s10 + $0x200] sm:$0xff]
    %v4005 = vld [vmem:[%s10 + $0x208] sm:$0xff]
    %v4006 = vld [vmem:[%s10 + $0x210] sm:$0xff]
    %v4007 = vld [vmem:[%s10 + $0x218] sm:$0xff]
    %v4008 = vld [vmem:[%s10 + $0x220] sm:$0xff]
    %v4009 = vld [vmem:[%s10 + $0x228] sm:$0xff]
    %v4010 = vld [vmem:[%s10 + $0x230] sm:$0xff]
    %v4011 = vld [vmem:[%s10 + $0x238] sm:$0xff]
    %v4012 = vld [vmem:[%s10 + $0x240] sm:$0xff]
    %v4013 = vld [vmem:[%s10 + $0x248] sm:$0xff]
    %v4014 = vld [vmem:[%s10 + $0x250] sm:$0xff]
    %v4015 = vld [vmem:[%s10 + $0x258] sm:$0xff]
    %v4016 = vld [vmem:[%s10 + $0x260] sm:$0xff]
    %v4017 = vld [vmem:[%s10 + $0x268] sm:$0xff]
    %v4018 = vld [vmem:[%s10 + $0x270] sm:$0xff]
    %v4019 = vld [vmem:[%s10 + $0x278] sm:$0xff]
    %v4020 = vld [vmem:[%s10 + $0x280] sm:$0xff]
    %v4021 = vld [vmem:[%s10 + $0x288] sm:$0xff]
    %v4022 = vld [vmem:[%s10 + $0x290] sm:$0xff]
    %v4023 = vld [vmem:[%s10 + $0x298] sm:$0xff]
    %v4024 = vld [vmem:[%s10 + $0x2a0] sm:$0xff]
    %v4025 = vld [vmem:[%s10 + $0x2a8] sm:$0xff]
    %v4026 = vld [vmem:[%s10 + $0x2b0] sm:$0xff]
    %v4027 = vld [vmem:[%s10 + $0x2b8] sm:$0xff]
    %v4028 = vld [vmem:[%s10 + $0x2c0] sm:$0xff]
    %v4029 = vld [vmem:[%s10 + $0x2c8] sm:$0xff]
    %v4030 = vld [vmem:[%s10 + $0x2d0] sm:$0xff]
    %v4031 = vld [vmem:[%s10 + $0x2d8] sm:$0xff]
    %v4032 = vld [vmem:[%s10 + $0x2e0] sm:$0xff]
    %v4033 = vld [vmem:[%s10 + $0x2e8] sm:$0xff]
    %v4034 = vld [vmem:[%s10 + $0x2f0] sm:$0xff]
    %v4035 = vld [vmem:[%s10 + $0x2f8] sm:$0xff]
    %v4036 = vld [vmem:[%s10 + $0x300] sm:$0xff]
    %v4037 = vld [vmem:[%s10 + $0x308] sm:$0xff]
    %v4038 = vld [vmem:[%s10 + $0x310] sm:$0xff]
    %v4039 = vld [vmem:[%s10 + $0x318] sm:$0xff]
    %v4040 = vld [vmem:[%s10 + $0x320] sm:$0xff]
    %v4041 = vld [vmem:[%s10 + $0x328] sm:$0xff]
    %v4042 = vld [vmem:[%s10 + $0x330] sm:$0xff]
    %v4043 = vld [vmem:[%s10 + $0x338] sm:$0xff]
    %v4044 = vld [vmem:[%s10 + $0x340] sm:$0xff]
    %v4045 = vld [vmem:[%s10 + $0x348] sm:$0xff]
    %v4046 = vld [vmem:[%s10 + $0x350] sm:$0xff]
    %v4047 = vld [vmem:[%s10 + $0x358] sm:$0xff]
    %v4048 = vld [vmem:[%s10 + $0x360] sm:$0xff]
    %v4049 = vld [vmem:[%s10 + $0x368] sm:$0xff]
    %v4050 = vld [vmem:[%s10 + $0x370] sm:$0xff]
    %v4051 = vld [vmem:[%s10 + $0x378] sm:$0xff]
    %v4052 = vld [vmem:[%s10 + $0x380] sm:$0xff]
    %v4053 = vld [vmem:[%s10 + $0x388] sm:$0xff]
    %v4054 = vld [vmem:[%s10 + $0x390] sm:$0xff]
    %v4055 = vld [vmem:[%s10 + $0x398] sm:$0xff]
    %v4056 = vld [vmem:[%s10 + $0x3a0] sm:$0xff]
    %v4057 = vld [vmem:[%s10 + $0x3a8] sm:$0xff]
    %v4058 = vld [vmem:[%s10 + $0x3b0] sm:$0xff]
    %v4059 = vld [vmem:[%s10 + $0x3b8] sm:$0xff]
    %v4060 = vld [vmem:[%s10 + $0x3c0] sm:$0xff]
    %v4061 = vld [vmem:[%s10 + $0x3c8] sm:$0xff]
    %v4062 = vld [vmem:[%s10 + $0x3d0] sm:$0xff]
    %v4063 = vld [vmem:[%s10 + $0x3d8] sm:$0xff]
    %v4064 = vld [vmem:[%s10 + $0x3e0] sm:$0xff]
    %v4065 = vld [vmem:[%s10 + $0x3e8] sm:$0xff]
    %v4066 = vld [vmem:[%s10 + $0x3f0] sm:$0xff]
    %v4067 = vld [vmem:[%s10 + $0x3f8] sm:$0xff]
    %v4068 = vld [vmem:[%s10 + $0x400] sm:$0xff]
    %v4069 = vld [vmem:[%s10 + $0x408] sm:$0xff]
    %v4070 = vld [vmem:[%s10 + $0x410] sm:$0xff]
    %v4071 = vld [vmem:[%s10 + $0x418] sm:$0xff]
    %v4072 = vld [vmem:[%s10 + $0x420] sm:$0xff]
    %v4073 = vld [vmem:[%s10 + $0x428] sm:$0xff]
    %v4074 = vld [vmem:[%s10 + $0x430] sm:$0xff]
    %v4075 = vld [vmem:[%s10 + $0x438] sm:$0xff]
    %v4076 = vld [vmem:[%s10 + $0x440] sm:$0xff]
    %v4077 = vld [vmem:[%s10 + $0x448] sm:$0xff]
    %v4078 = vld [vmem:[%s10 + $0x450] sm:$0xff]
    %v4079 = vld [vmem:[%s10 + $0x458] sm:$0xff]
    %v4080 = vld [vmem:[%s10 + $0x460] sm:$0xff]
    %v4081 = vld [vmem:[%s10 + $0x468] sm:$0xff]
    %v4082 = vld [vmem:[%s10 + $0x470] sm:$0xff]
    %v4083 = vld [vmem:[%s10 + $0x478] sm:$0xff]
    %v4084 = vld [vmem:[%s10 + $0x480] sm:$0xff]
    %v4085 = vld [vmem:[%s10 + $0x488] sm:$0xff]
    %v4086 = vld [vmem:[%s10 + $0x490] sm:$0xff]
    %v4087 = vld [vmem:[%s10 + $0x498] sm:$0xff]
    %v4088 = vld [vmem:[%s10 + $0x4a0] sm:$0xff]
    %v4089 = vld [vmem:[%s10 + $0x4a8] sm:$0xff]
    %v4090 = vld [vmem:[%s10 + $0x4b0] sm:$0xff]
    %v4091 = vld [vmem:[%s10 + $0x4b8] sm:$0xff]
    %v4092 = vld [vmem:[%s10 + $0x4c0] sm:$0xff]
    %v4093 = vld [vmem:[%s10 + $0x4c8] sm:$0xff]
    %v4094 = vld [vmem:[%s10 + $0x4d0] sm:$0xff]
    %v4095 = vld [vmem:[%s10 + $0x4d8] sm:$0xff]
    %v4096 = vld [vmem:[%s10 + $0x4e0] sm:$0xff]
    %v4097 = vld [vmem:[%s10 + $0x4e8] sm:$0xff]
    %v4098 = vld [vmem:[%s10 + $0x4f0] sm:$0xff]
    %v4099 = vld [vmem:[%s10 + $0x4f8] sm:$0xff]
    %v4100 = vld [vmem:[%s10 + $0x500] sm:$0xff]
    %v4101 = vld [vmem:[%s10 + $0x508] sm:$0xff]
    %v4102 = vld [vmem:[%s10 + $0x510] sm:$0xff]
    %v4103 = vld [vmem:[%s10 + $0x518] sm:$0xff]
    %v4104 = vld [vmem:[%s10 + $0x520] sm:$0xff]
    %v4105 = vld [vmem:[%s10 + $0x528] sm:$0xff]
    %v4106 = vld [vmem:[%s10 + $0x530] sm:$0xff]
    %v4107 = vld [vmem:[%s10 + $0x538] sm:$0xff]
    %v4108 = vld [vmem:[%s10 + $0x540] sm:$0xff]
    %v4109 = vld [vmem:[%s10 + $0x548] sm:$0xff]
    %v4110 = vld [vmem:[%s10 + $0x550] sm:$0xff]
    %v4111 = vld [vmem:[%s10 + $0x558] sm:$0xff]
    %v4112 = vld [vmem:[%s10 + $0x560] sm:$0xff]
    %v4113 = vld [vmem:[%s10 + $0x568] sm:$0xff]
    %v4114 = vld [vmem:[%s10 + $0x570] sm:$0xff]
    %v4115 = vld [vmem:[%s10 + $0x578] sm:$0xff]
    %v4116 = vld [vmem:[%s10 + $0x580] sm:$0xff]
    %v4117 = vld [vmem:[%s10 + $0x588] sm:$0xff]
    %v4118 = vld [vmem:[%s10 + $0x590] sm:$0xff]
    %v4119 = vld [vmem:[%s10 + $0x598] sm:$0xff]
    %v4120 = vld [vmem:[%s10 + $0x5a0] sm:$0xff]
    %v4121 = vld [vmem:[%s10 + $0x5a8] sm:$0xff]
    %v4122 = vld [vmem:[%s10 + $0x5b0] sm:$0xff]
    %v4123 = vld [vmem:[%s10 + $0x5b8] sm:$0xff]
    %v4124 = vld [vmem:[%s10 + $0x5c0] sm:$0xff]
    %v4125 = vld [vmem:[%s10 + $0x5c8] sm:$0xff]
    %v4126 = vld [vmem:[%s10 + $0x5d0] sm:$0xff]
    %v4127 = vld [vmem:[%s10 + $0x5d8] sm:$0xff]
    %v4128 = vld [vmem:[%s10 + $0x5e0] sm:$0xff]
    %v4129 = vld [vmem:[%s10 + $0x5e8] sm:$0xff]
    %v4130 = vld [vmem:[%s10 + $0x5f0] sm:$0xff]
    %v4131 = vld [vmem:[%s10 + $0x5f8] sm:$0xff]
    %v4132 = vld [vmem:[%s10 + $0x600] sm:$0xff]
    %v4133 = vld [vmem:[%s10 + $0x608] sm:$0xff]
    %v4134 = vld [vmem:[%s10 + $0x610] sm:$0xff]
    %v4135 = vld [vmem:[%s10 + $0x618] sm:$0xff]
    %v4136 = vld [vmem:[%s10 + $0x620] sm:$0xff]
    %v4137 = vld [vmem:[%s10 + $0x628] sm:$0xff]
    %v4138 = vld [vmem:[%s10 + $0x630] sm:$0xff]
    %v4139 = vld [vmem:[%s10 + $0x638] sm:$0xff]
    %v4140 = vld [vmem:[%s10 + $0x640] sm:$0xff]
    %v4141 = vld [vmem:[%s10 + $0x648] sm:$0xff]
    %v4142 = vld [vmem:[%s10 + $0x650] sm:$0xff]
    %v4143 = vld [vmem:[%s10 + $0x658] sm:$0xff]
    %v4144 = vld [vmem:[%s10 + $0x660] sm:$0xff]
    %v4145 = vld [vmem:[%s10 + $0x668] sm:$0xff]
    %v4146 = vld [vmem:[%s10 + $0x670] sm:$0xff]
    %v4147 = vld [vmem:[%s10 + $0x678] sm:$0xff]
    %v4148 = vld [vmem:[%s10 + $0x680] sm:$0xff]
    %v4149 = vld [vmem:[%s10 + $0x688] sm:$0xff]
    %v4150 = vld [vmem:[%s10 + $0x690] sm:$0xff]
    %v4151 = vld [vmem:[%s10 + $0x698] sm:$0xff]
    %v4152 = vld [vmem:[%s10 + $0x6a0] sm:$0xff]
    %v4153 = vld [vmem:[%s10 + $0x6a8] sm:$0xff]
    %v4154 = vld [vmem:[%s10 + $0x6b0] sm:$0xff]
    %v4155 = vld [vmem:[%s10 + $0x6b8] sm:$0xff]
    %v4156 = vld [vmem:[%s10 + $0x6c0] sm:$0xff]
    %v4157 = vld [vmem:[%s10 + $0x6c8] sm:$0xff]
    %v4158 = vld [vmem:[%s10 + $0x6d0] sm:$0xff]
    %v4159 = vld [vmem:[%s10 + $0x6d8] sm:$0xff]
    %v4160 = vld [vmem:[%s10 + $0x6e0] sm:$0xff]
    %v4161 = vld [vmem:[%s10 + $0x6e8] sm:$0xff]
    %v4162 = vld [vmem:[%s10 + $0x6f0] sm:$0xff]
    %v4163 = vld [vmem:[%s10 + $0x6f8] sm:$0xff]
    %v4164 = vld [vmem:[%s10 + $0x700] sm:$0xff]
    %v4165 = vld [vmem:[%s10 + $0x708] sm:$0xff]
    %v4166 = vld [vmem:[%s10 + $0x710] sm:$0xff]
    %v4167 = vld [vmem:[%s10 + $0x718] sm:$0xff]
    %v4168 = vld [vmem:[%s10 + $0x720] sm:$0xff]
    %v4169 = vld [vmem:[%s10 + $0x728] sm:$0xff]
    %v4170 = vld [vmem:[%s10 + $0x730] sm:$0xff]
    %v4171 = vld [vmem:[%s10 + $0x738] sm:$0xff]
    %v4172 = vld [vmem:[%s10 + $0x740] sm:$0xff]
    %v4173 = vld [vmem:[%s10 + $0x748] sm:$0xff]
    %v4174 = vld [vmem:[%s10 + $0x750] sm:$0xff]
    %v4175 = vld [vmem:[%s10 + $0x758] sm:$0xff]
    %v4176 = vld [vmem:[%s10 + $0x760] sm:$0xff]
    %v4177 = vld [vmem:[%s10 + $0x768] sm:$0xff]
    %v4178 = vld [vmem:[%s10 + $0x770] sm:$0xff]
    %v4179 = vld [vmem:[%s10 + $0x778] sm:$0xff]
    %v4180 = vld [vmem:[%s10 + $0x780] sm:$0xff]
    %v4181 = vld [vmem:[%s10 + $0x788] sm:$0xff]
    %v4182 = vld [vmem:[%s10 + $0x790] sm:$0xff]
    %v4183 = vld [vmem:[%s10 + $0x798] sm:$0xff]
    %v4184 = vld [vmem:[%s10 + $0x7a0] sm:$0xff]
    %v4185 = vld [vmem:[%s10 + $0x7a8] sm:$0xff]
    %v4186 = vld [vmem:[%s10 + $0x7b0] sm:$0xff]
    %v4187 = vld [vmem:[%s10 + $0x7b8] sm:$0xff]
    %v4188 = vld [vmem:[%s10 + $0x7c0] sm:$0xff]
    %v4189 = vld [vmem:[%s10 + $0x7c8] sm:$0xff]
    %v4190 = vld [vmem:[%s10 + $0x7d0] sm:$0xff]
    %v4191 = vld [vmem:[%s10 + $0x7d8] sm:$0xff]
    %v4192 = vld [vmem:[%s10 + $0x7e0] sm:$0xff]
    %v4193 = vld [vmem:[%s10 + $0x7e8] sm:$0xff]
    %v4194 = vld [vmem:[%s10 + $0x7f0] sm:$0xff]
    %v4195 = vld [vmem:[%s10 + $0x7f8] sm:$0xff]
    %v4452 = vunpack.c.l.b16 %v3940
    %v4453 = vunpack.c.h.b16 %v3940
    %v4454 = vunpack.c.l.b16 %v3941
    %v4455 = vunpack.c.h.b16 %v3941
    %v4456 = vunpack.c.l.b16 %v3942
    %v4457 = vunpack.c.h.b16 %v3942
    %v4458 = vunpack.c.l.b16 %v3943
    %v4459 = vunpack.c.h.b16 %v3943
    %v4460 = vunpack.c.l.b16 %v3944
    %v4461 = vunpack.c.h.b16 %v3944
    %v4462 = vunpack.c.l.b16 %v3945
    %v4463 = vunpack.c.h.b16 %v3945
    %v4464 = vunpack.c.l.b16 %v3946
    %v4465 = vunpack.c.h.b16 %v3946
    %v4466 = vunpack.c.l.b16 %v3947
    %v4467 = vunpack.c.h.b16 %v3947
    %v4468 = vunpack.c.l.b16 %v3948
    %v4469 = vunpack.c.h.b16 %v3948
    %v4470 = vunpack.c.l.b16 %v3949
    %v4471 = vunpack.c.h.b16 %v3949
    %v4472 = vunpack.c.l.b16 %v3950
    %v4473 = vunpack.c.h.b16 %v3950
    %v4474 = vunpack.c.l.b16 %v3951
    %v4475 = vunpack.c.h.b16 %v3951
    %v4476 = vunpack.c.l.b16 %v3952
    %v4477 = vunpack.c.h.b16 %v3952
    %v4478 = vunpack.c.l.b16 %v3953
    %v4479 = vunpack.c.h.b16 %v3953
    %v4480 = vunpack.c.l.b16 %v3954
    %v4481 = vunpack.c.h.b16 %v3954
    %v4482 = vunpack.c.l.b16 %v3955
    %v4483 = vunpack.c.h.b16 %v3955
    %v4484 = vunpack.c.l.b16 %v3956
    %v4485 = vunpack.c.h.b16 %v3956
    %v4486 = vunpack.c.l.b16 %v3957
    %v4487 = vunpack.c.h.b16 %v3957
    %v4488 = vunpack.c.l.b16 %v3958
    %v4489 = vunpack.c.h.b16 %v3958
    %v4490 = vunpack.c.l.b16 %v3959
    %v4491 = vunpack.c.h.b16 %v3959
    %v4492 = vunpack.c.l.b16 %v3960
    %v4493 = vunpack.c.h.b16 %v3960
    %v4494 = vunpack.c.l.b16 %v3961
    %v4495 = vunpack.c.h.b16 %v3961
    %v4496 = vunpack.c.l.b16 %v3962
    %v4497 = vunpack.c.h.b16 %v3962
    %v4498 = vunpack.c.l.b16 %v3963
    %v4499 = vunpack.c.h.b16 %v3963
    %v4500 = vunpack.c.l.b16 %v3964
    %v4501 = vunpack.c.h.b16 %v3964
    %v4502 = vunpack.c.l.b16 %v3965
    %v4503 = vunpack.c.h.b16 %v3965
    %v4504 = vunpack.c.l.b16 %v3966
    %v4505 = vunpack.c.h.b16 %v3966
    %v4506 = vunpack.c.l.b16 %v3967
    %v4507 = vunpack.c.h.b16 %v3967
    %v4508 = vunpack.c.l.b16 %v3968
    %v4509 = vunpack.c.h.b16 %v3968
    %v4510 = vunpack.c.l.b16 %v3969
    %v4511 = vunpack.c.h.b16 %v3969
    %v4512 = vunpack.c.l.b16 %v3970
    %v4513 = vunpack.c.h.b16 %v3970
    %v4514 = vunpack.c.l.b16 %v3971
    %v4515 = vunpack.c.h.b16 %v3971
    %v4516 = vunpack.c.l.b16 %v3972
    %v4517 = vunpack.c.h.b16 %v3972
    %v4518 = vunpack.c.l.b16 %v3973
    %v4519 = vunpack.c.h.b16 %v3973
    %v4520 = vunpack.c.l.b16 %v3974
    %v4521 = vunpack.c.h.b16 %v3974
    %v4522 = vunpack.c.l.b16 %v3975
    %v4523 = vunpack.c.h.b16 %v3975
    %v4524 = vunpack.c.l.b16 %v3976
    %v4525 = vunpack.c.h.b16 %v3976
    %v4526 = vunpack.c.l.b16 %v3977
    %v4527 = vunpack.c.h.b16 %v3977
    %v4528 = vunpack.c.l.b16 %v3978
    %v4529 = vunpack.c.h.b16 %v3978
    %v4530 = vunpack.c.l.b16 %v3979
    %v4531 = vunpack.c.h.b16 %v3979
    %v4532 = vunpack.c.l.b16 %v3980
    %v4533 = vunpack.c.h.b16 %v3980
    %v4534 = vunpack.c.l.b16 %v3981
    %v4535 = vunpack.c.h.b16 %v3981
    %v4536 = vunpack.c.l.b16 %v3982
    %v4537 = vunpack.c.h.b16 %v3982
    %v4538 = vunpack.c.l.b16 %v3983
    %v4539 = vunpack.c.h.b16 %v3983
    %v4540 = vunpack.c.l.b16 %v3984
    %v4541 = vunpack.c.h.b16 %v3984
    %v4542 = vunpack.c.l.b16 %v3985
    %v4543 = vunpack.c.h.b16 %v3985
    %v4544 = vunpack.c.l.b16 %v3986
    %v4545 = vunpack.c.h.b16 %v3986
    %v4546 = vunpack.c.l.b16 %v3987
    %v4547 = vunpack.c.h.b16 %v3987
    %v4548 = vunpack.c.l.b16 %v3988
    %v4549 = vunpack.c.h.b16 %v3988
    %v4550 = vunpack.c.l.b16 %v3989
    %v4551 = vunpack.c.h.b16 %v3989
    %v4552 = vunpack.c.l.b16 %v3990
    %v4553 = vunpack.c.h.b16 %v3990
    %v4554 = vunpack.c.l.b16 %v3991
    %v4555 = vunpack.c.h.b16 %v3991
    %v4556 = vunpack.c.l.b16 %v3992
    %v4557 = vunpack.c.h.b16 %v3992
    %v4558 = vunpack.c.l.b16 %v3993
    %v4559 = vunpack.c.h.b16 %v3993
    %v4560 = vunpack.c.l.b16 %v3994
    %v4561 = vunpack.c.h.b16 %v3994
    %v4562 = vunpack.c.l.b16 %v3995
    %v4563 = vunpack.c.h.b16 %v3995
    %v4564 = vunpack.c.l.b16 %v3996
    %v4565 = vunpack.c.h.b16 %v3996
    %v4566 = vunpack.c.l.b16 %v3997
    %v4567 = vunpack.c.h.b16 %v3997
    %v4568 = vunpack.c.l.b16 %v3998
    %v4569 = vunpack.c.h.b16 %v3998
    %v4570 = vunpack.c.l.b16 %v3999
    %v4571 = vunpack.c.h.b16 %v3999
    %v4572 = vunpack.c.l.b16 %v4000
    %v4573 = vunpack.c.h.b16 %v4000
    %v4574 = vunpack.c.l.b16 %v4001
    %v4575 = vunpack.c.h.b16 %v4001
    %v4576 = vunpack.c.l.b16 %v4002
    %v4577 = vunpack.c.h.b16 %v4002
    %v4578 = vunpack.c.l.b16 %v4003
    %v4579 = vunpack.c.h.b16 %v4003
    %v4580 = vunpack.c.l.b16 %v4004
    %v4581 = vunpack.c.h.b16 %v4004
    %v4582 = vunpack.c.l.b16 %v4005
    %v4583 = vunpack.c.h.b16 %v4005
    %v4584 = vunpack.c.l.b16 %v4006
    %v4585 = vunpack.c.h.b16 %v4006
    %v4586 = vunpack.c.l.b16 %v4007
    %v4587 = vunpack.c.h.b16 %v4007
    %v4588 = vunpack.c.l.b16 %v4008
    %v4589 = vunpack.c.h.b16 %v4008
    %v4590 = vunpack.c.l.b16 %v4009
    %v4591 = vunpack.c.h.b16 %v4009
    %v4592 = vunpack.c.l.b16 %v4010
    %v4593 = vunpack.c.h.b16 %v4010
    %v4594 = vunpack.c.l.b16 %v4011
    %v4595 = vunpack.c.h.b16 %v4011
    %v4596 = vunpack.c.l.b16 %v4012
    %v4597 = vunpack.c.h.b16 %v4012
    %v4598 = vunpack.c.l.b16 %v4013
    %v4599 = vunpack.c.h.b16 %v4013
    %v4600 = vunpack.c.l.b16 %v4014
    %v4601 = vunpack.c.h.b16 %v4014
    %v4602 = vunpack.c.l.b16 %v4015
    %v4603 = vunpack.c.h.b16 %v4015
    %v4604 = vunpack.c.l.b16 %v4016
    %v4605 = vunpack.c.h.b16 %v4016
    %v4606 = vunpack.c.l.b16 %v4017
    %v4607 = vunpack.c.h.b16 %v4017
    %v4608 = vunpack.c.l.b16 %v4018
    %v4609 = vunpack.c.h.b16 %v4018
    %v4610 = vunpack.c.l.b16 %v4019
    %v4611 = vunpack.c.h.b16 %v4019
    %v4612 = vunpack.c.l.b16 %v4020
    %v4613 = vunpack.c.h.b16 %v4020
    %v4614 = vunpack.c.l.b16 %v4021
    %v4615 = vunpack.c.h.b16 %v4021
    %v4616 = vunpack.c.l.b16 %v4022
    %v4617 = vunpack.c.h.b16 %v4022
    %v4618 = vunpack.c.l.b16 %v4023
    %v4619 = vunpack.c.h.b16 %v4023
    %v4620 = vunpack.c.l.b16 %v4024
    %v4621 = vunpack.c.h.b16 %v4024
    %v4622 = vunpack.c.l.b16 %v4025
    %v4623 = vunpack.c.h.b16 %v4025
    %v4624 = vunpack.c.l.b16 %v4026
    %v4625 = vunpack.c.h.b16 %v4026
    %v4626 = vunpack.c.l.b16 %v4027
    %v4627 = vunpack.c.h.b16 %v4027
    %v4628 = vunpack.c.l.b16 %v4028
    %v4629 = vunpack.c.h.b16 %v4028
    %v4630 = vunpack.c.l.b16 %v4029
    %v4631 = vunpack.c.h.b16 %v4029
    %v4632 = vunpack.c.l.b16 %v4030
    %v4633 = vunpack.c.h.b16 %v4030
    %v4634 = vunpack.c.l.b16 %v4031
    %v4635 = vunpack.c.h.b16 %v4031
    %v4636 = vunpack.c.l.b16 %v4032
    %v4637 = vunpack.c.h.b16 %v4032
    %v4638 = vunpack.c.l.b16 %v4033
    %v4639 = vunpack.c.h.b16 %v4033
    %v4640 = vunpack.c.l.b16 %v4034
    %v4641 = vunpack.c.h.b16 %v4034
    %v4642 = vunpack.c.l.b16 %v4035
    %v4643 = vunpack.c.h.b16 %v4035
    %v4644 = vunpack.c.l.b16 %v4036
    %v4645 = vunpack.c.h.b16 %v4036
    %v4646 = vunpack.c.l.b16 %v4037
    %v4647 = vunpack.c.h.b16 %v4037
    %v4648 = vunpack.c.l.b16 %v4038
    %v4649 = vunpack.c.h.b16 %v4038
    %v4650 = vunpack.c.l.b16 %v4039
    %v4651 = vunpack.c.h.b16 %v4039
    %v4652 = vunpack.c.l.b16 %v4040
    %v4653 = vunpack.c.h.b16 %v4040
    %v4654 = vunpack.c.l.b16 %v4041
    %v4655 = vunpack.c.h.b16 %v4041
    %v4656 = vunpack.c.l.b16 %v4042
    %v4657 = vunpack.c.h.b16 %v4042
    %v4658 = vunpack.c.l.b16 %v4043
    %v4659 = vunpack.c.h.b16 %v4043
    %v4660 = vunpack.c.l.b16 %v4044
    %v4661 = vunpack.c.h.b16 %v4044
    %v4662 = vunpack.c.l.b16 %v4045
    %v4663 = vunpack.c.h.b16 %v4045
    %v4664 = vunpack.c.l.b16 %v4046
    %v4665 = vunpack.c.h.b16 %v4046
    %v4666 = vunpack.c.l.b16 %v4047
    %v4667 = vunpack.c.h.b16 %v4047
    %v4668 = vunpack.c.l.b16 %v4048
    %v4669 = vunpack.c.h.b16 %v4048
    %v4670 = vunpack.c.l.b16 %v4049
    %v4671 = vunpack.c.h.b16 %v4049
    %v4672 = vunpack.c.l.b16 %v4050
    %v4673 = vunpack.c.h.b16 %v4050
    %v4674 = vunpack.c.l.b16 %v4051
    %v4675 = vunpack.c.h.b16 %v4051
    %v4676 = vunpack.c.l.b16 %v4052
    %v4677 = vunpack.c.h.b16 %v4052
    %v4678 = vunpack.c.l.b16 %v4053
    %v4679 = vunpack.c.h.b16 %v4053
    %v4680 = vunpack.c.l.b16 %v4054
    %v4681 = vunpack.c.h.b16 %v4054
    %v4682 = vunpack.c.l.b16 %v4055
    %v4683 = vunpack.c.h.b16 %v4055
    %v4684 = vunpack.c.l.b16 %v4056
    %v4685 = vunpack.c.h.b16 %v4056
    %v4686 = vunpack.c.l.b16 %v4057
    %v4687 = vunpack.c.h.b16 %v4057
    %v4688 = vunpack.c.l.b16 %v4058
    %v4689 = vunpack.c.h.b16 %v4058
    %v4690 = vunpack.c.l.b16 %v4059
    %v4691 = vunpack.c.h.b16 %v4059
    %v4692 = vunpack.c.l.b16 %v4060
    %v4693 = vunpack.c.h.b16 %v4060
    %v4694 = vunpack.c.l.b16 %v4061
    %v4695 = vunpack.c.h.b16 %v4061
    %v4696 = vunpack.c.l.b16 %v4062
    %v4697 = vunpack.c.h.b16 %v4062
    %v4698 = vunpack.c.l.b16 %v4063
    %v4699 = vunpack.c.h.b16 %v4063
    %v4700 = vunpack.c.l.b16 %v4064
    %v4701 = vunpack.c.h.b16 %v4064
    %v4702 = vunpack.c.l.b16 %v4065
    %v4703 = vunpack.c.h.b16 %v4065
    %v4704 = vunpack.c.l.b16 %v4066
    %v4705 = vunpack.c.h.b16 %v4066
    %v4706 = vunpack.c.l.b16 %v4067
    %v4707 = vunpack.c.h.b16 %v4067
    %v4708 = vunpack.c.l.b16 %v4068
    %v4709 = vunpack.c.h.b16 %v4068
    %v4710 = vunpack.c.l.b16 %v4069
    %v4711 = vunpack.c.h.b16 %v4069
    %v4712 = vunpack.c.l.b16 %v4070
    %v4713 = vunpack.c.h.b16 %v4070
    %v4714 = vunpack.c.l.b16 %v4071
    %v4715 = vunpack.c.h.b16 %v4071
    %v4716 = vunpack.c.l.b16 %v4072
    %v4717 = vunpack.c.h.b16 %v4072
    %v4718 = vunpack.c.l.b16 %v4073
    %v4719 = vunpack.c.h.b16 %v4073
    %v4720 = vunpack.c.l.b16 %v4074
    %v4721 = vunpack.c.h.b16 %v4074
    %v4722 = vunpack.c.l.b16 %v4075
    %v4723 = vunpack.c.h.b16 %v4075
    %v4724 = vunpack.c.l.b16 %v4076
    %v4725 = vunpack.c.h.b16 %v4076
    %v4726 = vunpack.c.l.b16 %v4077
    %v4727 = vunpack.c.h.b16 %v4077
    %v4728 = vunpack.c.l.b16 %v4078
    %v4729 = vunpack.c.h.b16 %v4078
    %v4730 = vunpack.c.l.b16 %v4079
    %v4731 = vunpack.c.h.b16 %v4079
    %v4732 = vunpack.c.l.b16 %v4080
    %v4733 = vunpack.c.h.b16 %v4080
    %v4734 = vunpack.c.l.b16 %v4081
    %v4735 = vunpack.c.h.b16 %v4081
    %v4736 = vunpack.c.l.b16 %v4082
    %v4737 = vunpack.c.h.b16 %v4082
    %v4738 = vunpack.c.l.b16 %v4083
    %v4739 = vunpack.c.h.b16 %v4083
    %v4740 = vunpack.c.l.b16 %v4084
    %v4741 = vunpack.c.h.b16 %v4084
    %v4742 = vunpack.c.l.b16 %v4085
    %v4743 = vunpack.c.h.b16 %v4085
    %v4744 = vunpack.c.l.b16 %v4086
    %v4745 = vunpack.c.h.b16 %v4086
    %v4746 = vunpack.c.l.b16 %v4087
    %v4747 = vunpack.c.h.b16 %v4087
    %v4748 = vunpack.c.l.b16 %v4088
    %v4749 = vunpack.c.h.b16 %v4088
    %v4750 = vunpack.c.l.b16 %v4089
    %v4751 = vunpack.c.h.b16 %v4089
    %v4752 = vunpack.c.l.b16 %v4090
    %v4753 = vunpack.c.h.b16 %v4090
    %v4754 = vunpack.c.l.b16 %v4091
    %v4755 = vunpack.c.h.b16 %v4091
    %v4756 = vunpack.c.l.b16 %v4092
    %v4757 = vunpack.c.h.b16 %v4092
    %v4758 = vunpack.c.l.b16 %v4093
    %v4759 = vunpack.c.h.b16 %v4093
    %v4760 = vunpack.c.l.b16 %v4094
    %v4761 = vunpack.c.h.b16 %v4094
    %v4762 = vunpack.c.l.b16 %v4095
    %v4763 = vunpack.c.h.b16 %v4095
    %v4764 = vunpack.c.l.b16 %v4096
    %v4765 = vunpack.c.h.b16 %v4096
    %v4766 = vunpack.c.l.b16 %v4097
    %v4767 = vunpack.c.h.b16 %v4097
    %v4768 = vunpack.c.l.b16 %v4098
    %v4769 = vunpack.c.h.b16 %v4098
    %v4770 = vunpack.c.l.b16 %v4099
    %v4771 = vunpack.c.h.b16 %v4099
    %v4772 = vunpack.c.l.b16 %v4100
    %v4773 = vunpack.c.h.b16 %v4100
    %v4774 = vunpack.c.l.b16 %v4101
    %v4775 = vunpack.c.h.b16 %v4101
    %v4776 = vunpack.c.l.b16 %v4102
    %v4777 = vunpack.c.h.b16 %v4102
    %v4778 = vunpack.c.l.b16 %v4103
    %v4779 = vunpack.c.h.b16 %v4103
    %v4780 = vunpack.c.l.b16 %v4104
    %v4781 = vunpack.c.h.b16 %v4104
    %v4782 = vunpack.c.l.b16 %v4105
    %v4783 = vunpack.c.h.b16 %v4105
    %v4784 = vunpack.c.l.b16 %v4106
    %v4785 = vunpack.c.h.b16 %v4106
    %v4786 = vunpack.c.l.b16 %v4107
    %v4787 = vunpack.c.h.b16 %v4107
    %v4788 = vunpack.c.l.b16 %v4108
    %v4789 = vunpack.c.h.b16 %v4108
    %v4790 = vunpack.c.l.b16 %v4109
    %v4791 = vunpack.c.h.b16 %v4109
    %v4792 = vunpack.c.l.b16 %v4110
    %v4793 = vunpack.c.h.b16 %v4110
    %v4794 = vunpack.c.l.b16 %v4111
    %v4795 = vunpack.c.h.b16 %v4111
    %v4796 = vunpack.c.l.b16 %v4112
    %v4797 = vunpack.c.h.b16 %v4112
    %v4798 = vunpack.c.l.b16 %v4113
    %v4799 = vunpack.c.h.b16 %v4113
    %v4800 = vunpack.c.l.b16 %v4114
    %v4801 = vunpack.c.h.b16 %v4114
    %v4802 = vunpack.c.l.b16 %v4115
    %v4803 = vunpack.c.h.b16 %v4115
    %v4804 = vunpack.c.l.b16 %v4116
    %v4805 = vunpack.c.h.b16 %v4116
    %v4806 = vunpack.c.l.b16 %v4117
    %v4807 = vunpack.c.h.b16 %v4117
    %v4808 = vunpack.c.l.b16 %v4118
    %v4809 = vunpack.c.h.b16 %v4118
    %v4810 = vunpack.c.l.b16 %v4119
    %v4811 = vunpack.c.h.b16 %v4119
    %v4812 = vunpack.c.l.b16 %v4120
    %v4813 = vunpack.c.h.b16 %v4120
    %v4814 = vunpack.c.l.b16 %v4121
    %v4815 = vunpack.c.h.b16 %v4121
    %v4816 = vunpack.c.l.b16 %v4122
    %v4817 = vunpack.c.h.b16 %v4122
    %v4818 = vunpack.c.l.b16 %v4123
    %v4819 = vunpack.c.h.b16 %v4123
    %v4820 = vunpack.c.l.b16 %v4124
    %v4821 = vunpack.c.h.b16 %v4124
    %v4822 = vunpack.c.l.b16 %v4125
    %v4823 = vunpack.c.h.b16 %v4125
    %v4824 = vunpack.c.l.b16 %v4126
    %v4825 = vunpack.c.h.b16 %v4126
    %v4826 = vunpack.c.l.b16 %v4127
    %v4827 = vunpack.c.h.b16 %v4127
    %v4828 = vunpack.c.l.b16 %v4128
    %v4829 = vunpack.c.h.b16 %v4128
    %v4830 = vunpack.c.l.b16 %v4129
    %v4831 = vunpack.c.h.b16 %v4129
    %v4832 = vunpack.c.l.b16 %v4130
    %v4833 = vunpack.c.h.b16 %v4130
    %v4834 = vunpack.c.l.b16 %v4131
    %v4835 = vunpack.c.h.b16 %v4131
    %v4836 = vunpack.c.l.b16 %v4132
    %v4837 = vunpack.c.h.b16 %v4132
    %v4838 = vunpack.c.l.b16 %v4133
    %v4839 = vunpack.c.h.b16 %v4133
    %v4840 = vunpack.c.l.b16 %v4134
    %v4841 = vunpack.c.h.b16 %v4134
    %v4842 = vunpack.c.l.b16 %v4135
    %v4843 = vunpack.c.h.b16 %v4135
    %v4844 = vunpack.c.l.b16 %v4136
    %v4845 = vunpack.c.h.b16 %v4136
    %v4846 = vunpack.c.l.b16 %v4137
    %v4847 = vunpack.c.h.b16 %v4137
    %v4848 = vunpack.c.l.b16 %v4138
    %v4849 = vunpack.c.h.b16 %v4138
    %v4850 = vunpack.c.l.b16 %v4139
    %v4851 = vunpack.c.h.b16 %v4139
    %v4852 = vunpack.c.l.b16 %v4140
    %v4853 = vunpack.c.h.b16 %v4140
    %v4854 = vunpack.c.l.b16 %v4141
    %v4855 = vunpack.c.h.b16 %v4141
    %v4856 = vunpack.c.l.b16 %v4142
    %v4857 = vunpack.c.h.b16 %v4142
    %v4858 = vunpack.c.l.b16 %v4143
    %v4859 = vunpack.c.h.b16 %v4143
    %v4860 = vunpack.c.l.b16 %v4144
    %v4861 = vunpack.c.h.b16 %v4144
    %v4862 = vunpack.c.l.b16 %v4145
    %v4863 = vunpack.c.h.b16 %v4145
    %v4864 = vunpack.c.l.b16 %v4146
    %v4865 = vunpack.c.h.b16 %v4146
    %v4866 = vunpack.c.l.b16 %v4147
    %v4867 = vunpack.c.h.b16 %v4147
    %v4868 = vunpack.c.l.b16 %v4148
    %v4869 = vunpack.c.h.b16 %v4148
    %v4870 = vunpack.c.l.b16 %v4149
    %v4871 = vunpack.c.h.b16 %v4149
    %v4872 = vunpack.c.l.b16 %v4150
    %v4873 = vunpack.c.h.b16 %v4150
    %v4874 = vunpack.c.l.b16 %v4151
    %v4875 = vunpack.c.h.b16 %v4151
    %v4876 = vunpack.c.l.b16 %v4152
    %v4877 = vunpack.c.h.b16 %v4152
    %v4878 = vunpack.c.l.b16 %v4153
    %v4879 = vunpack.c.h.b16 %v4153
    %v4880 = vunpack.c.l.b16 %v4154
    %v4881 = vunpack.c.h.b16 %v4154
    %v4882 = vunpack.c.l.b16 %v4155
    %v4883 = vunpack.c.h.b16 %v4155
    %v4884 = vunpack.c.l.b16 %v4156
    %v4885 = vunpack.c.h.b16 %v4156
    %v4886 = vunpack.c.l.b16 %v4157
    %v4887 = vunpack.c.h.b16 %v4157
    %v4888 = vunpack.c.l.b16 %v4158
    %v4889 = vunpack.c.h.b16 %v4158
    %v4890 = vunpack.c.l.b16 %v4159
    %v4891 = vunpack.c.h.b16 %v4159
    %v4892 = vunpack.c.l.b16 %v4160
    %v4893 = vunpack.c.h.b16 %v4160
    %v4894 = vunpack.c.l.b16 %v4161
    %v4895 = vunpack.c.h.b16 %v4161
    %v4896 = vunpack.c.l.b16 %v4162
    %v4897 = vunpack.c.h.b16 %v4162
    %v4898 = vunpack.c.l.b16 %v4163
    %v4899 = vunpack.c.h.b16 %v4163
    %v4900 = vunpack.c.l.b16 %v4164
    %v4901 = vunpack.c.h.b16 %v4164
    %v4902 = vunpack.c.l.b16 %v4165
    %v4903 = vunpack.c.h.b16 %v4165
    %v4904 = vunpack.c.l.b16 %v4166
    %v4905 = vunpack.c.h.b16 %v4166
    %v4906 = vunpack.c.l.b16 %v4167
    %v4907 = vunpack.c.h.b16 %v4167
    %v4908 = vunpack.c.l.b16 %v4168
    %v4909 = vunpack.c.h.b16 %v4168
    %v4910 = vunpack.c.l.b16 %v4169
    %v4911 = vunpack.c.h.b16 %v4169
    %v4912 = vunpack.c.l.b16 %v4170
    %v4913 = vunpack.c.h.b16 %v4170
    %v4914 = vunpack.c.l.b16 %v4171
    %v4915 = vunpack.c.h.b16 %v4171
    %v4916 = vunpack.c.l.b16 %v4172
    %v4917 = vunpack.c.h.b16 %v4172
    %v4918 = vunpack.c.l.b16 %v4173
    %v4919 = vunpack.c.h.b16 %v4173
    %v4920 = vunpack.c.l.b16 %v4174
    %v4921 = vunpack.c.h.b16 %v4174
    %v4922 = vunpack.c.l.b16 %v4175
    %v4923 = vunpack.c.h.b16 %v4175
    %v4924 = vunpack.c.l.b16 %v4176
    %v4925 = vunpack.c.h.b16 %v4176
    %v4926 = vunpack.c.l.b16 %v4177
    %v4927 = vunpack.c.h.b16 %v4177
    %v4928 = vunpack.c.l.b16 %v4178
    %v4929 = vunpack.c.h.b16 %v4178
    %v4930 = vunpack.c.l.b16 %v4179
    %v4931 = vunpack.c.h.b16 %v4179
    %v4932 = vunpack.c.l.b16 %v4180
    %v4933 = vunpack.c.h.b16 %v4180
    %v4934 = vunpack.c.l.b16 %v4181
    %v4935 = vunpack.c.h.b16 %v4181
    %v4936 = vunpack.c.l.b16 %v4182
    %v4937 = vunpack.c.h.b16 %v4182
    %v4938 = vunpack.c.l.b16 %v4183
    %v4939 = vunpack.c.h.b16 %v4183
    %v4940 = vunpack.c.l.b16 %v4184
    %v4941 = vunpack.c.h.b16 %v4184
    %v4942 = vunpack.c.l.b16 %v4185
    %v4943 = vunpack.c.h.b16 %v4185
    %v4944 = vunpack.c.l.b16 %v4186
    %v4945 = vunpack.c.h.b16 %v4186
    %v4946 = vunpack.c.l.b16 %v4187
    %v4947 = vunpack.c.h.b16 %v4187
    %v4948 = vunpack.c.l.b16 %v4188
    %v4949 = vunpack.c.h.b16 %v4188
    %v4950 = vunpack.c.l.b16 %v4189
    %v4951 = vunpack.c.h.b16 %v4189
    %v4952 = vunpack.c.l.b16 %v4190
    %v4953 = vunpack.c.h.b16 %v4190
    %v4954 = vunpack.c.l.b16 %v4191
    %v4955 = vunpack.c.h.b16 %v4191
    %v4956 = vunpack.c.l.b16 %v4192
    %v4957 = vunpack.c.h.b16 %v4192
    %v4958 = vunpack.c.l.b16 %v4193
    %v4959 = vunpack.c.h.b16 %v4193
    %v4960 = vunpack.c.l.b16 %v4194
    %v4961 = vunpack.c.h.b16 %v4194
    %v4962 = vunpack.c.l.b16 %v4195
    %v4963 = vunpack.c.h.b16 %v4195
    %v4964 = vpack.c.b16 %v4456, %v4452
    %v4965 = vpack.c.b16 %v4457, %v4453
    %v4966 = vpack.c.b16 %v4458, %v4454
    %v4967 = vpack.c.b16 %v4459, %v4455
    %v4968 = vpack.c.b16 %v4464, %v4460
    %v4969 = vpack.c.b16 %v4465, %v4461
    %v4970 = vpack.c.b16 %v4466, %v4462
    %v4971 = vpack.c.b16 %v4467, %v4463
    %v4972 = vpack.c.b16 %v4472, %v4468
    %v4973 = vpack.c.b16 %v4473, %v4469
    %v4974 = vpack.c.b16 %v4474, %v4470
    %v4975 = vpack.c.b16 %v4475, %v4471
    %v4976 = vpack.c.b16 %v4480, %v4476
    %v4977 = vpack.c.b16 %v4481, %v4477
    %v4978 = vpack.c.b16 %v4482, %v4478
    %v4979 = vpack.c.b16 %v4483, %v4479
    %v4980 = vpack.c.b16 %v4488, %v4484
    %v4981 = vpack.c.b16 %v4489, %v4485
    %v4982 = vpack.c.b16 %v4490, %v4486
    %v4983 = vpack.c.b16 %v4491, %v4487
    %v4984 = vpack.c.b16 %v4496, %v4492
    %v4985 = vpack.c.b16 %v4497, %v4493
    %v4986 = vpack.c.b16 %v4498, %v4494
    %v4987 = vpack.c.b16 %v4499, %v4495
    %v4988 = vpack.c.b16 %v4504, %v4500
    %v4989 = vpack.c.b16 %v4505, %v4501
    %v4990 = vpack.c.b16 %v4506, %v4502
    %v4991 = vpack.c.b16 %v4507, %v4503
    %v4992 = vpack.c.b16 %v4512, %v4508
    %v4993 = vpack.c.b16 %v4513, %v4509
    %v4994 = vpack.c.b16 %v4514, %v4510
    %v4995 = vpack.c.b16 %v4515, %v4511
    %v4996 = vpack.c.b16 %v4520, %v4516
    %v4997 = vpack.c.b16 %v4521, %v4517
    %v4998 = vpack.c.b16 %v4522, %v4518
    %v4999 = vpack.c.b16 %v4523, %v4519
    %v5000 = vpack.c.b16 %v4528, %v4524
    %v5001 = vpack.c.b16 %v4529, %v4525
    %v5002 = vpack.c.b16 %v4530, %v4526
    %v5003 = vpack.c.b16 %v4531, %v4527
    %v5004 = vpack.c.b16 %v4536, %v4532
    %v5005 = vpack.c.b16 %v4537, %v4533
    %v5006 = vpack.c.b16 %v4538, %v4534
    %v5007 = vpack.c.b16 %v4539, %v4535
    %v5008 = vpack.c.b16 %v4544, %v4540
    %v5009 = vpack.c.b16 %v4545, %v4541
    %v5010 = vpack.c.b16 %v4546, %v4542
    %v5011 = vpack.c.b16 %v4547, %v4543
    %v5012 = vpack.c.b16 %v4552, %v4548
    %v5013 = vpack.c.b16 %v4553, %v4549
    %v5014 = vpack.c.b16 %v4554, %v4550
    %v5015 = vpack.c.b16 %v4555, %v4551
    %v5016 = vpack.c.b16 %v4560, %v4556
    %v5017 = vpack.c.b16 %v4561, %v4557
    %v5018 = vpack.c.b16 %v4562, %v4558
    %v5019 = vpack.c.b16 %v4563, %v4559
    %v5020 = vpack.c.b16 %v4568, %v4564
    %v5021 = vpack.c.b16 %v4569, %v4565
    %v5022 = vpack.c.b16 %v4570, %v4566
    %v5023 = vpack.c.b16 %v4571, %v4567
    %v5024 = vpack.c.b16 %v4576, %v4572
    %v5025 = vpack.c.b16 %v4577, %v4573
    %v5026 = vpack.c.b16 %v4578, %v4574
    %v5027 = vpack.c.b16 %v4579, %v4575
    %v5028 = vpack.c.b16 %v4584, %v4580
    %v5029 = vpack.c.b16 %v4585, %v4581
    %v5030 = vpack.c.b16 %v4586, %v4582
    %v5031 = vpack.c.b16 %v4587, %v4583
    %v5032 = vpack.c.b16 %v4592, %v4588
    %v5033 = vpack.c.b16 %v4593, %v4589
    %v5034 = vpack.c.b16 %v4594, %v4590
    %v5035 = vpack.c.b16 %v4595, %v4591
    %v5036 = vpack.c.b16 %v4600, %v4596
    %v5037 = vpack.c.b16 %v4601, %v4597
    %v5038 = vpack.c.b16 %v4602, %v4598
    %v5039 = vpack.c.b16 %v4603, %v4599
    %v5040 = vpack.c.b16 %v4608, %v4604
    %v5041 = vpack.c.b16 %v4609, %v4605
    %v5042 = vpack.c.b16 %v4610, %v4606
    %v5043 = vpack.c.b16 %v4611, %v4607
    %v5044 = vpack.c.b16 %v4616, %v4612
    %v5045 = vpack.c.b16 %v4617, %v4613
    %v5046 = vpack.c.b16 %v4618, %v4614
    %v5047 = vpack.c.b16 %v4619, %v4615
    %v5048 = vpack.c.b16 %v4624, %v4620
    %v5049 = vpack.c.b16 %v4625, %v4621
    %v5050 = vpack.c.b16 %v4626, %v4622
    %v5051 = vpack.c.b16 %v4627, %v4623
    %v5052 = vpack.c.b16 %v4632, %v4628
    %v5053 = vpack.c.b16 %v4633, %v4629
    %v5054 = vpack.c.b16 %v4634, %v4630
    %v5055 = vpack.c.b16 %v4635, %v4631
    %v5056 = vpack.c.b16 %v4640, %v4636
    %v5057 = vpack.c.b16 %v4641, %v4637
    %v5058 = vpack.c.b16 %v4642, %v4638
    %v5059 = vpack.c.b16 %v4643, %v4639
    %v5060 = vpack.c.b16 %v4648, %v4644
    %v5061 = vpack.c.b16 %v4649, %v4645
    %v5062 = vpack.c.b16 %v4650, %v4646
    %v5063 = vpack.c.b16 %v4651, %v4647
    %v5064 = vpack.c.b16 %v4656, %v4652
    %v5065 = vpack.c.b16 %v4657, %v4653
    %v5066 = vpack.c.b16 %v4658, %v4654
    %v5067 = vpack.c.b16 %v4659, %v4655
    %v5068 = vpack.c.b16 %v4664, %v4660
    %v5069 = vpack.c.b16 %v4665, %v4661
    %v5070 = vpack.c.b16 %v4666, %v4662
    %v5071 = vpack.c.b16 %v4667, %v4663
    %v5072 = vpack.c.b16 %v4672, %v4668
    %v5073 = vpack.c.b16 %v4673, %v4669
    %v5074 = vpack.c.b16 %v4674, %v4670
    %v5075 = vpack.c.b16 %v4675, %v4671
    %v5076 = vpack.c.b16 %v4680, %v4676
    %v5077 = vpack.c.b16 %v4681, %v4677
    %v5078 = vpack.c.b16 %v4682, %v4678
    %v5079 = vpack.c.b16 %v4683, %v4679
    %v5080 = vpack.c.b16 %v4688, %v4684
    %v5081 = vpack.c.b16 %v4689, %v4685
    %v5082 = vpack.c.b16 %v4690, %v4686
    %v5083 = vpack.c.b16 %v4691, %v4687
    %v5084 = vpack.c.b16 %v4696, %v4692
    %v5085 = vpack.c.b16 %v4697, %v4693
    %v5086 = vpack.c.b16 %v4698, %v4694
    %v5087 = vpack.c.b16 %v4699, %v4695
    %v5088 = vpack.c.b16 %v4704, %v4700
    %v5089 = vpack.c.b16 %v4705, %v4701
    %v5090 = vpack.c.b16 %v4706, %v4702
    %v5091 = vpack.c.b16 %v4707, %v4703
    %v5092 = vpack.c.b16 %v4712, %v4708
    %v5093 = vpack.c.b16 %v4713, %v4709
    %v5094 = vpack.c.b16 %v4714, %v4710
    %v5095 = vpack.c.b16 %v4715, %v4711
    %v5096 = vpack.c.b16 %v4720, %v4716
    %v5097 = vpack.c.b16 %v4721, %v4717
    %v5098 = vpack.c.b16 %v4722, %v4718
    %v5099 = vpack.c.b16 %v4723, %v4719
    %v5100 = vpack.c.b16 %v4728, %v4724
    %v5101 = vpack.c.b16 %v4729, %v4725
    %v5102 = vpack.c.b16 %v4730, %v4726
    %v5103 = vpack.c.b16 %v4731, %v4727
    %v5104 = vpack.c.b16 %v4736, %v4732
    %v5105 = vpack.c.b16 %v4737, %v4733
    %v5106 = vpack.c.b16 %v4738, %v4734
    %v5107 = vpack.c.b16 %v4739, %v4735
    %v5108 = vpack.c.b16 %v4744, %v4740
    %v5109 = vpack.c.b16 %v4745, %v4741
    %v5110 = vpack.c.b16 %v4746, %v4742
    %v5111 = vpack.c.b16 %v4747, %v4743
    %v5112 = vpack.c.b16 %v4752, %v4748
    %v5113 = vpack.c.b16 %v4753, %v4749
    %v5114 = vpack.c.b16 %v4754, %v4750
    %v5115 = vpack.c.b16 %v4755, %v4751
    %v5116 = vpack.c.b16 %v4760, %v4756
    %v5117 = vpack.c.b16 %v4761, %v4757
    %v5118 = vpack.c.b16 %v4762, %v4758
    %v5119 = vpack.c.b16 %v4763, %v4759
    %v5120 = vpack.c.b16 %v4768, %v4764
    %v5121 = vpack.c.b16 %v4769, %v4765
    %v5122 = vpack.c.b16 %v4770, %v4766
    %v5123 = vpack.c.b16 %v4771, %v4767
    %v5124 = vpack.c.b16 %v4776, %v4772
    %v5125 = vpack.c.b16 %v4777, %v4773
    %v5126 = vpack.c.b16 %v4778, %v4774
    %v5127 = vpack.c.b16 %v4779, %v4775
    %v5128 = vpack.c.b16 %v4784, %v4780
    %v5129 = vpack.c.b16 %v4785, %v4781
    %v5130 = vpack.c.b16 %v4786, %v4782
    %v5131 = vpack.c.b16 %v4787, %v4783
    %v5132 = vpack.c.b16 %v4792, %v4788
    %v5133 = vpack.c.b16 %v4793, %v4789
    %v5134 = vpack.c.b16 %v4794, %v4790
    %v5135 = vpack.c.b16 %v4795, %v4791
    %v5136 = vpack.c.b16 %v4800, %v4796
    %v5137 = vpack.c.b16 %v4801, %v4797
    %v5138 = vpack.c.b16 %v4802, %v4798
    %v5139 = vpack.c.b16 %v4803, %v4799
    %v5140 = vpack.c.b16 %v4808, %v4804
    %v5141 = vpack.c.b16 %v4809, %v4805
    %v5142 = vpack.c.b16 %v4810, %v4806
    %v5143 = vpack.c.b16 %v4811, %v4807
    %v5144 = vpack.c.b16 %v4816, %v4812
    %v5145 = vpack.c.b16 %v4817, %v4813
    %v5146 = vpack.c.b16 %v4818, %v4814
    %v5147 = vpack.c.b16 %v4819, %v4815
    %v5148 = vpack.c.b16 %v4824, %v4820
    %v5149 = vpack.c.b16 %v4825, %v4821
    %v5150 = vpack.c.b16 %v4826, %v4822
    %v5151 = vpack.c.b16 %v4827, %v4823
    %v5152 = vpack.c.b16 %v4832, %v4828
    %v5153 = vpack.c.b16 %v4833, %v4829
    %v5154 = vpack.c.b16 %v4834, %v4830
    %v5155 = vpack.c.b16 %v4835, %v4831
    %v5156 = vpack.c.b16 %v4840, %v4836
    %v5157 = vpack.c.b16 %v4841, %v4837
    %v5158 = vpack.c.b16 %v4842, %v4838
    %v5159 = vpack.c.b16 %v4843, %v4839
    %v5160 = vpack.c.b16 %v4848, %v4844
    %v5161 = vpack.c.b16 %v4849, %v4845
    %v5162 = vpack.c.b16 %v4850, %v4846
    %v5163 = vpack.c.b16 %v4851, %v4847
    %v5164 = vpack.c.b16 %v4856, %v4852
    %v5165 = vpack.c.b16 %v4857, %v4853
    %v5166 = vpack.c.b16 %v4858, %v4854
    %v5167 = vpack.c.b16 %v4859, %v4855
    %v5168 = vpack.c.b16 %v4864, %v4860
    %v5169 = vpack.c.b16 %v4865, %v4861
    %v5170 = vpack.c.b16 %v4866, %v4862
    %v5171 = vpack.c.b16 %v4867, %v4863
    %v5172 = vpack.c.b16 %v4872, %v4868
    %v5173 = vpack.c.b16 %v4873, %v4869
    %v5174 = vpack.c.b16 %v4874, %v4870
    %v5175 = vpack.c.b16 %v4875, %v4871
    %v5176 = vpack.c.b16 %v4880, %v4876
    %v5177 = vpack.c.b16 %v4881, %v4877
    %v5178 = vpack.c.b16 %v4882, %v4878
    %v5179 = vpack.c.b16 %v4883, %v4879
    %v5180 = vpack.c.b16 %v4888, %v4884
    %v5181 = vpack.c.b16 %v4889, %v4885
    %v5182 = vpack.c.b16 %v4890, %v4886
    %v5183 = vpack.c.b16 %v4891, %v4887
    %v5184 = vpack.c.b16 %v4896, %v4892
    %v5185 = vpack.c.b16 %v4897, %v4893
    %v5186 = vpack.c.b16 %v4898, %v4894
    %v5187 = vpack.c.b16 %v4899, %v4895
    %v5188 = vpack.c.b16 %v4904, %v4900
    %v5189 = vpack.c.b16 %v4905, %v4901
    %v5190 = vpack.c.b16 %v4906, %v4902
    %v5191 = vpack.c.b16 %v4907, %v4903
    %v5192 = vpack.c.b16 %v4912, %v4908
    %v5193 = vpack.c.b16 %v4913, %v4909
    %v5194 = vpack.c.b16 %v4914, %v4910
    %v5195 = vpack.c.b16 %v4915, %v4911
    %v5196 = vpack.c.b16 %v4920, %v4916
    %v5197 = vpack.c.b16 %v4921, %v4917
    %v5198 = vpack.c.b16 %v4922, %v4918
    %v5199 = vpack.c.b16 %v4923, %v4919
    %v5200 = vpack.c.b16 %v4928, %v4924
    %v5201 = vpack.c.b16 %v4929, %v4925
    %v5202 = vpack.c.b16 %v4930, %v4926
    %v5203 = vpack.c.b16 %v4931, %v4927
    %v5204 = vpack.c.b16 %v4936, %v4932
    %v5205 = vpack.c.b16 %v4937, %v4933
    %v5206 = vpack.c.b16 %v4938, %v4934
    %v5207 = vpack.c.b16 %v4939, %v4935
    %v5208 = vpack.c.b16 %v4944, %v4940
    %v5209 = vpack.c.b16 %v4945, %v4941
    %v5210 = vpack.c.b16 %v4946, %v4942
    %v5211 = vpack.c.b16 %v4947, %v4943
    %v5212 = vpack.c.b16 %v4952, %v4948
    %v5213 = vpack.c.b16 %v4953, %v4949
    %v5214 = vpack.c.b16 %v4954, %v4950
    %v5215 = vpack.c.b16 %v4955, %v4951
    %v5216 = vpack.c.b16 %v4960, %v4956
    %v5217 = vpack.c.b16 %v4961, %v4957
    %v5218 = vpack.c.b16 %v4962, %v4958
    %v5219 = vpack.c.b16 %v4963, %v4959
    %5476 = vmatprep.subr.bf16.mxu0 %v4993
    %5477 = vmatpush1.bf16.msra.mxu0 %v4992
    %5478 = vmatprep.subr.bf16.mxu0 %v4989
    %5479 = vmatpush1.bf16.msra.mxu0 %v4988
    %5480 = vmatprep.subr.bf16.mxu0 %v4985
    %5481 = vmatpush1.bf16.msra.mxu0 %v4984
    %5482 = vmatprep.subr.bf16.mxu0 %v4981
    %5483 = vmatpush1.bf16.msra.mxu0 %v4980
    %5484 = vmatprep.subr.bf16.mxu0 %v4977
    %5485 = vmatpush1.bf16.msra.mxu0 %v4976
    %5486 = vmatprep.subr.bf16.mxu0 %v4973
    %5487 = vmatpush1.bf16.msra.mxu0 %v4972
    %5488 = vmatprep.subr.bf16.mxu0 %v4969
    %5489 = vmatpush1.bf16.msra.mxu0 %v4968
    %5490 = vmatprep.subr.bf16.mxu0 %v4965
    %5491 = vmatpush1.bf16.msra.mxu0 %v4964
    %5492 = vmatprep.subr.bf16.mxu0 %v5025
    %5493 = vmatpush2.bf16.msra.mxu0 %v5024
    %5494 = vmatprep.subr.bf16.mxu0 %v5021
    %5495 = vmatpush2.bf16.msra.mxu0 %v5020
    %5496 = vmatprep.subr.bf16.mxu0 %v5017
    %5497 = vmatpush2.bf16.msra.mxu0 %v5016
    %5498 = vmatprep.subr.bf16.mxu0 %v5013
    %5499 = vmatpush2.bf16.msra.mxu0 %v5012
    %5500 = vmatprep.subr.bf16.mxu0 %v5009
    %5501 = vmatpush2.bf16.msra.mxu0 %v5008
    %5502 = vmatprep.subr.bf16.mxu0 %v5005
    %5503 = vmatpush2.bf16.msra.mxu0 %v5004
    %5504 = vmatprep.subr.bf16.mxu0 %v5001
    %5505 = vmatpush2.bf16.msra.mxu0 %v5000
    %5506 = vmatprep.subr.bf16.mxu0 %v4997
    %5507 = vmatpush2.bf16.msra.mxu0 %v4996
    %5508 = vmatprep.mubr.bf16.mxu0 %v3933
    %5509 = vmatmul.mubr.bf16.gmra.mxu0 %v3932
    %v5510 = vpop.f32.mrf.mxu0
    %v5511 = vadd.f32 0.0, %v5510
    %v5512 = vpop.f32.mrf.mxu0
    %v5513 = vadd.f32 0.0, %v5512
    %v5514 = vpop.f32.mrf.mxu0
    %v5515 = vpop.f32.mrf.mxu0
    %5516 = vdwg.mxu0
    %5517 = vmatprep.subr.bf16.mxu0 %v5057
    %5518 = vmatpush1.bf16.msra.mxu0 %v5056
    %5519 = vmatprep.subr.bf16.mxu0 %v5053
    %5520 = vmatpush1.bf16.msra.mxu0 %v5052
    %5521 = vmatprep.subr.bf16.mxu0 %v5049
    %5522 = vmatpush1.bf16.msra.mxu0 %v5048
    %5523 = vmatprep.subr.bf16.mxu0 %v5045
    %5524 = vmatpush1.bf16.msra.mxu0 %v5044
    %5525 = vmatprep.subr.bf16.mxu0 %v5041
    %5526 = vmatpush1.bf16.msra.mxu0 %v5040
    %5527 = vmatprep.subr.bf16.mxu0 %v5037
    %5528 = vmatpush1.bf16.msra.mxu0 %v5036
    %5529 = vmatprep.subr.bf16.mxu0 %v5033
    %5530 = vmatpush1.bf16.msra.mxu0 %v5032
    %5531 = vmatprep.subr.bf16.mxu0 %v5029
    %5532 = vmatpush1.bf16.msra.mxu0 %v5028
    %5533 = vmatprep.subr.bf16.mxu0 %v5089
    %5534 = vmatpush2.bf16.msra.mxu0 %v5088
    %5535 = vmatprep.subr.bf16.mxu0 %v5085
    %5536 = vmatpush2.bf16.msra.mxu0 %v5084
    %5537 = vmatprep.subr.bf16.mxu0 %v5081
    %5538 = vmatpush2.bf16.msra.mxu0 %v5080
    %5539 = vmatprep.subr.bf16.mxu0 %v5077
    %5540 = vmatpush2.bf16.msra.mxu0 %v5076
    %5541 = vmatprep.subr.bf16.mxu0 %v5073
    %5542 = vmatpush2.bf16.msra.mxu0 %v5072
    %5543 = vmatprep.subr.bf16.mxu0 %v5069
    %5544 = vmatpush2.bf16.msra.mxu0 %v5068
    %5545 = vmatprep.subr.bf16.mxu0 %v5065
    %5546 = vmatpush2.bf16.msra.mxu0 %v5064
    %5547 = vmatprep.subr.bf16.mxu0 %v5061
    %5548 = vmatpush2.bf16.msra.mxu0 %v5060
    %5549 = vmatprep.mubr.bf16.mxu0 %v3935
    %5550 = vmatmul.mubr.bf16.gmra.mxu0 %v3934
    %v5551 = vpop.f32.mrf.mxu0
    %v5552 = vadd.f32 %v5511, %v5551
    %v5553 = vpop.f32.mrf.mxu0
    %v5554 = vadd.f32 %v5513, %v5553
    %v5555 = vpop.f32.mrf.mxu0
    %v5556 = vpop.f32.mrf.mxu0
    %5557 = vdwg.mxu0
    %5558 = vmatprep.subr.bf16.mxu0 %v5121
    %5559 = vmatpush1.bf16.msra.mxu0 %v5120
    %5560 = vmatprep.subr.bf16.mxu0 %v5117
    %5561 = vmatpush1.bf16.msra.mxu0 %v5116
    %5562 = vmatprep.subr.bf16.mxu0 %v5113
    %5563 = vmatpush1.bf16.msra.mxu0 %v5112
    %5564 = vmatprep.subr.bf16.mxu0 %v5109
    %5565 = vmatpush1.bf16.msra.mxu0 %v5108
    %5566 = vmatprep.subr.bf16.mxu0 %v5105
    %5567 = vmatpush1.bf16.msra.mxu0 %v5104
    %5568 = vmatprep.subr.bf16.mxu0 %v5101
    %5569 = vmatpush1.bf16.msra.mxu0 %v5100
    %5570 = vmatprep.subr.bf16.mxu0 %v5097
    %5571 = vmatpush1.bf16.msra.mxu0 %v5096
    %5572 = vmatprep.subr.bf16.mxu0 %v5093
    %5573 = vmatpush1.bf16.msra.mxu0 %v5092
    %5574 = vmatprep.subr.bf16.mxu0 %v5153
    %5575 = vmatpush2.bf16.msra.mxu0 %v5152
    %5576 = vmatprep.subr.bf16.mxu0 %v5149
    %5577 = vmatpush2.bf16.msra.mxu0 %v5148
    %5578 = vmatprep.subr.bf16.mxu0 %v5145
    %5579 = vmatpush2.bf16.msra.mxu0 %v5144
    %5580 = vmatprep.subr.bf16.mxu0 %v5141
    %5581 = vmatpush2.bf16.msra.mxu0 %v5140
    %5582 = vmatprep.subr.bf16.mxu0 %v5137
    %5583 = vmatpush2.bf16.msra.mxu0 %v5136
    %5584 = vmatprep.subr.bf16.mxu0 %v5133
    %5585 = vmatpush2.bf16.msra.mxu0 %v5132
    %5586 = vmatprep.subr.bf16.mxu0 %v5129
    %5587 = vmatpush2.bf16.msra.mxu0 %v5128
    %5588 = vmatprep.subr.bf16.mxu0 %v5125
    %5589 = vmatpush2.bf16.msra.mxu0 %v5124
    %5590 = vmatprep.mubr.bf16.mxu0 %v3937
    %5591 = vmatmul.mubr.bf16.gmra.mxu0 %v3936
    %v5592 = vpop.f32.mrf.mxu0
    %v5593 = vadd.f32 %v5552, %v5592
    %v5594 = vpop.f32.mrf.mxu0
    %v5595 = vadd.f32 %v5554, %v5594
    %v5596 = vpop.f32.mrf.mxu0
    %v5597 = vpop.f32.mrf.mxu0
    %5598 = vdwg.mxu0
    %5599 = vmatprep.subr.bf16.mxu0 %v5185
    %5600 = vmatpush1.bf16.msra.mxu0 %v5184
    %5601 = vmatprep.subr.bf16.mxu0 %v5181
    %5602 = vmatpush1.bf16.msra.mxu0 %v5180
    %5603 = vmatprep.subr.bf16.mxu0 %v5177
    %5604 = vmatpush1.bf16.msra.mxu0 %v5176
    %5605 = vmatprep.subr.bf16.mxu0 %v5173
    %5606 = vmatpush1.bf16.msra.mxu0 %v5172
    %5607 = vmatprep.subr.bf16.mxu0 %v5169
    %5608 = vmatpush1.bf16.msra.mxu0 %v5168
    %5609 = vmatprep.subr.bf16.mxu0 %v5165
    %5610 = vmatpush1.bf16.msra.mxu0 %v5164
    %5611 = vmatprep.subr.bf16.mxu0 %v5161
    %5612 = vmatpush1.bf16.msra.mxu0 %v5160
    %5613 = vmatprep.subr.bf16.mxu0 %v5157
    %5614 = vmatpush1.bf16.msra.mxu0 %v5156
    %5615 = vmatprep.subr.bf16.mxu0 %v5217
    %5616 = vmatpush2.bf16.msra.mxu0 %v5216
    %5617 = vmatprep.subr.bf16.mxu0 %v5213
    %5618 = vmatpush2.bf16.msra.mxu0 %v5212
    %5619 = vmatprep.subr.bf16.mxu0 %v5209
    %5620 = vmatpush2.bf16.msra.mxu0 %v5208
    %5621 = vmatprep.subr.bf16.mxu0 %v5205
    %5622 = vmatpush2.bf16.msra.mxu0 %v5204
    %5623 = vmatprep.subr.bf16.mxu0 %v5201
    %5624 = vmatpush2.bf16.msra.mxu0 %v5200
    %5625 = vmatprep.subr.bf16.mxu0 %v5197
    %5626 = vmatpush2.bf16.msra.mxu0 %v5196
    %5627 = vmatprep.subr.bf16.mxu0 %v5193
    %5628 = vmatpush2.bf16.msra.mxu0 %v5192
    %5629 = vmatprep.subr.bf16.mxu0 %v5189
    %5630 = vmatpush2.bf16.msra.mxu0 %v5188
    %5631 = vmatprep.mubr.bf16.mxu0 %v3939
    %5632 = vmatmul.mubr.bf16.gmra.mxu0 %v3938
    %v5633 = vpop.f32.mrf.mxu0
    %v5634 = vadd.f32 %v5593, %v5633
    %v5635 = vpop.f32.mrf.mxu0
    %v5636 = vadd.f32 %v5595, %v5635
    %v5637 = vpop.f32.mrf.mxu0
    %v5638 = vpop.f32.mrf.mxu0
    %5639 = vdwg.mxu0
    %5640 = vmatprep.subr.bf16.mxu0 %v4995
    %5641 = vmatpush1.bf16.msra.mxu0 %v4994
    %5642 = vmatprep.subr.bf16.mxu0 %v4991
    %5643 = vmatpush1.bf16.msra.mxu0 %v4990
    %5644 = vmatprep.subr.bf16.mxu0 %v4987
    %5645 = vmatpush1.bf16.msra.mxu0 %v4986
    %5646 = vmatprep.subr.bf16.mxu0 %v4983
    %5647 = vmatpush1.bf16.msra.mxu0 %v4982
    %5648 = vmatprep.subr.bf16.mxu0 %v4979
    %5649 = vmatpush1.bf16.msra.mxu0 %v4978
    %5650 = vmatprep.subr.bf16.mxu0 %v4975
    %5651 = vmatpush1.bf16.msra.mxu0 %v4974
    %5652 = vmatprep.subr.bf16.mxu0 %v4971
    %5653 = vmatpush1.bf16.msra.mxu0 %v4970
    %5654 = vmatprep.subr.bf16.mxu0 %v4967
    %5655 = vmatpush1.bf16.msra.mxu0 %v4966
    %5656 = vmatprep.subr.bf16.mxu0 %v5027
    %5657 = vmatpush2.bf16.msra.mxu0 %v5026
    %5658 = vmatprep.subr.bf16.mxu0 %v5023
    %5659 = vmatpush2.bf16.msra.mxu0 %v5022
    %5660 = vmatprep.subr.bf16.mxu0 %v5019
    %5661 = vmatpush2.bf16.msra.mxu0 %v5018
    %5662 = vmatprep.subr.bf16.mxu0 %v5015
    %5663 = vmatpush2.bf16.msra.mxu0 %v5014
    %5664 = vmatprep.subr.bf16.mxu0 %v5011
    %5665 = vmatpush2.bf16.msra.mxu0 %v5010
    %5666 = vmatprep.subr.bf16.mxu0 %v5007
    %5667 = vmatpush2.bf16.msra.mxu0 %v5006
    %5668 = vmatprep.subr.bf16.mxu0 %v5003
    %5669 = vmatpush2.bf16.msra.mxu0 %v5002
    %5670 = vmatprep.subr.bf16.mxu0 %v4999
    %5671 = vmatpush2.bf16.msra.mxu0 %v4998
    %5672 = vmatprep.mubr.bf16.mxu0 %v3933
    %5673 = vmatmul.mubr.bf16.gmra.mxu0 %v3932
    %v5674 = vpop.f32.mrf.mxu0
    %v5675 = vadd.f32 0.0, %v5674
    %v5676 = vpop.f32.mrf.mxu0
    %v5677 = vadd.f32 0.0, %v5676
    %v5678 = vpop.f32.mrf.mxu0
    %v5679 = vpop.f32.mrf.mxu0
    %5680 = vdwg.mxu0
    %5681 = vmatprep.subr.bf16.mxu0 %v5059
    %5682 = vmatpush1.bf16.msra.mxu0 %v5058
    %5683 = vmatprep.subr.bf16.mxu0 %v5055
    %5684 = vmatpush1.bf16.msra.mxu0 %v5054
    %5685 = vmatprep.subr.bf16.mxu0 %v5051
    %5686 = vmatpush1.bf16.msra.mxu0 %v5050
    %5687 = vmatprep.subr.bf16.mxu0 %v5047
    %5688 = vmatpush1.bf16.msra.mxu0 %v5046
    %5689 = vmatprep.subr.bf16.mxu0 %v5043
    %5690 = vmatpush1.bf16.msra.mxu0 %v5042
    %5691 = vmatprep.subr.bf16.mxu0 %v5039
    %5692 = vmatpush1.bf16.msra.mxu0 %v5038
    %5693 = vmatprep.subr.bf16.mxu0 %v5035
    %5694 = vmatpush1.bf16.msra.mxu0 %v5034
    %5695 = vmatprep.subr.bf16.mxu0 %v5031
    %5696 = vmatpush1.bf16.msra.mxu0 %v5030
    %5697 = vmatprep.subr.bf16.mxu0 %v5091
    %5698 = vmatpush2.bf16.msra.mxu0 %v5090
    %5699 = vmatprep.subr.bf16.mxu0 %v5087
    %5700 = vmatpush2.bf16.msra.mxu0 %v5086
    %5701 = vmatprep.subr.bf16.mxu0 %v5083
    %5702 = vmatpush2.bf16.msra.mxu0 %v5082
    %5703 = vmatprep.subr.bf16.mxu0 %v5079
    %5704 = vmatpush2.bf16.msra.mxu0 %v5078
    %5705 = vmatprep.subr.bf16.mxu0 %v5075
    %5706 = vmatpush2.bf16.msra.mxu0 %v5074
    %5707 = vmatprep.subr.bf16.mxu0 %v5071
    %5708 = vmatpush2.bf16.msra.mxu0 %v5070
    %5709 = vmatprep.subr.bf16.mxu0 %v5067
    %5710 = vmatpush2.bf16.msra.mxu0 %v5066
    %5711 = vmatprep.subr.bf16.mxu0 %v5063
    %5712 = vmatpush2.bf16.msra.mxu0 %v5062
    %5713 = vmatprep.mubr.bf16.mxu0 %v3935
    %5714 = vmatmul.mubr.bf16.gmra.mxu0 %v3934
    %v5715 = vpop.f32.mrf.mxu0
    %v5716 = vadd.f32 %v5675, %v5715
    %v5717 = vpop.f32.mrf.mxu0
    %v5718 = vadd.f32 %v5677, %v5717
    %v5719 = vpop.f32.mrf.mxu0
    %v5720 = vpop.f32.mrf.mxu0
    %5721 = vdwg.mxu0
    %5722 = vmatprep.subr.bf16.mxu0 %v5123
    %5723 = vmatpush1.bf16.msra.mxu0 %v5122
    %5724 = vmatprep.subr.bf16.mxu0 %v5119
    %5725 = vmatpush1.bf16.msra.mxu0 %v5118
    %5726 = vmatprep.subr.bf16.mxu0 %v5115
    %5727 = vmatpush1.bf16.msra.mxu0 %v5114
    %5728 = vmatprep.subr.bf16.mxu0 %v5111
    %5729 = vmatpush1.bf16.msra.mxu0 %v5110
    %5730 = vmatprep.subr.bf16.mxu0 %v5107
    %5731 = vmatpush1.bf16.msra.mxu0 %v5106
    %5732 = vmatprep.subr.bf16.mxu0 %v5103
    %5733 = vmatpush1.bf16.msra.mxu0 %v5102
    %5734 = vmatprep.subr.bf16.mxu0 %v5099
    %5735 = vmatpush1.bf16.msra.mxu0 %v5098
    %5736 = vmatprep.subr.bf16.mxu0 %v5095
    %5737 = vmatpush1.bf16.msra.mxu0 %v5094
    %5738 = vmatprep.subr.bf16.mxu0 %v5155
    %5739 = vmatpush2.bf16.msra.mxu0 %v5154
    %5740 = vmatprep.subr.bf16.mxu0 %v5151
    %5741 = vmatpush2.bf16.msra.mxu0 %v5150
    %5742 = vmatprep.subr.bf16.mxu0 %v5147
    %5743 = vmatpush2.bf16.msra.mxu0 %v5146
    %5744 = vmatprep.subr.bf16.mxu0 %v5143
    %5745 = vmatpush2.bf16.msra.mxu0 %v5142
    %5746 = vmatprep.subr.bf16.mxu0 %v5139
    %5747 = vmatpush2.bf16.msra.mxu0 %v5138
    %5748 = vmatprep.subr.bf16.mxu0 %v5135
    %5749 = vmatpush2.bf16.msra.mxu0 %v5134
    %5750 = vmatprep.subr.bf16.mxu0 %v5131
    %5751 = vmatpush2.bf16.msra.mxu0 %v5130
    %5752 = vmatprep.subr.bf16.mxu0 %v5127
    %5753 = vmatpush2.bf16.msra.mxu0 %v5126
    %5754 = vmatprep.mubr.bf16.mxu0 %v3937
    %5755 = vmatmul.mubr.bf16.gmra.mxu0 %v3936
    %v5756 = vpop.f32.mrf.mxu0
    %v5757 = vadd.f32 %v5716, %v5756
    %v5758 = vpop.f32.mrf.mxu0
    %v5759 = vadd.f32 %v5718, %v5758
    %v5760 = vpop.f32.mrf.mxu0
    %v5761 = vpop.f32.mrf.mxu0
    %5762 = vdwg.mxu0
    %5763 = vmatprep.subr.bf16.mxu0 %v5187
    %5764 = vmatpush1.bf16.msra.mxu0 %v5186
    %5765 = vmatprep.subr.bf16.mxu0 %v5183
    %5766 = vmatpush1.bf16.msra.mxu0 %v5182
    %5767 = vmatprep.subr.bf16.mxu0 %v5179
    %5768 = vmatpush1.bf16.msra.mxu0 %v5178
    %5769 = vmatprep.subr.bf16.mxu0 %v5175
    %5770 = vmatpush1.bf16.msra.mxu0 %v5174
    %5771 = vmatprep.subr.bf16.mxu0 %v5171
    %5772 = vmatpush1.bf16.msra.mxu0 %v5170
    %5773 = vmatprep.subr.bf16.mxu0 %v5167
    %5774 = vmatpush1.bf16.msra.mxu0 %v5166
    %5775 = vmatprep.subr.bf16.mxu0 %v5163
    %5776 = vmatpush1.bf16.msra.mxu0 %v5162
    %5777 = vmatprep.subr.bf16.mxu0 %v5159
    %5778 = vmatpush1.bf16.msra.mxu0 %v5158
    %5779 = vmatprep.subr.bf16.mxu0 %v5219
    %5780 = vmatpush2.bf16.msra.mxu0 %v5218
    %5781 = vmatprep.subr.bf16.mxu0 %v5215
    %5782 = vmatpush2.bf16.msra.mxu0 %v5214
    %5783 = vmatprep.subr.bf16.mxu0 %v5211
    %5784 = vmatpush2.bf16.msra.mxu0 %v5210
    %5785 = vmatprep.subr.bf16.mxu0 %v5207
    %5786 = vmatpush2.bf16.msra.mxu0 %v5206
    %5787 = vmatprep.subr.bf16.mxu0 %v5203
    %5788 = vmatpush2.bf16.msra.mxu0 %v5202
    %5789 = vmatprep.subr.bf16.mxu0 %v5199
    %5790 = vmatpush2.bf16.msra.mxu0 %v5198
    %5791 = vmatprep.subr.bf16.mxu0 %v5195
    %5792 = vmatpush2.bf16.msra.mxu0 %v5194
    %5793 = vmatprep.subr.bf16.mxu0 %v5191
    %5794 = vmatpush2.bf16.msra.mxu0 %v5190
    %5795 = vmatprep.mubr.bf16.mxu0 %v3939
    %5796 = vmatmul.mubr.bf16.gmra.mxu0 %v3938
    %v5797 = vpop.f32.mrf.mxu0
    %v5798 = vadd.f32 %v5757, %v5797
    %v5799 = vpop.f32.mrf.mxu0
    %v5800 = vadd.f32 %v5759, %v5799
    %v5801 = vpop.f32.mrf.mxu0
    %v5802 = vpop.f32.mrf.mxu0
    %5803 = vdwg.mxu0
    %v5804 = vld [vmem:[%s11] sm:$0xf]
    %v5806 = vlaneseq
    %v5807 = vshrl.u32 %v5806, 7
    %v5808 = vsub.s32 0, %v5807
    %v5809 = vrot.slane %v5804, %v5808
    %v5810 = vlaneseq
    %v5811 = vshrl.u32 %v5810, 7
    %v5812 = vsub.s32 1, %v5811
    %v5813 = vrot.slane %v5804, %v5812
    %v5814 = vlaneseq
    %v5815 = vshrl.u32 %v5814, 7
    %v5816 = vsub.s32 2, %v5815
    %v5817 = vrot.slane %v5804, %v5816
    %v5818 = vlaneseq
    %v5819 = vshrl.u32 %v5818, 7
    %v5820 = vsub.s32 3, %v5819
    %v5821 = vrot.slane %v5804, %v5820
    %v5826 = vmul.f32 %v5634, %v5809
    %v5827 = vmul.f32 %v5636, %v5813
    %v5828 = vmul.f32 %v5798, %v5817
    %v5829 = vmul.f32 %v5800, %v5821
    %v5830 = vld [vmem:[%s12] sm:$0xf]
    %v5832 = vlaneseq
    %v5833 = vshrl.u32 %v5832, 7
    %v5834 = vsub.s32 0, %v5833
    %v5835 = vrot.slane %v5830, %v5834
    %v5836 = vlaneseq
    %v5837 = vshrl.u32 %v5836, 7
    %v5838 = vsub.s32 1, %v5837
    %v5839 = vrot.slane %v5830, %v5838
    %v5840 = vlaneseq
    %v5841 = vshrl.u32 %v5840, 7
    %v5842 = vsub.s32 2, %v5841
    %v5843 = vrot.slane %v5830, %v5842
    %v5844 = vlaneseq
    %v5845 = vshrl.u32 %v5844, 7
    %v5846 = vsub.s32 3, %v5845
    %v5847 = vrot.slane %v5830, %v5846
    %v5852 = vadd.f32 %v5826, %v5835
    %v5853 = vadd.f32 %v5827, %v5839
    %v5854 = vadd.f32 %v5828, %v5843
    %v5855 = vadd.f32 %v5829, %v5847
    %v5856 = vmax.f32 %v5852, 0.0
    %v5857 = vmax.f32 %v5853, 0.0
    %v5858 = vmax.f32 %v5854, 0.0
    %v5859 = vmax.f32 %v5855, 0.0
    %v5860 = vpack.c.bf16 %v5856, %v5856
    %v5861 = vpack.c.bf16 %v5857, %v5857
    %v5862 = vpack.c.bf16 %v5858, %v5858
    %v5863 = vpack.c.bf16 %v5859, %v5859
    %v5864 = vld [vmem:[%s13] sm:$0xff]
    %v5865 = vld [vmem:[%s13 + $0x8] sm:$0xff]
    %v5866 = vld [vmem:[%s13 + $0x10] sm:$0xff]
    %v5867 = vld [vmem:[%s13 + $0x18] sm:$0xff]
    %v5868 = vld [vmem:[%s13 + $0x20] sm:$0xff]
    %v5869 = vld [vmem:[%s13 + $0x28] sm:$0xff]
    %v5870 = vld [vmem:[%s13 + $0x30] sm:$0xff]
    %v5871 = vld [vmem:[%s13 + $0x38] sm:$0xff]
    %v5872 = vld [vmem:[%s13 + $0x40] sm:$0xff]
    %v5873 = vld [vmem:[%s13 + $0x48] sm:$0xff]
    %v5874 = vld [vmem:[%s13 + $0x50] sm:$0xff]
    %v5875 = vld [vmem:[%s13 + $0x58] sm:$0xff]
    %v5876 = vld [vmem:[%s13 + $0x60] sm:$0xff]
    %v5877 = vld [vmem:[%s13 + $0x68] sm:$0xff]
    %v5878 = vld [vmem:[%s13 + $0x70] sm:$0xff]
    %v5879 = vld [vmem:[%s13 + $0x78] sm:$0xff]
    %v5880 = vld [vmem:[%s13 + $0x80] sm:$0xff]
    %v5881 = vld [vmem:[%s13 + $0x88] sm:$0xff]
    %v5882 = vld [vmem:[%s13 + $0x90] sm:$0xff]
    %v5883 = vld [vmem:[%s13 + $0x98] sm:$0xff]
    %v5884 = vld [vmem:[%s13 + $0xa0] sm:$0xff]
    %v5885 = vld [vmem:[%s13 + $0xa8] sm:$0xff]
    %v5886 = vld [vmem:[%s13 + $0xb0] sm:$0xff]
    %v5887 = vld [vmem:[%s13 + $0xb8] sm:$0xff]
    %v5888 = vld [vmem:[%s13 + $0xc0] sm:$0xff]
    %v5889 = vld [vmem:[%s13 + $0xc8] sm:$0xff]
    %v5890 = vld [vmem:[%s13 + $0xd0] sm:$0xff]
    %v5891 = vld [vmem:[%s13 + $0xd8] sm:$0xff]
    %v5892 = vld [vmem:[%s13 + $0xe0] sm:$0xff]
    %v5893 = vld [vmem:[%s13 + $0xe8] sm:$0xff]
    %v5894 = vld [vmem:[%s13 + $0xf0] sm:$0xff]
    %v5895 = vld [vmem:[%s13 + $0xf8] sm:$0xff]
    %v5896 = vld [vmem:[%s13 + $0x100] sm:$0xff]
    %v5897 = vld [vmem:[%s13 + $0x108] sm:$0xff]
    %v5898 = vld [vmem:[%s13 + $0x110] sm:$0xff]
    %v5899 = vld [vmem:[%s13 + $0x118] sm:$0xff]
    %v5900 = vld [vmem:[%s13 + $0x120] sm:$0xff]
    %v5901 = vld [vmem:[%s13 + $0x128] sm:$0xff]
    %v5902 = vld [vmem:[%s13 + $0x130] sm:$0xff]
    %v5903 = vld [vmem:[%s13 + $0x138] sm:$0xff]
    %v5904 = vld [vmem:[%s13 + $0x140] sm:$0xff]
    %v5905 = vld [vmem:[%s13 + $0x148] sm:$0xff]
    %v5906 = vld [vmem:[%s13 + $0x150] sm:$0xff]
    %v5907 = vld [vmem:[%s13 + $0x158] sm:$0xff]
    %v5908 = vld [vmem:[%s13 + $0x160] sm:$0xff]
    %v5909 = vld [vmem:[%s13 + $0x168] sm:$0xff]
    %v5910 = vld [vmem:[%s13 + $0x170] sm:$0xff]
    %v5911 = vld [vmem:[%s13 + $0x178] sm:$0xff]
    %v5912 = vld [vmem:[%s13 + $0x180] sm:$0xff]
    %v5913 = vld [vmem:[%s13 + $0x188] sm:$0xff]
    %v5914 = vld [vmem:[%s13 + $0x190] sm:$0xff]
    %v5915 = vld [vmem:[%s13 + $0x198] sm:$0xff]
    %v5916 = vld [vmem:[%s13 + $0x1a0] sm:$0xff]
    %v5917 = vld [vmem:[%s13 + $0x1a8] sm:$0xff]
    %v5918 = vld [vmem:[%s13 + $0x1b0] sm:$0xff]
    %v5919 = vld [vmem:[%s13 + $0x1b8] sm:$0xff]
    %v5920 = vld [vmem:[%s13 + $0x1c0] sm:$0xff]
    %v5921 = vld [vmem:[%s13 + $0x1c8] sm:$0xff]
    %v5922 = vld [vmem:[%s13 + $0x1d0] sm:$0xff]
    %v5923 = vld [vmem:[%s13 + $0x1d8] sm:$0xff]
    %v5924 = vld [vmem:[%s13 + $0x1e0] sm:$0xff]
    %v5925 = vld [vmem:[%s13 + $0x1e8] sm:$0xff]
    %v5926 = vld [vmem:[%s13 + $0x1f0] sm:$0xff]
    %v5927 = vld [vmem:[%s13 + $0x1f8] sm:$0xff]
    %v5992 = vunpack.c.l.b16 %v5864
    %v5993 = vunpack.c.h.b16 %v5864
    %v5994 = vunpack.c.l.b16 %v5865
    %v5995 = vunpack.c.h.b16 %v5865
    %v5996 = vunpack.c.l.b16 %v5866
    %v5997 = vunpack.c.h.b16 %v5866
    %v5998 = vunpack.c.l.b16 %v5867
    %v5999 = vunpack.c.h.b16 %v5867
    %v6000 = vunpack.c.l.b16 %v5868
    %v6001 = vunpack.c.h.b16 %v5868
    %v6002 = vunpack.c.l.b16 %v5869
    %v6003 = vunpack.c.h.b16 %v5869
    %v6004 = vunpack.c.l.b16 %v5870
    %v6005 = vunpack.c.h.b16 %v5870
    %v6006 = vunpack.c.l.b16 %v5871
    %v6007 = vunpack.c.h.b16 %v5871
    %v6008 = vunpack.c.l.b16 %v5872
    %v6009 = vunpack.c.h.b16 %v5872
    %v6010 = vunpack.c.l.b16 %v5873
    %v6011 = vunpack.c.h.b16 %v5873
    %v6012 = vunpack.c.l.b16 %v5874
    %v6013 = vunpack.c.h.b16 %v5874
    %v6014 = vunpack.c.l.b16 %v5875
    %v6015 = vunpack.c.h.b16 %v5875
    %v6016 = vunpack.c.l.b16 %v5876
    %v6017 = vunpack.c.h.b16 %v5876
    %v6018 = vunpack.c.l.b16 %v5877
    %v6019 = vunpack.c.h.b16 %v5877
    %v6020 = vunpack.c.l.b16 %v5878
    %v6021 = vunpack.c.h.b16 %v5878
    %v6022 = vunpack.c.l.b16 %v5879
    %v6023 = vunpack.c.h.b16 %v5879
    %v6024 = vunpack.c.l.b16 %v5880
    %v6025 = vunpack.c.h.b16 %v5880
    %v6026 = vunpack.c.l.b16 %v5881
    %v6027 = vunpack.c.h.b16 %v5881
    %v6028 = vunpack.c.l.b16 %v5882
    %v6029 = vunpack.c.h.b16 %v5882
    %v6030 = vunpack.c.l.b16 %v5883
    %v6031 = vunpack.c.h.b16 %v5883
    %v6032 = vunpack.c.l.b16 %v5884
    %v6033 = vunpack.c.h.b16 %v5884
    %v6034 = vunpack.c.l.b16 %v5885
    %v6035 = vunpack.c.h.b16 %v5885
    %v6036 = vunpack.c.l.b16 %v5886
    %v6037 = vunpack.c.h.b16 %v5886
    %v6038 = vunpack.c.l.b16 %v5887
    %v6039 = vunpack.c.h.b16 %v5887
    %v6040 = vunpack.c.l.b16 %v5888
    %v6041 = vunpack.c.h.b16 %v5888
    %v6042 = vunpack.c.l.b16 %v5889
    %v6043 = vunpack.c.h.b16 %v5889
    %v6044 = vunpack.c.l.b16 %v5890
    %v6045 = vunpack.c.h.b16 %v5890
    %v6046 = vunpack.c.l.b16 %v5891
    %v6047 = vunpack.c.h.b16 %v5891
    %v6048 = vunpack.c.l.b16 %v5892
    %v6049 = vunpack.c.h.b16 %v5892
    %v6050 = vunpack.c.l.b16 %v5893
    %v6051 = vunpack.c.h.b16 %v5893
    %v6052 = vunpack.c.l.b16 %v5894
    %v6053 = vunpack.c.h.b16 %v5894
    %v6054 = vunpack.c.l.b16 %v5895
    %v6055 = vunpack.c.h.b16 %v5895
    %v6056 = vunpack.c.l.b16 %v5896
    %v6057 = vunpack.c.h.b16 %v5896
    %v6058 = vunpack.c.l.b16 %v5897
    %v6059 = vunpack.c.h.b16 %v5897
    %v6060 = vunpack.c.l.b16 %v5898
    %v6061 = vunpack.c.h.b16 %v5898
    %v6062 = vunpack.c.l.b16 %v5899
    %v6063 = vunpack.c.h.b16 %v5899
    %v6064 = vunpack.c.l.b16 %v5900
    %v6065 = vunpack.c.h.b16 %v5900
    %v6066 = vunpack.c.l.b16 %v5901
    %v6067 = vunpack.c.h.b16 %v5901
    %v6068 = vunpack.c.l.b16 %v5902
    %v6069 = vunpack.c.h.b16 %v5902
    %v6070 = vunpack.c.l.b16 %v5903
    %v6071 = vunpack.c.h.b16 %v5903
    %v6072 = vunpack.c.l.b16 %v5904
    %v6073 = vunpack.c.h.b16 %v5904
    %v6074 = vunpack.c.l.b16 %v5905
    %v6075 = vunpack.c.h.b16 %v5905
    %v6076 = vunpack.c.l.b16 %v5906
    %v6077 = vunpack.c.h.b16 %v5906
    %v6078 = vunpack.c.l.b16 %v5907
    %v6079 = vunpack.c.h.b16 %v5907
    %v6080 = vunpack.c.l.b16 %v5908
    %v6081 = vunpack.c.h.b16 %v5908
    %v6082 = vunpack.c.l.b16 %v5909
    %v6083 = vunpack.c.h.b16 %v5909
    %v6084 = vunpack.c.l.b16 %v5910
    %v6085 = vunpack.c.h.b16 %v5910
    %v6086 = vunpack.c.l.b16 %v5911
    %v6087 = vunpack.c.h.b16 %v5911
    %v6088 = vunpack.c.l.b16 %v5912
    %v6089 = vunpack.c.h.b16 %v5912
    %v6090 = vunpack.c.l.b16 %v5913
    %v6091 = vunpack.c.h.b16 %v5913
    %v6092 = vunpack.c.l.b16 %v5914
    %v6093 = vunpack.c.h.b16 %v5914
    %v6094 = vunpack.c.l.b16 %v5915
    %v6095 = vunpack.c.h.b16 %v5915
    %v6096 = vunpack.c.l.b16 %v5916
    %v6097 = vunpack.c.h.b16 %v5916
    %v6098 = vunpack.c.l.b16 %v5917
    %v6099 = vunpack.c.h.b16 %v5917
    %v6100 = vunpack.c.l.b16 %v5918
    %v6101 = vunpack.c.h.b16 %v5918
    %v6102 = vunpack.c.l.b16 %v5919
    %v6103 = vunpack.c.h.b16 %v5919
    %v6104 = vunpack.c.l.b16 %v5920
    %v6105 = vunpack.c.h.b16 %v5920
    %v6106 = vunpack.c.l.b16 %v5921
    %v6107 = vunpack.c.h.b16 %v5921
    %v6108 = vunpack.c.l.b16 %v5922
    %v6109 = vunpack.c.h.b16 %v5922
    %v6110 = vunpack.c.l.b16 %v5923
    %v6111 = vunpack.c.h.b16 %v5923
    %v6112 = vunpack.c.l.b16 %v5924
    %v6113 = vunpack.c.h.b16 %v5924
    %v6114 = vunpack.c.l.b16 %v5925
    %v6115 = vunpack.c.h.b16 %v5925
    %v6116 = vunpack.c.l.b16 %v5926
    %v6117 = vunpack.c.h.b16 %v5926
    %v6118 = vunpack.c.l.b16 %v5927
    %v6119 = vunpack.c.h.b16 %v5927
    %v6120 = vpack.c.b16 %v5994, %v5992
    %v6121 = vpack.c.b16 %v5995, %v5993
    %v6122 = vpack.c.b16 %v5998, %v5996
    %v6123 = vpack.c.b16 %v5999, %v5997
    %v6124 = vpack.c.b16 %v6002, %v6000
    %v6125 = vpack.c.b16 %v6003, %v6001
    %v6126 = vpack.c.b16 %v6006, %v6004
    %v6127 = vpack.c.b16 %v6007, %v6005
    %v6128 = vpack.c.b16 %v6010, %v6008
    %v6129 = vpack.c.b16 %v6011, %v6009
    %v6130 = vpack.c.b16 %v6014, %v6012
    %v6131 = vpack.c.b16 %v6015, %v6013
    %v6132 = vpack.c.b16 %v6018, %v6016
    %v6133 = vpack.c.b16 %v6019, %v6017
    %v6134 = vpack.c.b16 %v6022, %v6020
    %v6135 = vpack.c.b16 %v6023, %v6021
    %v6136 = vpack.c.b16 %v6026, %v6024
    %v6137 = vpack.c.b16 %v6027, %v6025
    %v6138 = vpack.c.b16 %v6030, %v6028
    %v6139 = vpack.c.b16 %v6031, %v6029
    %v6140 = vpack.c.b16 %v6034, %v6032
    %v6141 = vpack.c.b16 %v6035, %v6033
    %v6142 = vpack.c.b16 %v6038, %v6036
    %v6143 = vpack.c.b16 %v6039, %v6037
    %v6144 = vpack.c.b16 %v6042, %v6040
    %v6145 = vpack.c.b16 %v6043, %v6041
    %v6146 = vpack.c.b16 %v6046, %v6044
    %v6147 = vpack.c.b16 %v6047, %v6045
    %v6148 = vpack.c.b16 %v6050, %v6048
    %v6149 = vpack.c.b16 %v6051, %v6049
    %v6150 = vpack.c.b16 %v6054, %v6052
    %v6151 = vpack.c.b16 %v6055, %v6053
    %v6152 = vpack.c.b16 %v6058, %v6056
    %v6153 = vpack.c.b16 %v6059, %v6057
    %v6154 = vpack.c.b16 %v6062, %v6060
    %v6155 = vpack.c.b16 %v6063, %v6061
    %v6156 = vpack.c.b16 %v6066, %v6064
    %v6157 = vpack.c.b16 %v6067, %v6065
    %v6158 = vpack.c.b16 %v6070, %v6068
    %v6159 = vpack.c.b16 %v6071, %v6069
    %v6160 = vpack.c.b16 %v6074, %v6072
    %v6161 = vpack.c.b16 %v6075, %v6073
    %v6162 = vpack.c.b16 %v6078, %v6076
    %v6163 = vpack.c.b16 %v6079, %v6077
    %v6164 = vpack.c.b16 %v6082, %v6080
    %v6165 = vpack.c.b16 %v6083, %v6081
    %v6166 = vpack.c.b16 %v6086, %v6084
    %v6167 = vpack.c.b16 %v6087, %v6085
    %v6168 = vpack.c.b16 %v6090, %v6088
    %v6169 = vpack.c.b16 %v6091, %v6089
    %v6170 = vpack.c.b16 %v6094, %v6092
    %v6171 = vpack.c.b16 %v6095, %v6093
    %v6172 = vpack.c.b16 %v6098, %v6096
    %v6173 = vpack.c.b16 %v6099, %v6097
    %v6174 = vpack.c.b16 %v6102, %v6100
    %v6175 = vpack.c.b16 %v6103, %v6101
    %v6176 = vpack.c.b16 %v6106, %v6104
    %v6177 = vpack.c.b16 %v6107, %v6105
    %v6178 = vpack.c.b16 %v6110, %v6108
    %v6179 = vpack.c.b16 %v6111, %v6109
    %v6180 = vpack.c.b16 %v6114, %v6112
    %v6181 = vpack.c.b16 %v6115, %v6113
    %v6182 = vpack.c.b16 %v6118, %v6116
    %v6183 = vpack.c.b16 %v6119, %v6117
    %6248 = vmatprep.subr.bf16.mxu0 %v6135
    %6249 = vmatpush1.bf16.msra.mxu0 %v6134
    %6250 = vmatprep.subr.bf16.mxu0 %v6133
    %6251 = vmatpush1.bf16.msra.mxu0 %v6132
    %6252 = vmatprep.subr.bf16.mxu0 %v6131
    %6253 = vmatpush1.bf16.msra.mxu0 %v6130
    %6254 = vmatprep.subr.bf16.mxu0 %v6129
    %6255 = vmatpush1.bf16.msra.mxu0 %v6128
    %6256 = vmatprep.subr.bf16.mxu0 %v6127
    %6257 = vmatpush1.bf16.msra.mxu0 %v6126
    %6258 = vmatprep.subr.bf16.mxu0 %v6125
    %6259 = vmatpush1.bf16.msra.mxu0 %v6124
    %6260 = vmatprep.subr.bf16.mxu0 %v6123
    %6261 = vmatpush1.bf16.msra.mxu0 %v6122
    %6262 = vmatprep.subr.bf16.mxu0 %v6121
    %6263 = vmatpush1.bf16.msra.mxu0 %v6120
    %6264 = vmatprep.subr.bf16.mxu0 %v6151
    %6265 = vmatpush2.bf16.msra.mxu0 %v6150
    %6266 = vmatprep.subr.bf16.mxu0 %v6149
    %6267 = vmatpush2.bf16.msra.mxu0 %v6148
    %6268 = vmatprep.subr.bf16.mxu0 %v6147
    %6269 = vmatpush2.bf16.msra.mxu0 %v6146
    %6270 = vmatprep.subr.bf16.mxu0 %v6145
    %6271 = vmatpush2.bf16.msra.mxu0 %v6144
    %6272 = vmatprep.subr.bf16.mxu0 %v6143
    %6273 = vmatpush2.bf16.msra.mxu0 %v6142
    %6274 = vmatprep.subr.bf16.mxu0 %v6141
    %6275 = vmatpush2.bf16.msra.mxu0 %v6140
    %6276 = vmatprep.subr.bf16.mxu0 %v6139
    %6277 = vmatpush2.bf16.msra.mxu0 %v6138
    %6278 = vmatprep.subr.bf16.mxu0 %v6137
    %6279 = vmatpush2.bf16.msra.mxu0 %v6136
    %6280 = vmatprep.mubr.bf16.mxu0 %v5861
    %6281 = vmatmul.mubr.bf16.gmra.mxu0 %v5860
    %v6282 = vpop.f32.mrf.mxu0
    %v6283 = vadd.f32 0.0, %v6282
    %v6284 = vpop.f32.mrf.mxu0
    %v6285 = vadd.f32 0.0, %v6284
    %v6286 = vpop.f32.mrf.mxu0
    %v6287 = vpop.f32.mrf.mxu0
    %6288 = vdwg.mxu0
    %6289 = vmatprep.subr.bf16.mxu0 %v6167
    %6290 = vmatpush1.bf16.msra.mxu0 %v6166
    %6291 = vmatprep.subr.bf16.mxu0 %v6165
    %6292 = vmatpush1.bf16.msra.mxu0 %v6164
    %6293 = vmatprep.subr.bf16.mxu0 %v6163
    %6294 = vmatpush1.bf16.msra.mxu0 %v6162
    %6295 = vmatprep.subr.bf16.mxu0 %v6161
    %6296 = vmatpush1.bf16.msra.mxu0 %v6160
    %6297 = vmatprep.subr.bf16.mxu0 %v6159
    %6298 = vmatpush1.bf16.msra.mxu0 %v6158
    %6299 = vmatprep.subr.bf16.mxu0 %v6157
    %6300 = vmatpush1.bf16.msra.mxu0 %v6156
    %6301 = vmatprep.subr.bf16.mxu0 %v6155
    %6302 = vmatpush1.bf16.msra.mxu0 %v6154
    %6303 = vmatprep.subr.bf16.mxu0 %v6153
    %6304 = vmatpush1.bf16.msra.mxu0 %v6152
    %6305 = vmatprep.subr.bf16.mxu0 %v6183
    %6306 = vmatpush2.bf16.msra.mxu0 %v6182
    %6307 = vmatprep.subr.bf16.mxu0 %v6181
    %6308 = vmatpush2.bf16.msra.mxu0 %v6180
    %6309 = vmatprep.subr.bf16.mxu0 %v6179
    %6310 = vmatpush2.bf16.msra.mxu0 %v6178
    %6311 = vmatprep.subr.bf16.mxu0 %v6177
    %6312 = vmatpush2.bf16.msra.mxu0 %v6176
    %6313 = vmatprep.subr.bf16.mxu0 %v6175
    %6314 = vmatpush2.bf16.msra.mxu0 %v6174
    %6315 = vmatprep.subr.bf16.mxu0 %v6173
    %6316 = vmatpush2.bf16.msra.mxu0 %v6172
    %6317 = vmatprep.subr.bf16.mxu0 %v6171
    %6318 = vmatpush2.bf16.msra.mxu0 %v6170
    %6319 = vmatprep.subr.bf16.mxu0 %v6169
    %6320 = vmatpush2.bf16.msra.mxu0 %v6168
    %6321 = vmatprep.mubr.bf16.mxu0 %v5863
    %6322 = vmatmul.mubr.bf16.gmra.mxu0 %v5862
    %v6323 = vpop.f32.mrf.mxu0
    %v6324 = vadd.f32 %v6283, %v6323
    %v6325 = vpop.f32.mrf.mxu0
    %v6326 = vadd.f32 %v6285, %v6325
    %v6327 = vpop.f32.mrf.mxu0
    %v6328 = vpop.f32.mrf.mxu0
    %6329 = vdwg.mxu0
    %v6330 = vld [vmem:[%s14] sm:$0x3]
    %v6332 = vlaneseq
    %v6333 = vshrl.u32 %v6332, 7
    %v6334 = vsub.s32 0, %v6333
    %v6335 = vrot.slane %v6330, %v6334
    %v6336 = vlaneseq
    %v6337 = vshrl.u32 %v6336, 7
    %v6338 = vsub.s32 1, %v6337
    %v6339 = vrot.slane %v6330, %v6338
    %v6342 = vmul.f32 %v6324, %v6335
    %v6343 = vmul.f32 %v6326, %v6339
    %v6344 = vld [vmem:[%s15] sm:$0x3]
    %v6346 = vlaneseq
    %v6347 = vshrl.u32 %v6346, 7
    %v6348 = vsub.s32 0, %v6347
    %v6349 = vrot.slane %v6344, %v6348
    %v6350 = vlaneseq
    %v6351 = vshrl.u32 %v6350, 7
    %v6352 = vsub.s32 1, %v6351
    %v6353 = vrot.slane %v6344, %v6352
    %v6356 = vadd.f32 %v6342, %v6349
    %v6357 = vadd.f32 %v6343, %v6353
    %v6358 = vmax.f32 %v6356, 0.0
    %v6359 = vmax.f32 %v6357, 0.0
    %v6360 = vpack.c.bf16 %v6358, %v6358
    %v6361 = vpack.c.bf16 %v6359, %v6359
    %v6362 = vld [vmem:[%s16] sm:$0xf]
    %v6363 = vld [vmem:[%s16 + $0x4] sm:$0xf]
    %v6364 = vld [vmem:[%s16 + $0x8] sm:$0xf]
    %v6365 = vld [vmem:[%s16 + $0xc] sm:$0xf]
    %v6366 = vld [vmem:[%s16 + $0x10] sm:$0xf]
    %v6367 = vld [vmem:[%s16 + $0x14] sm:$0xf]
    %v6368 = vld [vmem:[%s16 + $0x18] sm:$0xf]
    %v6369 = vld [vmem:[%s16 + $0x1c] sm:$0xf]
    %v6370 = vld [vmem:[%s16 + $0x20] sm:$0xf]
    %v6371 = vld [vmem:[%s16 + $0x24] sm:$0xf]
    %v6372 = vld [vmem:[%s16 + $0x28] sm:$0xf]
    %v6373 = vld [vmem:[%s16 + $0x2c] sm:$0xf]
    %v6374 = vld [vmem:[%s16 + $0x30] sm:$0xf]
    %v6375 = vld [vmem:[%s16 + $0x34] sm:$0xf]
    %v6376 = vld [vmem:[%s16 + $0x38] sm:$0xf]
    %v6377 = vld [vmem:[%s16 + $0x3c] sm:$0xf]
    %v6378 = vld [vmem:[%s16 + $0x40] sm:$0xf]
    %v6379 = vld [vmem:[%s16 + $0x44] sm:$0xf]
    %v6380 = vld [vmem:[%s16 + $0x48] sm:$0xf]
    %v6381 = vld [vmem:[%s16 + $0x4c] sm:$0xf]
    %v6382 = vld [vmem:[%s16 + $0x50] sm:$0xf]
    %v6383 = vld [vmem:[%s16 + $0x54] sm:$0xf]
    %v6384 = vld [vmem:[%s16 + $0x58] sm:$0xf]
    %v6385 = vld [vmem:[%s16 + $0x5c] sm:$0xf]
    %v6386 = vld [vmem:[%s16 + $0x60] sm:$0xf]
    %v6387 = vld [vmem:[%s16 + $0x64] sm:$0xf]
    %v6388 = vld [vmem:[%s16 + $0x68] sm:$0xf]
    %v6389 = vld [vmem:[%s16 + $0x6c] sm:$0xf]
    %v6390 = vld [vmem:[%s16 + $0x70] sm:$0xf]
    %v6391 = vld [vmem:[%s16 + $0x74] sm:$0xf]
    %v6392 = vld [vmem:[%s16 + $0x78] sm:$0xf]
    %v6393 = vld [vmem:[%s16 + $0x7c] sm:$0xf]
    %v6394 = vld [vmem:[%s17] sm:$0x1]
    %v6396 = vlaneseq
    %v6397 = vshrl.u32 %v6396, 7
    %v6398 = vsub.s32 0, %v6397
    %v6399 = vrot.slane %v6394, %v6398
    %v6433 = vunpack.c.l.b16 %v6362
    %v6434 = vunpack.c.l.b16 %v6363
    %v6435 = vunpack.c.l.b16 %v6364
    %v6436 = vunpack.c.l.b16 %v6365
    %v6437 = vunpack.c.l.b16 %v6366
    %v6438 = vunpack.c.l.b16 %v6367
    %v6439 = vunpack.c.l.b16 %v6368
    %v6440 = vunpack.c.l.b16 %v6369
    %v6441 = vunpack.c.l.b16 %v6370
    %v6442 = vunpack.c.l.b16 %v6371
    %v6443 = vunpack.c.l.b16 %v6372
    %v6444 = vunpack.c.l.b16 %v6373
    %v6445 = vunpack.c.l.b16 %v6374
    %v6446 = vunpack.c.l.b16 %v6375
    %v6447 = vunpack.c.l.b16 %v6376
    %v6448 = vunpack.c.l.b16 %v6377
    %v6449 = vunpack.c.l.b16 %v6378
    %v6450 = vunpack.c.l.b16 %v6379
    %v6451 = vunpack.c.l.b16 %v6380
    %v6452 = vunpack.c.l.b16 %v6381
    %v6453 = vunpack.c.l.b16 %v6382
    %v6454 = vunpack.c.l.b16 %v6383
    %v6455 = vunpack.c.l.b16 %v6384
    %v6456 = vunpack.c.l.b16 %v6385
    %v6457 = vunpack.c.l.b16 %v6386
    %v6458 = vunpack.c.l.b16 %v6387
    %v6459 = vunpack.c.l.b16 %v6388
    %v6460 = vunpack.c.l.b16 %v6389
    %v6461 = vunpack.c.l.b16 %v6390
    %v6462 = vunpack.c.l.b16 %v6391
    %v6463 = vunpack.c.l.b16 %v6392
    %v6464 = vunpack.c.l.b16 %v6393
    %v6465 = vpack.c.b16 %v6434, %v6433
    %v6466 = vpack.c.b16 %v6436, %v6435
    %v6467 = vpack.c.b16 %v6438, %v6437
    %v6468 = vpack.c.b16 %v6440, %v6439
    %v6469 = vpack.c.b16 %v6442, %v6441
    %v6470 = vpack.c.b16 %v6444, %v6443
    %v6471 = vpack.c.b16 %v6446, %v6445
    %v6472 = vpack.c.b16 %v6448, %v6447
    %v6473 = vpack.c.b16 %v6450, %v6449
    %v6474 = vpack.c.b16 %v6452, %v6451
    %v6475 = vpack.c.b16 %v6454, %v6453
    %v6476 = vpack.c.b16 %v6456, %v6455
    %v6477 = vpack.c.b16 %v6458, %v6457
    %v6478 = vpack.c.b16 %v6460, %v6459
    %v6479 = vpack.c.b16 %v6462, %v6461
    %v6480 = vpack.c.b16 %v6464, %v6463
    %6497 = vmatprep.subr.bf16.mxu0 0
    %6498 = vmatpush1.bf16.msra.mxu0 %v6472
    %6499 = vmatprep.subr.bf16.mxu0 0
    %6500 = vmatpush1.bf16.msra.mxu0 %v6471
    %6501 = vmatprep.subr.bf16.mxu0 0
    %6502 = vmatpush1.bf16.msra.mxu0 %v6470
    %6503 = vmatprep.subr.bf16.mxu0 0
    %6504 = vmatpush1.bf16.msra.mxu0 %v6469
    %6505 = vmatprep.subr.bf16.mxu0 0
    %6506 = vmatpush1.bf16.msra.mxu0 %v6468
    %6507 = vmatprep.subr.bf16.mxu0 0
    %6508 = vmatpush1.bf16.msra.mxu0 %v6467
    %6509 = vmatprep.subr.bf16.mxu0 0
    %6510 = vmatpush1.bf16.msra.mxu0 %v6466
    %6511 = vmatprep.subr.bf16.mxu0 0
    %6512 = vmatpush1.bf16.msra.mxu0 %v6465
    %6513 = vmatprep.subr.bf16.mxu0 0
    %6514 = vmatpush2.bf16.msra.mxu0 %v6480
    %6515 = vmatprep.subr.bf16.mxu0 0
    %6516 = vmatpush2.bf16.msra.mxu0 %v6479
    %6517 = vmatprep.subr.bf16.mxu0 0
    %6518 = vmatpush2.bf16.msra.mxu0 %v6478
    %6519 = vmatprep.subr.bf16.mxu0 0
    %6520 = vmatpush2.bf16.msra.mxu0 %v6477
    %6521 = vmatprep.subr.bf16.mxu0 0
    %6522 = vmatpush2.bf16.msra.mxu0 %v6476
    %6523 = vmatprep.subr.bf16.mxu0 0
    %6524 = vmatpush2.bf16.msra.mxu0 %v6475
    %6525 = vmatprep.subr.bf16.mxu0 0
    %6526 = vmatpush2.bf16.msra.mxu0 %v6474
    %6527 = vmatprep.subr.bf16.mxu0 0
    %6528 = vmatpush2.bf16.msra.mxu0 %v6473
    %6529 = vmatprep.mubr.bf16.mxu0 %v6361
    %6530 = vmatmul.mubr.bf16.gmra.mxu0 %v6360
    %v6531 = vpop.f32.mrf.mxu0
    %v6532 = vadd.f32 %v6399, %v6531
    %v6533 = vpop.f32.mrf.mxu0
    %v6534 = vpop.f32.mrf.mxu0
    %v6535 = vpop.f32.mrf.mxu0
    %6536 = vdwg.mxu0
    %v6537 = vld [vmem:[%s18] sm:$0x1]
    %v6539 = vlaneseq
    %v6540 = vshrl.u32 %v6539, 7
    %v6541 = vsub.s32 0, %v6540
    %v6542 = vrot.slane %v6537, %v6541
    %v6544 = vadd.f32 %v6532, %v6542
    %vm6545 = vcmask 72704
    %6546 = vst.msk [vmem:[%s19] sm:$0xff] %vm6545, %v6544
  $region85: #{tnetkd_forward.1} parent=0 // pred_fallthru
    _
  // Predicated region
  $region86: #{tnetkd_forward.1} parent=0 // pred_check
    _
  $region87: #{tnetkd_forward.1} parent=0 // pred_check_branch
    %6548 = sbr.rel (0) target = $region89
  $region88: #{tnetkd_forward.1} parent=0 // pred_region
    _
  $region89: #{tnetkd_forward.1} parent=0 // pred_fallthru
    _
  // Predicated region
  $region90: #{tnetkd_forward.1} parent=0 // pred_check
    _
  $region91: #{tnetkd_forward.1} parent=0 // pred_check_branch
    %6550 = sbr.rel (0) target = $region93
  $region92: #{tnetkd_forward.1} parent=0 // pred_region
    _
  $region93: #{tnetkd_forward.1} parent=0 // pred_fallthru
    _

</llo_original>
